<compile_context>
chip_gen: v7x
topology: tpu7x:2x2x1
jax: 0.10.0
libtpu: 0.0.40
codegen_flags: <defaults>
</compile_context>

<pallas_src>
import jax
import jax.numpy as jnp
from jax.experimental import pallas as pl
from jax.experimental.pallas import tpu as pltpu


# ---------------------------------------------------------------------------
# Host-side packing: 3x3 conv -> three block-banded matrices (one per dy)
# ---------------------------------------------------------------------------
def _pack_band_weights(w, w_out, in_stride):
    """w: (3, 3, cin, cout) f32.

    Returns 3 bf16 matrices B_dy of shape (w_out*in_stride*cin, w_out*cout) so
    that, with activations stored lane-dense (input pixel wi at lane block
    wi*in_stride), the dy-contribution of a zero-padded 3x3 conv is
    `row_shift_dy(act) @ B_dy`.  in_stride=2 lets the matrix consume a
    2x2-maxpooled activation that is still un-compacted along W (odd lane
    blocks hold garbage and hit all-zero rows).
    """
    _, _, cin, cout = w.shape
    w_in = w_out * in_stride
    bands = []
    for dy in range(3):
        B = jnp.zeros((w_in, cin, w_out, cout), jnp.float32)
        for dx in range(3):
            off = dx - 1
            wo = jnp.arange(max(0, -off), w_out - max(0, off))
            wi = in_stride * (wo + off)
            B = B.at[wi, :, wo, :].set(w[dy, dx])
        bands.append(B.reshape(w_in * cin, w_out * cout).astype(jnp.bfloat16))
    return bands


# ---------------------------------------------------------------------------
# Fully fused encoder kernel (all stages, one grid step per batch element)
# ---------------------------------------------------------------------------
def _make_vgg_kernel(stage_meta):
    """stage_meta: tuple of dicts {"H", "W", "down", "blocks": ((cin,cout),..)}.

    Ref order: x_ref, 5 refs per conv block (B0, B1, B2, scale_row, bias_row),
    one output ref per stage, one f32 pool scratch per down-sampled stage.
    """
    n_blocks = sum(len(st["blocks"]) for st in stage_meta)
    n_stage = len(stage_meta)

    def kernel(*refs):
        x_ref = refs[0]
        prefs = refs[1:1 + 5 * n_blocks]
        orefs = refs[1 + 5 * n_blocks:1 + 5 * n_blocks + n_stage]
        pool_refs = refs[1 + 5 * n_blocks + n_stage:]

        act = x_ref[...].astype(jnp.bfloat16)          # (H0, W0*Cin0)
        y = None                                       # f32 output of last block
        p = 0
        pool_i = 0
        for si, st in enumerate(stage_meta):
            H = st["H"]
            if st["down"]:
                # Fused 2x2/2 maxpool of the previous stage's VMEM-resident
                # f32 activation y (shape (2H, 128), lane-dense).
                cin0 = st["blocks"][0][0]
                pool = pool_refs[pool_i]
                pool_i += 1
                pool[...] = y
                # H pairs: strided sublane reads of the lane-dense scratch.
                hmax = jnp.maximum(pool[pl.ds(0, H, 2), :],
                                   pool[pl.ds(1, H, 2), :])
                # W pairs: shift lanes by cin0 and max.  Odd cin0-blocks become
                # garbage; they hit all-zero rows of the next band matrix.
                shifted = jnp.concatenate([hmax[:, cin0:], hmax[:, :cin0]],
                                          axis=1)
                act = jnp.maximum(hmax, shifted).astype(jnp.bfloat16)

            for (cin, cout) in st["blocks"]:
                b0 = prefs[p + 0][...]                 # (K, W*cout) bf16 bands
                b1 = prefs[p + 1][...]
                b2 = prefs[p + 2][...]
                s_row = prefs[p + 3][...]              # (1, W*cout) f32
                bias_row = prefs[p + 4][...]           # (1, W*cout) f32
                p += 5

                wcin = act.shape[1]
                zrow = jnp.zeros((1, wcin), jnp.bfloat16)
                r_up = jnp.concatenate([zrow, act[:-1, :]], axis=0)   # row h-1
                r_dn = jnp.concatenate([act[1:, :], zrow], axis=0)    # row h+1

                y = jnp.dot(r_up, b0, preferred_element_type=jnp.float32)
                y = y + jnp.dot(act, b1, preferred_element_type=jnp.float32)
                y = y + jnp.dot(r_dn, b2, preferred_element_type=jnp.float32)
                y = jnp.maximum(y * s_row + bias_row, 0.0)   # folded BN + ReLU
                act = y.astype(jnp.bfloat16)

            # Lane-dense store of the stage feature (H, W*Cout), W*Cout = 128.
            orefs[si][...] = y.astype(orefs[si].dtype)

    return kernel


# ---------------------------------------------------------------------------
# Wrapper: pack weights, build specs, run the single fused pallas_call
# ---------------------------------------------------------------------------
def vgg_forward(x_nchw, params):
    """VGG.forward: list of per-stage features in NCHW (like PyTorch)."""
    N, cin, H, W = x_nchw.shape
    x = jnp.transpose(x_nchw, (0, 2, 3, 1)).reshape(N, H, W * cin)

    in_specs = [pl.BlockSpec((None, H, W * cin), lambda b: (b, 0, 0))]
    flat_params = []
    out_shapes = []
    out_specs = []
    scratch_shapes = []
    stage_meta = []

    for idx, stage in enumerate(params):
        down = idx > 0
        if down:
            # Lane-dense (H_in, W_in*Cin) f32 scratch for the fused maxpool.
            scratch_shapes.append(pltpu.VMEM((H, W * cin), jnp.float32))
            H, W = H // 2, W // 2
        blocks = []
        in_stride = 2 if down else 1
        for (w3, scale, bias) in stage:
            cout = w3.shape[-1]
            assert (W * cout) % 128 == 0, (
                "lane-dense layout requires W*Cout % 128 == 0; "
                f"got W={W}, Cout={cout}")
            bands = _pack_band_weights(w3, W, in_stride)
            s_row = jnp.tile(scale.astype(jnp.float32), W).reshape(1, W * cout)
            b_row = jnp.tile(bias.astype(jnp.float32), W).reshape(1, W * cout)
            for arr in (*bands, s_row, b_row):
                flat_params.append(arr)
                in_specs.append(pl.BlockSpec(arr.shape, lambda b: (0, 0)))
            blocks.append((cin, cout))
            cin = cout
            in_stride = 1
        stage_meta.append({"H": H, "W": W, "down": down,
                           "blocks": tuple(blocks)})
        out_shapes.append(jax.ShapeDtypeStruct((N, H, W * cin), jnp.float32))
        out_specs.append(pl.BlockSpec((None, H, W * cin),
                                      lambda b: (b, 0, 0)))

    kernel = _make_vgg_kernel(tuple(stage_meta))
    feats_flat = pl.pallas_call(
        kernel,
        out_shape=tuple(out_shapes),
        grid=(N,),
        in_specs=in_specs,
        out_specs=tuple(out_specs),
        scratch_shapes=scratch_shapes,
        compiler_params=pltpu.CompilerParams(
            dimension_semantics=("parallel",)),   # v7x: one TC per batch elem
    )(x, *flat_params)

    feats = []
    for f, st in zip(feats_flat, stage_meta):
        cout = st["blocks"][-1][1]
        f = f.reshape(N, st["H"], st["W"], cout)
        feats.append(jnp.transpose(f, (0, 3, 1, 2)))      # NHWC -> NCHW
    return feats


# ---------------------------------------------------------------------------
# Parameter construction (deterministic, shapes per VGG.__init__)
# ---------------------------------------------------------------------------
def init_vgg_params(key, in_channel=1, depth=3, init_channels=8, num_blocks=2):
    filters = [2 ** i * init_channels for i in range(depth)]
    filters.insert(0, in_channel)
    eps = 1e-5
    params = []
    for idx in range(depth):
        cin, cout = filters[idx], filters[idx + 1]
        blocks = []
        for _ in range(num_blocks):
            key, k1, k2, k3, k4, k5 = jax.random.split(key, 6)
            fan_in = cin * 9
            w = jax.random.normal(k1, (3, 3, cin, cout), jnp.float32)
            w = w * (2.0 / fan_in) ** 0.5                       # kaiming-ish
            gamma = 1.0 + 0.1 * jax.random.normal(k2, (cout,), jnp.float32)
            beta = 0.1 * jax.random.normal(k3, (cout,), jnp.float32)
            rmean = 0.1 * jax.random.normal(k4, (cout,), jnp.float32)
            rvar = jnp.abs(jax.random.normal(k5, (cout,), jnp.float32)) + 0.5
            scale = gamma / jnp.sqrt(rvar + eps)
            bias = beta - rmean * scale
            blocks.append((w, scale, bias))
            cin = cout
        params.append(blocks)
    return params


# ---------------------------------------------------------------------------
# Pure-JAX reference (f32) for correctness checking
# ---------------------------------------------------------------------------
def vgg_forward_ref(x_nchw, params):
    x = jnp.transpose(x_nchw, (0, 2, 3, 1))                     # NHWC
    feats = []
    for idx, stage in enumerate(params):
        if idx > 0:
            x = jax.lax.reduce_window(x, -jnp.inf, jax.lax.max,
                                      (1, 2, 2, 1), (1, 2, 2, 1), "VALID")
        for (w, scale, bias) in stage:
            x = jax.lax.conv_general_dilated(
                x, w, window_strides=(1, 1), padding="SAME",
                dimension_numbers=("NHWC", "HWIO", "NHWC"),
                precision=jax.lax.Precision.HIGHEST)
            x = jnp.maximum(x * scale + bias, 0.0)
        feats.append(jnp.transpose(x, (0, 3, 1, 2)))            # NCHW
    return feats


if __name__ == "__main__":
    key = jax.random.PRNGKey(0)
    kx, kp = jax.random.split(key)

    # Small, module-consistent shapes: batch=2, in_channel=1, 16x16 spatial,
    # depth=3, init_channels=8, num_blocks=2.
    N, CIN, H, W = 2, 1, 16, 16
    DEPTH, INIT_CH, NUM_BLOCKS = 3, 8, 2

    x = jax.random.normal(kx, (N, CIN, H, W), jnp.float32)
    params = init_vgg_params(kp, in_channel=CIN, depth=DEPTH,
                             init_channels=INIT_CH, num_blocks=NUM_BLOCKS)

    feats = vgg_forward(x, params)
    feats = [jax.block_until_ready(f) for f in feats]

    expected = [(N, INIT_CH * 2 ** i, H // 2 ** i, W // 2 ** i)
                for i in range(DEPTH)]
    assert [tuple(f.shape) for f in feats] == expected, \
        (expected, [f.shape for f in feats])
    assert all(bool(jnp.all(jnp.isfinite(f))) for f in feats)

    # Numerical check vs f32 reference (bf16 MXU operands -> loose tolerance).
    refs = vgg_forward_ref(x, params)
    for i, (f, r) in enumerate(zip(feats, refs)):
        err = float(jnp.max(jnp.abs(f - r)))
        scale = float(jnp.max(jnp.abs(r)))
        assert err <= 0.05 * scale + 1e-2, (i, err, scale)

    print("KERNEL_OK")
</pallas_src>

<mosaic_0001>
module attributes {stable_mosaic.version = 11 : i64} {
  func.func @kernel(%arg0: i32, %arg1: memref<1x16x16xf32, #tpu.memory_space<vmem>>, %arg2: memref<16x128xbf16, #tpu.memory_space<vmem>>, %arg3: memref<16x128xbf16, #tpu.memory_space<vmem>>, %arg4: memref<16x128xbf16, #tpu.memory_space<vmem>>, %arg5: memref<1x128xf32, #tpu.memory_space<vmem>>, %arg6: memref<1x128xf32, #tpu.memory_space<vmem>>, %arg7: memref<128x128xbf16, #tpu.memory_space<vmem>>, %arg8: memref<128x128xbf16, #tpu.memory_space<vmem>>, %arg9: memref<128x128xbf16, #tpu.memory_space<vmem>>, %arg10: memref<1x128xf32, #tpu.memory_space<vmem>>, %arg11: memref<1x128xf32, #tpu.memory_space<vmem>>, %arg12: memref<128x128xbf16, #tpu.memory_space<vmem>>, %arg13: memref<128x128xbf16, #tpu.memory_space<vmem>>, %arg14: memref<128x128xbf16, #tpu.memory_space<vmem>>, %arg15: memref<1x128xf32, #tpu.memory_space<vmem>>, %arg16: memref<1x128xf32, #tpu.memory_space<vmem>>, %arg17: memref<128x128xbf16, #tpu.memory_space<vmem>>, %arg18: memref<128x128xbf16, #tpu.memory_space<vmem>>, %arg19: memref<128x128xbf16, #tpu.memory_space<vmem>>, %arg20: memref<1x128xf32, #tpu.memory_space<vmem>>, %arg21: memref<1x128xf32, #tpu.memory_space<vmem>>, %arg22: memref<128x128xbf16, #tpu.memory_space<vmem>>, %arg23: memref<128x128xbf16, #tpu.memory_space<vmem>>, %arg24: memref<128x128xbf16, #tpu.memory_space<vmem>>, %arg25: memref<1x128xf32, #tpu.memory_space<vmem>>, %arg26: memref<1x128xf32, #tpu.memory_space<vmem>>, %arg27: memref<128x128xbf16, #tpu.memory_space<vmem>>, %arg28: memref<128x128xbf16, #tpu.memory_space<vmem>>, %arg29: memref<128x128xbf16, #tpu.memory_space<vmem>>, %arg30: memref<1x128xf32, #tpu.memory_space<vmem>>, %arg31: memref<1x128xf32, #tpu.memory_space<vmem>>, %arg32: memref<1x16x128xf32, #tpu.memory_space<vmem>>, %arg33: memref<1x8x128xf32, #tpu.memory_space<vmem>>, %arg34: memref<1x4x128xf32, #tpu.memory_space<vmem>>, %arg35: memref<16x128xf32, #tpu.memory_space<vmem>>, %arg36: memref<8x128xf32, #tpu.memory_space<vmem>>) attributes {dimension_semantics = [#tpu.dimension_semantics<parallel>], iteration_bounds = array<i64: 2>, scalar_prefetch = 0 : i64, scratch_operands = 2 : i64, tpu.core_type = #tpu.core_type<tc>, window_params = [{transform_indices = @transform_0, window_bounds = array<i64: 1, 16, 16>}, {pipeline_mode = #tpu.pipeline_mode<synchronous>, transform_indices = @transform_1, window_bounds = array<i64: 16, 128>}, {pipeline_mode = #tpu.pipeline_mode<synchronous>, transform_indices = @transform_2, window_bounds = array<i64: 16, 128>}, {pipeline_mode = #tpu.pipeline_mode<synchronous>, transform_indices = @transform_3, window_bounds = array<i64: 16, 128>}, {pipeline_mode = #tpu.pipeline_mode<synchronous>, transform_indices = @transform_4, window_bounds = array<i64: 1, 128>}, {pipeline_mode = #tpu.pipeline_mode<synchronous>, transform_indices = @transform_5, window_bounds = array<i64: 1, 128>}, {pipeline_mode = #tpu.pipeline_mode<synchronous>, transform_indices = @transform_6, window_bounds = array<i64: 128, 128>}, {pipeline_mode = #tpu.pipeline_mode<synchronous>, transform_indices = @transform_7, window_bounds = array<i64: 128, 128>}, {pipeline_mode = #tpu.pipeline_mode<synchronous>, transform_indices = @transform_8, window_bounds = array<i64: 128, 128>}, {pipeline_mode = #tpu.pipeline_mode<synchronous>, transform_indices = @transform_9, window_bounds = array<i64: 1, 128>}, {pipeline_mode = #tpu.pipeline_mode<synchronous>, transform_indices = @transform_10, window_bounds = array<i64: 1, 128>}, {pipeline_mode = #tpu.pipeline_mode<synchronous>, transform_indices = @transform_11, window_bounds = array<i64: 128, 128>}, {pipeline_mode = #tpu.pipeline_mode<synchronous>, transform_indices = @transform_12, window_bounds = array<i64: 128, 128>}, {pipeline_mode = #tpu.pipeline_mode<synchronous>, transform_indices = @transform_13, window_bounds = array<i64: 128, 128>}, {pipeline_mode = #tpu.pipeline_mode<synchronous>, transform_indices = @transform_14, window_bounds = array<i64: 1, 128>}, {pipeline_mode = #tpu.pipeline_mode<synchronous>, transform_indices = @transform_15, window_bounds = array<i64: 1, 128>}, {pipeline_mode = #tpu.pipeline_mode<synchronous>, transform_indices = @transform_16, window_bounds = array<i64: 128, 128>}, {pipeline_mode = #tpu.pipeline_mode<synchronous>, transform_indices = @transform_17, window_bounds = array<i64: 128, 128>}, {pipeline_mode = #tpu.pipeline_mode<synchronous>, transform_indices = @transform_18, window_bounds = array<i64: 128, 128>}, {pipeline_mode = #tpu.pipeline_mode<synchronous>, transform_indices = @transform_19, window_bounds = array<i64: 1, 128>}, {pipeline_mode = #tpu.pipeline_mode<synchronous>, transform_indices = @transform_20, window_bounds = array<i64: 1, 128>}, {pipeline_mode = #tpu.pipeline_mode<synchronous>, transform_indices = @transform_21, window_bounds = array<i64: 128, 128>}, {pipeline_mode = #tpu.pipeline_mode<synchronous>, transform_indices = @transform_22, window_bounds = array<i64: 128, 128>}, {pipeline_mode = #tpu.pipeline_mode<synchronous>, transform_indices = @transform_23, window_bounds = array<i64: 128, 128>}, {pipeline_mode = #tpu.pipeline_mode<synchronous>, transform_indices = @transform_24, window_bounds = array<i64: 1, 128>}, {pipeline_mode = #tpu.pipeline_mode<synchronous>, transform_indices = @transform_25, window_bounds = array<i64: 1, 128>}, {pipeline_mode = #tpu.pipeline_mode<synchronous>, transform_indices = @transform_26, window_bounds = array<i64: 128, 128>}, {pipeline_mode = #tpu.pipeline_mode<synchronous>, transform_indices = @transform_27, window_bounds = array<i64: 128, 128>}, {pipeline_mode = #tpu.pipeline_mode<synchronous>, transform_indices = @transform_28, window_bounds = array<i64: 128, 128>}, {pipeline_mode = #tpu.pipeline_mode<synchronous>, transform_indices = @transform_29, window_bounds = array<i64: 1, 128>}, {pipeline_mode = #tpu.pipeline_mode<synchronous>, transform_indices = @transform_30, window_bounds = array<i64: 1, 128>}, {transform_indices = @transform_31, window_bounds = array<i64: 1, 16, 128>}, {transform_indices = @transform_32, window_bounds = array<i64: 1, 8, 128>}, {transform_indices = @transform_33, window_bounds = array<i64: 1, 4, 128>}]} {
    %c0 = arith.constant 0 : index
    %c0_0 = arith.constant 0 : index
    %c0_1 = arith.constant 0 : index
    %0 = vector.load %arg1[%c0, %c0_0, %c0_1] : memref<1x16x16xf32, #tpu.memory_space<vmem>>, vector<1x16x16xf32>
    %1 = vector.shape_cast %0 : vector<1x16x16xf32> to vector<16x16xf32>
    %2 = arith.truncf %1 : vector<16x16xf32> to vector<16x16xbf16>
    %c0_2 = arith.constant 0 : index
    %c0_3 = arith.constant 0 : index
    %3 = vector.load %arg2[%c0_2, %c0_3] : memref<16x128xbf16, #tpu.memory_space<vmem>>, vector<16x128xbf16>
    %c0_4 = arith.constant 0 : index
    %c0_5 = arith.constant 0 : index
    %4 = vector.load %arg3[%c0_4, %c0_5] : memref<16x128xbf16, #tpu.memory_space<vmem>>, vector<16x128xbf16>
    %c0_6 = arith.constant 0 : index
    %c0_7 = arith.constant 0 : index
    %5 = vector.load %arg4[%c0_6, %c0_7] : memref<16x128xbf16, #tpu.memory_space<vmem>>, vector<16x128xbf16>
    %c0_8 = arith.constant 0 : index
    %c0_9 = arith.constant 0 : index
    %6 = vector.load %arg5[%c0_8, %c0_9] : memref<1x128xf32, #tpu.memory_space<vmem>>, vector<1x128xf32>
    %c0_10 = arith.constant 0 : index
    %c0_11 = arith.constant 0 : index
    %7 = vector.load %arg6[%c0_10, %c0_11] : memref<1x128xf32, #tpu.memory_space<vmem>>, vector<1x128xf32>
    %cst = arith.constant 0.000000e+00 : bf16
    %8 = vector.broadcast %cst : bf16 to vector<1x16xbf16>
    %9 = vector.extract_strided_slice %2 {offsets = [0, 0], sizes = [15, 16], strides = [1, 1]} : vector<16x16xbf16> to vector<15x16xbf16>
    %10 = tpu.concatenate %8, %9 in 0 : vector<1x16xbf16>, vector<15x16xbf16> -> vector<16x16xbf16>
    %11 = vector.extract_strided_slice %2 {offsets = [1, 0], sizes = [15, 16], strides = [1, 1]} : vector<16x16xbf16> to vector<15x16xbf16>
    %12 = tpu.concatenate %11, %8 in 0 : vector<15x16xbf16>, vector<1x16xbf16> -> vector<16x16xbf16>
    %cst_12 = arith.constant dense<0.000000e+00> : vector<16x128xf32>
    %13 = tpu.matmul %10, %3, %cst_12 {dimension_numbers = #tpu.dot_dimension_numbers<[1], [0], [0], [1], [0, 0, 1, 1], [], []>} : vector<16x16xbf16>, vector<16x128xbf16>, vector<16x128xf32> -> vector<16x128xf32>
    %cst_13 = arith.constant dense<0.000000e+00> : vector<16x128xf32>
    %14 = tpu.matmul %2, %4, %cst_13 {dimension_numbers = #tpu.dot_dimension_numbers<[1], [0], [0], [1], [0, 0, 1, 1], [], []>} : vector<16x16xbf16>, vector<16x128xbf16>, vector<16x128xf32> -> vector<16x128xf32>
    %15 = arith.addf %13, %14 : vector<16x128xf32>
    %cst_14 = arith.constant dense<0.000000e+00> : vector<16x128xf32>
    %16 = tpu.matmul %12, %5, %cst_14 {dimension_numbers = #tpu.dot_dimension_numbers<[1], [0], [0], [1], [0, 0, 1, 1], [], []>} : vector<16x16xbf16>, vector<16x128xbf16>, vector<16x128xf32> -> vector<16x128xf32>
    %17 = arith.addf %15, %16 : vector<16x128xf32>
    %18 = vector.broadcast %6 : vector<1x128xf32> to vector<16x128xf32>
    %19 = arith.mulf %17, %18 : vector<16x128xf32>
    %20 = vector.broadcast %7 : vector<1x128xf32> to vector<16x128xf32>
    %21 = arith.addf %19, %20 : vector<16x128xf32>
    %cst_15 = arith.constant 0.000000e+00 : f32
    %22 = vector.broadcast %cst_15 : f32 to vector<16x128xf32>
    %23 = arith.maximumf %21, %22 : vector<16x128xf32>
    %24 = arith.truncf %23 : vector<16x128xf32> to vector<16x128xbf16>
    %c0_16 = arith.constant 0 : index
    %c0_17 = arith.constant 0 : index
    %25 = vector.load %arg7[%c0_16, %c0_17] : memref<128x128xbf16, #tpu.memory_space<vmem>>, vector<128x128xbf16>
    %c0_18 = arith.constant 0 : index
    %c0_19 = arith.constant 0 : index
    %26 = vector.load %arg8[%c0_18, %c0_19] : memref<128x128xbf16, #tpu.memory_space<vmem>>, vector<128x128xbf16>
    %c0_20 = arith.constant 0 : index
    %c0_21 = arith.constant 0 : index
    %27 = vector.load %arg9[%c0_20, %c0_21] : memref<128x128xbf16, #tpu.memory_space<vmem>>, vector<128x128xbf16>
    %c0_22 = arith.constant 0 : index
    %c0_23 = arith.constant 0 : index
    %28 = vector.load %arg10[%c0_22, %c0_23] : memref<1x128xf32, #tpu.memory_space<vmem>>, vector<1x128xf32>
    %c0_24 = arith.constant 0 : index
    %c0_25 = arith.constant 0 : index
    %29 = vector.load %arg11[%c0_24, %c0_25] : memref<1x128xf32, #tpu.memory_space<vmem>>, vector<1x128xf32>
    %cst_26 = arith.constant 0.000000e+00 : bf16
    %30 = vector.broadcast %cst_26 : bf16 to vector<1x128xbf16>
    %31 = vector.extract_strided_slice %24 {offsets = [0, 0], sizes = [15, 128], strides = [1, 1]} : vector<16x128xbf16> to vector<15x128xbf16>
    %32 = tpu.concatenate %30, %31 in 0 : vector<1x128xbf16>, vector<15x128xbf16> -> vector<16x128xbf16>
    %33 = vector.extract_strided_slice %24 {offsets = [1, 0], sizes = [15, 128], strides = [1, 1]} : vector<16x128xbf16> to vector<15x128xbf16>
    %34 = tpu.concatenate %33, %30 in 0 : vector<15x128xbf16>, vector<1x128xbf16> -> vector<16x128xbf16>
    %cst_27 = arith.constant dense<0.000000e+00> : vector<16x128xf32>
    %35 = tpu.matmul %32, %25, %cst_27 {dimension_numbers = #tpu.dot_dimension_numbers<[1], [0], [0], [1], [0, 0, 1, 1], [], []>} : vector<16x128xbf16>, vector<128x128xbf16>, vector<16x128xf32> -> vector<16x128xf32>
    %cst_28 = arith.constant dense<0.000000e+00> : vector<16x128xf32>
    %36 = tpu.matmul %24, %26, %cst_28 {dimension_numbers = #tpu.dot_dimension_numbers<[1], [0], [0], [1], [0, 0, 1, 1], [], []>} : vector<16x128xbf16>, vector<128x128xbf16>, vector<16x128xf32> -> vector<16x128xf32>
    %37 = arith.addf %35, %36 : vector<16x128xf32>
    %cst_29 = arith.constant dense<0.000000e+00> : vector<16x128xf32>
    %38 = tpu.matmul %34, %27, %cst_29 {dimension_numbers = #tpu.dot_dimension_numbers<[1], [0], [0], [1], [0, 0, 1, 1], [], []>} : vector<16x128xbf16>, vector<128x128xbf16>, vector<16x128xf32> -> vector<16x128xf32>
    %39 = arith.addf %37, %38 : vector<16x128xf32>
    %40 = vector.broadcast %28 : vector<1x128xf32> to vector<16x128xf32>
    %41 = arith.mulf %39, %40 : vector<16x128xf32>
    %42 = vector.broadcast %29 : vector<1x128xf32> to vector<16x128xf32>
    %43 = arith.addf %41, %42 : vector<16x128xf32>
    %cst_30 = arith.constant 0.000000e+00 : f32
    %44 = vector.broadcast %cst_30 : f32 to vector<16x128xf32>
    %45 = arith.maximumf %43, %44 : vector<16x128xf32>
    %c0_31 = arith.constant 0 : index
    %c0_32 = arith.constant 0 : index
    %c0_33 = arith.constant 0 : index
    %46 = vector.load %arg32[%c0_31, %c0_32, %c0_33] : memref<1x16x128xf32, #tpu.memory_space<vmem>>, vector<1x16x128xf32>
    %47 = vector.shape_cast %46 : vector<1x16x128xf32> to vector<16x128xf32>
    %48 = vector.shape_cast %45 : vector<16x128xf32> to vector<1x16x128xf32>
    tpu.vector_store %arg32[%c0_31, %c0_32, %c0_33], %48 {strides = array<i32>} : memref<1x16x128xf32, #tpu.memory_space<vmem>>, vector<1x16x128xf32>,
    %c0_34 = arith.constant 0 : index
    %c0_35 = arith.constant 0 : index
    %49 = vector.load %arg35[%c0_34, %c0_35] : memref<16x128xf32, #tpu.memory_space<vmem>>, vector<16x128xf32>
    tpu.vector_store %arg35[%c0_34, %c0_35], %45 {strides = array<i32>} : memref<16x128xf32, #tpu.memory_space<vmem>>, vector<16x128xf32>,
    %c0_36 = arith.constant 0 : index
    %c0_37 = arith.constant 0 : index
    %50 = tpu.strided_load %arg35[%c0_36, %c0_37] {strides = array<i32: 2, 1>} : memref<16x128xf32, #tpu.memory_space<vmem>>, vector<8x128xf32>
    %c1 = arith.constant 1 : index
    %c0_38 = arith.constant 0 : index
    %51 = tpu.strided_load %arg35[%c1, %c0_38] {strides = array<i32: 2, 1>} : memref<16x128xf32, #tpu.memory_space<vmem>>, vector<8x128xf32>
    %52 = arith.maximumf %50, %51 : vector<8x128xf32>
    %53 = vector.extract_strided_slice %52 {offsets = [0, 8], sizes = [8, 120], strides = [1, 1]} : vector<8x128xf32> to vector<8x120xf32>
    %54 = vector.extract_strided_slice %52 {offsets = [0, 0], sizes = [8, 8], strides = [1, 1]} : vector<8x128xf32> to vector<8x8xf32>
    %55 = tpu.concatenate %53, %54 in 1 : vector<8x120xf32>, vector<8x8xf32> -> vector<8x128xf32>
    %56 = arith.maximumf %52, %55 : vector<8x128xf32>
    %57 = arith.truncf %56 : vector<8x128xf32> to vector<8x128xbf16>
    %c0_39 = arith.constant 0 : index
    %c0_40 = arith.constant 0 : index
    %58 = vector.load %arg12[%c0_39, %c0_40] : memref<128x128xbf16, #tpu.memory_space<vmem>>, vector<128x128xbf16>
    %c0_41 = arith.constant 0 : index
    %c0_42 = arith.constant 0 : index
    %59 = vector.load %arg13[%c0_41, %c0_42] : memref<128x128xbf16, #tpu.memory_space<vmem>>, vector<128x128xbf16>
    %c0_43 = arith.constant 0 : index
    %c0_44 = arith.constant 0 : index
    %60 = vector.load %arg14[%c0_43, %c0_44] : memref<128x128xbf16, #tpu.memory_space<vmem>>, vector<128x128xbf16>
    %c0_45 = arith.constant 0 : index
    %c0_46 = arith.constant 0 : index
    %61 = vector.load %arg15[%c0_45, %c0_46] : memref<1x128xf32, #tpu.memory_space<vmem>>, vector<1x128xf32>
    %c0_47 = arith.constant 0 : index
    %c0_48 = arith.constant 0 : index
    %62 = vector.load %arg16[%c0_47, %c0_48] : memref<1x128xf32, #tpu.memory_space<vmem>>, vector<1x128xf32>
    %cst_49 = arith.constant 0.000000e+00 : bf16
    %63 = vector.broadcast %cst_49 : bf16 to vector<1x128xbf16>
    %64 = vector.extract_strided_slice %57 {offsets = [0, 0], sizes = [7, 128], strides = [1, 1]} : vector<8x128xbf16> to vector<7x128xbf16>
    %65 = tpu.concatenate %63, %64 in 0 : vector<1x128xbf16>, vector<7x128xbf16> -> vector<8x128xbf16>
    %66 = vector.extract_strided_slice %57 {offsets = [1, 0], sizes = [7, 128], strides = [1, 1]} : vector<8x128xbf16> to vector<7x128xbf16>
    %67 = tpu.concatenate %66, %63 in 0 : vector<7x128xbf16>, vector<1x128xbf16> -> vector<8x128xbf16>
    %cst_50 = arith.constant dense<0.000000e+00> : vector<8x128xf32>
    %68 = tpu.matmul %65, %58, %cst_50 {dimension_numbers = #tpu.dot_dimension_numbers<[1], [0], [0], [1], [0, 0, 1, 1], [], []>} : vector<8x128xbf16>, vector<128x128xbf16>, vector<8x128xf32> -> vector<8x128xf32>
    %cst_51 = arith.constant dense<0.000000e+00> : vector<8x128xf32>
    %69 = tpu.matmul %57, %59, %cst_51 {dimension_numbers = #tpu.dot_dimension_numbers<[1], [0], [0], [1], [0, 0, 1, 1], [], []>} : vector<8x128xbf16>, vector<128x128xbf16>, vector<8x128xf32> -> vector<8x128xf32>
    %70 = arith.addf %68, %69 : vector<8x128xf32>
    %cst_52 = arith.constant dense<0.000000e+00> : vector<8x128xf32>
    %71 = tpu.matmul %67, %60, %cst_52 {dimension_numbers = #tpu.dot_dimension_numbers<[1], [0], [0], [1], [0, 0, 1, 1], [], []>} : vector<8x128xbf16>, vector<128x128xbf16>, vector<8x128xf32> -> vector<8x128xf32>
    %72 = arith.addf %70, %71 : vector<8x128xf32>
    %73 = vector.broadcast %61 : vector<1x128xf32> to vector<8x128xf32>
    %74 = arith.mulf %72, %73 : vector<8x128xf32>
    %75 = vector.broadcast %62 : vector<1x128xf32> to vector<8x128xf32>
    %76 = arith.addf %74, %75 : vector<8x128xf32>
    %cst_53 = arith.constant 0.000000e+00 : f32
    %77 = vector.broadcast %cst_53 : f32 to vector<8x128xf32>
    %78 = arith.maximumf %76, %77 : vector<8x128xf32>
    %79 = arith.truncf %78 : vector<8x128xf32> to vector<8x128xbf16>
    %c0_54 = arith.constant 0 : index
    %c0_55 = arith.constant 0 : index
    %80 = vector.load %arg17[%c0_54, %c0_55] : memref<128x128xbf16, #tpu.memory_space<vmem>>, vector<128x128xbf16>
    %c0_56 = arith.constant 0 : index
    %c0_57 = arith.constant 0 : index
    %81 = vector.load %arg18[%c0_56, %c0_57] : memref<128x128xbf16, #tpu.memory_space<vmem>>, vector<128x128xbf16>
    %c0_58 = arith.constant 0 : index
    %c0_59 = arith.constant 0 : index
    %82 = vector.load %arg19[%c0_58, %c0_59] : memref<128x128xbf16, #tpu.memory_space<vmem>>, vector<128x128xbf16>
    %c0_60 = arith.constant 0 : index
    %c0_61 = arith.constant 0 : index
    %83 = vector.load %arg20[%c0_60, %c0_61] : memref<1x128xf32, #tpu.memory_space<vmem>>, vector<1x128xf32>
    %c0_62 = arith.constant 0 : index
    %c0_63 = arith.constant 0 : index
    %84 = vector.load %arg21[%c0_62, %c0_63] : memref<1x128xf32, #tpu.memory_space<vmem>>, vector<1x128xf32>
    %cst_64 = arith.constant 0.000000e+00 : bf16
    %85 = vector.broadcast %cst_64 : bf16 to vector<1x128xbf16>
    %86 = vector.extract_strided_slice %79 {offsets = [0, 0], sizes = [7, 128], strides = [1, 1]} : vector<8x128xbf16> to vector<7x128xbf16>
    %87 = tpu.concatenate %85, %86 in 0 : vector<1x128xbf16>, vector<7x128xbf16> -> vector<8x128xbf16>
    %88 = vector.extract_strided_slice %79 {offsets = [1, 0], sizes = [7, 128], strides = [1, 1]} : vector<8x128xbf16> to vector<7x128xbf16>
    %89 = tpu.concatenate %88, %85 in 0 : vector<7x128xbf16>, vector<1x128xbf16> -> vector<8x128xbf16>
    %cst_65 = arith.constant dense<0.000000e+00> : vector<8x128xf32>
    %90 = tpu.matmul %87, %80, %cst_65 {dimension_numbers = #tpu.dot_dimension_numbers<[1], [0], [0], [1], [0, 0, 1, 1], [], []>} : vector<8x128xbf16>, vector<128x128xbf16>, vector<8x128xf32> -> vector<8x128xf32>
    %cst_66 = arith.constant dense<0.000000e+00> : vector<8x128xf32>
    %91 = tpu.matmul %79, %81, %cst_66 {dimension_numbers = #tpu.dot_dimension_numbers<[1], [0], [0], [1], [0, 0, 1, 1], [], []>} : vector<8x128xbf16>, vector<128x128xbf16>, vector<8x128xf32> -> vector<8x128xf32>
    %92 = arith.addf %90, %91 : vector<8x128xf32>
    %cst_67 = arith.constant dense<0.000000e+00> : vector<8x128xf32>
    %93 = tpu.matmul %89, %82, %cst_67 {dimension_numbers = #tpu.dot_dimension_numbers<[1], [0], [0], [1], [0, 0, 1, 1], [], []>} : vector<8x128xbf16>, vector<128x128xbf16>, vector<8x128xf32> -> vector<8x128xf32>
    %94 = arith.addf %92, %93 : vector<8x128xf32>
    %95 = vector.broadcast %83 : vector<1x128xf32> to vector<8x128xf32>
    %96 = arith.mulf %94, %95 : vector<8x128xf32>
    %97 = vector.broadcast %84 : vector<1x128xf32> to vector<8x128xf32>
    %98 = arith.addf %96, %97 : vector<8x128xf32>
    %cst_68 = arith.constant 0.000000e+00 : f32
    %99 = vector.broadcast %cst_68 : f32 to vector<8x128xf32>
    %100 = arith.maximumf %98, %99 : vector<8x128xf32>
    %c0_69 = arith.constant 0 : index
    %c0_70 = arith.constant 0 : index
    %c0_71 = arith.constant 0 : index
    %101 = vector.load %arg33[%c0_69, %c0_70, %c0_71] : memref<1x8x128xf32, #tpu.memory_space<vmem>>, vector<1x8x128xf32>
    %102 = vector.shape_cast %101 : vector<1x8x128xf32> to vector<8x128xf32>
    %103 = vector.shape_cast %100 : vector<8x128xf32> to vector<1x8x128xf32>
    tpu.vector_store %arg33[%c0_69, %c0_70, %c0_71], %103 {strides = array<i32>} : memref<1x8x128xf32, #tpu.memory_space<vmem>>, vector<1x8x128xf32>,
    %c0_72 = arith.constant 0 : index
    %c0_73 = arith.constant 0 : index
    %104 = vector.load %arg36[%c0_72, %c0_73] : memref<8x128xf32, #tpu.memory_space<vmem>>, vector<8x128xf32>
    tpu.vector_store %arg36[%c0_72, %c0_73], %100 {strides = array<i32>} : memref<8x128xf32, #tpu.memory_space<vmem>>, vector<8x128xf32>,
    %c0_74 = arith.constant 0 : index
    %c0_75 = arith.constant 0 : index
    %105 = tpu.strided_load %arg36[%c0_74, %c0_75] {strides = array<i32: 2, 1>} : memref<8x128xf32, #tpu.memory_space<vmem>>, vector<4x128xf32>
    %c1_76 = arith.constant 1 : index
    %c0_77 = arith.constant 0 : index
    %106 = tpu.strided_load %arg36[%c1_76, %c0_77] {strides = array<i32: 2, 1>} : memref<8x128xf32, #tpu.memory_space<vmem>>, vector<4x128xf32>
    %107 = arith.maximumf %105, %106 : vector<4x128xf32>
    %108 = vector.extract_strided_slice %107 {offsets = [0, 16], sizes = [4, 112], strides = [1, 1]} : vector<4x128xf32> to vector<4x112xf32>
    %109 = vector.extract_strided_slice %107 {offsets = [0, 0], sizes = [4, 16], strides = [1, 1]} : vector<4x128xf32> to vector<4x16xf32>
    %110 = tpu.concatenate %108, %109 in 1 : vector<4x112xf32>, vector<4x16xf32> -> vector<4x128xf32>
    %111 = arith.maximumf %107, %110 : vector<4x128xf32>
    %112 = arith.truncf %111 : vector<4x128xf32> to vector<4x128xbf16>
    %c0_78 = arith.constant 0 : index
    %c0_79 = arith.constant 0 : index
    %113 = vector.load %arg22[%c0_78, %c0_79] : memref<128x128xbf16, #tpu.memory_space<vmem>>, vector<128x128xbf16>
    %c0_80 = arith.constant 0 : index
    %c0_81 = arith.constant 0 : index
    %114 = vector.load %arg23[%c0_80, %c0_81] : memref<128x128xbf16, #tpu.memory_space<vmem>>, vector<128x128xbf16>
    %c0_82 = arith.constant 0 : index
    %c0_83 = arith.constant 0 : index
    %115 = vector.load %arg24[%c0_82, %c0_83] : memref<128x128xbf16, #tpu.memory_space<vmem>>, vector<128x128xbf16>
    %c0_84 = arith.constant 0 : index
    %c0_85 = arith.constant 0 : index
    %116 = vector.load %arg25[%c0_84, %c0_85] : memref<1x128xf32, #tpu.memory_space<vmem>>, vector<1x128xf32>
    %c0_86 = arith.constant 0 : index
    %c0_87 = arith.constant 0 : index
    %117 = vector.load %arg26[%c0_86, %c0_87] : memref<1x128xf32, #tpu.memory_space<vmem>>, vector<1x128xf32>
    %cst_88 = arith.constant 0.000000e+00 : bf16
    %118 = vector.broadcast %cst_88 : bf16 to vector<1x128xbf16>
    %119 = vector.extract_strided_slice %112 {offsets = [0, 0], sizes = [3, 128], strides = [1, 1]} : vector<4x128xbf16> to vector<3x128xbf16>
    %120 = tpu.concatenate %118, %119 in 0 : vector<1x128xbf16>, vector<3x128xbf16> -> vector<4x128xbf16>
    %121 = vector.extract_strided_slice %112 {offsets = [1, 0], sizes = [3, 128], strides = [1, 1]} : vector<4x128xbf16> to vector<3x128xbf16>
    %122 = tpu.concatenate %121, %118 in 0 : vector<3x128xbf16>, vector<1x128xbf16> -> vector<4x128xbf16>
    %cst_89 = arith.constant dense<0.000000e+00> : vector<4x128xf32>
    %123 = tpu.matmul %120, %113, %cst_89 {dimension_numbers = #tpu.dot_dimension_numbers<[1], [0], [0], [1], [0, 0, 1, 1], [], []>} : vector<4x128xbf16>, vector<128x128xbf16>, vector<4x128xf32> -> vector<4x128xf32>
    %cst_90 = arith.constant dense<0.000000e+00> : vector<4x128xf32>
    %124 = tpu.matmul %112, %114, %cst_90 {dimension_numbers = #tpu.dot_dimension_numbers<[1], [0], [0], [1], [0, 0, 1, 1], [], []>} : vector<4x128xbf16>, vector<128x128xbf16>, vector<4x128xf32> -> vector<4x128xf32>
    %125 = arith.addf %123, %124 : vector<4x128xf32>
    %cst_91 = arith.constant dense<0.000000e+00> : vector<4x128xf32>
    %126 = tpu.matmul %122, %115, %cst_91 {dimension_numbers = #tpu.dot_dimension_numbers<[1], [0], [0], [1], [0, 0, 1, 1], [], []>} : vector<4x128xbf16>, vector<128x128xbf16>, vector<4x128xf32> -> vector<4x128xf32>
    %127 = arith.addf %125, %126 : vector<4x128xf32>
    %128 = vector.broadcast %116 : vector<1x128xf32> to vector<4x128xf32>
    %129 = arith.mulf %127, %128 : vector<4x128xf32>
    %130 = vector.broadcast %117 : vector<1x128xf32> to vector<4x128xf32>
    %131 = arith.addf %129, %130 : vector<4x128xf32>
    %cst_92 = arith.constant 0.000000e+00 : f32
    %132 = vector.broadcast %cst_92 : f32 to vector<4x128xf32>
    %133 = arith.maximumf %131, %132 : vector<4x128xf32>
    %134 = arith.truncf %133 : vector<4x128xf32> to vector<4x128xbf16>
    %c0_93 = arith.constant 0 : index
    %c0_94 = arith.constant 0 : index
    %135 = vector.load %arg27[%c0_93, %c0_94] : memref<128x128xbf16, #tpu.memory_space<vmem>>, vector<128x128xbf16>
    %c0_95 = arith.constant 0 : index
    %c0_96 = arith.constant 0 : index
    %136 = vector.load %arg28[%c0_95, %c0_96] : memref<128x128xbf16, #tpu.memory_space<vmem>>, vector<128x128xbf16>
    %c0_97 = arith.constant 0 : index
    %c0_98 = arith.constant 0 : index
    %137 = vector.load %arg29[%c0_97, %c0_98] : memref<128x128xbf16, #tpu.memory_space<vmem>>, vector<128x128xbf16>
    %c0_99 = arith.constant 0 : index
    %c0_100 = arith.constant 0 : index
    %138 = vector.load %arg30[%c0_99, %c0_100] : memref<1x128xf32, #tpu.memory_space<vmem>>, vector<1x128xf32>
    %c0_101 = arith.constant 0 : index
    %c0_102 = arith.constant 0 : index
    %139 = vector.load %arg31[%c0_101, %c0_102] : memref<1x128xf32, #tpu.memory_space<vmem>>, vector<1x128xf32>
    %cst_103 = arith.constant 0.000000e+00 : bf16
    %140 = vector.broadcast %cst_103 : bf16 to vector<1x128xbf16>
    %141 = vector.extract_strided_slice %134 {offsets = [0, 0], sizes = [3, 128], strides = [1, 1]} : vector<4x128xbf16> to vector<3x128xbf16>
    %142 = tpu.concatenate %140, %141 in 0 : vector<1x128xbf16>, vector<3x128xbf16> -> vector<4x128xbf16>
    %143 = vector.extract_strided_slice %134 {offsets = [1, 0], sizes = [3, 128], strides = [1, 1]} : vector<4x128xbf16> to vector<3x128xbf16>
    %144 = tpu.concatenate %143, %140 in 0 : vector<3x128xbf16>, vector<1x128xbf16> -> vector<4x128xbf16>
    %cst_104 = arith.constant dense<0.000000e+00> : vector<4x128xf32>
    %145 = tpu.matmul %142, %135, %cst_104 {dimension_numbers = #tpu.dot_dimension_numbers<[1], [0], [0], [1], [0, 0, 1, 1], [], []>} : vector<4x128xbf16>, vector<128x128xbf16>, vector<4x128xf32> -> vector<4x128xf32>
    %cst_105 = arith.constant dense<0.000000e+00> : vector<4x128xf32>
    %146 = tpu.matmul %134, %136, %cst_105 {dimension_numbers = #tpu.dot_dimension_numbers<[1], [0], [0], [1], [0, 0, 1, 1], [], []>} : vector<4x128xbf16>, vector<128x128xbf16>, vector<4x128xf32> -> vector<4x128xf32>
    %147 = arith.addf %145, %146 : vector<4x128xf32>
    %cst_106 = arith.constant dense<0.000000e+00> : vector<4x128xf32>
    %148 = tpu.matmul %144, %137, %cst_106 {dimension_numbers = #tpu.dot_dimension_numbers<[1], [0], [0], [1], [0, 0, 1, 1], [], []>} : vector<4x128xbf16>, vector<128x128xbf16>, vector<4x128xf32> -> vector<4x128xf32>
    %149 = arith.addf %147, %148 : vector<4x128xf32>
    %150 = vector.broadcast %138 : vector<1x128xf32> to vector<4x128xf32>
    %151 = arith.mulf %149, %150 : vector<4x128xf32>
    %152 = vector.broadcast %139 : vector<1x128xf32> to vector<4x128xf32>
    %153 = arith.addf %151, %152 : vector<4x128xf32>
    %cst_107 = arith.constant 0.000000e+00 : f32
    %154 = vector.broadcast %cst_107 : f32 to vector<4x128xf32>
    %155 = arith.maximumf %153, %154 : vector<4x128xf32>
    %c0_108 = arith.constant 0 : index
    %c0_109 = arith.constant 0 : index
    %c0_110 = arith.constant 0 : index
    %156 = vector.load %arg34[%c0_108, %c0_109, %c0_110] : memref<1x4x128xf32, #tpu.memory_space<vmem>>, vector<1x4x128xf32>
    %157 = vector.shape_cast %156 : vector<1x4x128xf32> to vector<4x128xf32>
    %158 = vector.shape_cast %155 : vector<4x128xf32> to vector<1x4x128xf32>
    tpu.vector_store %arg34[%c0_108, %c0_109, %c0_110], %158 {strides = array<i32>} : memref<1x4x128xf32, #tpu.memory_space<vmem>>, vector<1x4x128xf32>,
    return
  }
  func.func @transform_0(%arg0: i32) -> (i32, i32, i32) {
    %c0_i32 = arith.constant 0 : i32
    %c0_i32_0 = arith.constant 0 : i32
    %c0_i32_1 = arith.constant 0 : i32
    return %arg0, %c0_i32, %c0_i32_0 : i32, i32, i32
  }
  func.func @transform_1(%arg0: i32) -> (i32, i32) {
    %c0_i32 = arith.constant 0 : i32
    %c0_i32_0 = arith.constant 0 : i32
    %c0_i32_1 = arith.constant 0 : i32
    return %c0_i32, %c0_i32_0 : i32, i32
  }
  func.func @transform_2(%arg0: i32) -> (i32, i32) {
    %c0_i32 = arith.constant 0 : i32
    %c0_i32_0 = arith.constant 0 : i32
    %c0_i32_1 = arith.constant 0 : i32
    return %c0_i32, %c0_i32_0 : i32, i32
  }
  func.func @transform_3(%arg0: i32) -> (i32, i32) {
    %c0_i32 = arith.constant 0 : i32
    %c0_i32_0 = arith.constant 0 : i32
    %c0_i32_1 = arith.constant 0 : i32
    return %c0_i32, %c0_i32_0 : i32, i32
  }
  func.func @transform_4(%arg0: i32) -> (i32, i32) {
    %c0_i32 = arith.constant 0 : i32
    %c0_i32_0 = arith.constant 0 : i32
    %c0_i32_1 = arith.constant 0 : i32
    return %c0_i32, %c0_i32_0 : i32, i32
  }
  func.func @transform_5(%arg0: i32) -> (i32, i32) {
    %c0_i32 = arith.constant 0 : i32
    %c0_i32_0 = arith.constant 0 : i32
    %c0_i32_1 = arith.constant 0 : i32
    return %c0_i32, %c0_i32_0 : i32, i32
  }
  func.func @transform_6(%arg0: i32) -> (i32, i32) {
    %c0_i32 = arith.constant 0 : i32
    %c0_i32_0 = arith.constant 0 : i32
    %c0_i32_1 = arith.constant 0 : i32
    return %c0_i32, %c0_i32_0 : i32, i32
  }
  func.func @transform_7(%arg0: i32) -> (i32, i32) {
    %c0_i32 = arith.constant 0 : i32
    %c0_i32_0 = arith.constant 0 : i32
    %c0_i32_1 = arith.constant 0 : i32
    return %c0_i32, %c0_i32_0 : i32, i32
  }
  func.func @transform_8(%arg0: i32) -> (i32, i32) {
    %c0_i32 = arith.constant 0 : i32
    %c0_i32_0 = arith.constant 0 : i32
    %c0_i32_1 = arith.constant 0 : i32
    return %c0_i32, %c0_i32_0 : i32, i32
  }
  func.func @transform_9(%arg0: i32) -> (i32, i32) {
    %c0_i32 = arith.constant 0 : i32
    %c0_i32_0 = arith.constant 0 : i32
    %c0_i32_1 = arith.constant 0 : i32
    return %c0_i32, %c0_i32_0 : i32, i32
  }
  func.func @transform_10(%arg0: i32) -> (i32, i32) {
    %c0_i32 = arith.constant 0 : i32
    %c0_i32_0 = arith.constant 0 : i32
    %c0_i32_1 = arith.constant 0 : i32
    return %c0_i32, %c0_i32_0 : i32, i32
  }
  func.func @transform_11(%arg0: i32) -> (i32, i32) {
    %c0_i32 = arith.constant 0 : i32
    %c0_i32_0 = arith.constant 0 : i32
    %c0_i32_1 = arith.constant 0 : i32
    return %c0_i32, %c0_i32_0 : i32, i32
  }
  func.func @transform_12(%arg0: i32) -> (i32, i32) {
    %c0_i32 = arith.constant 0 : i32
    %c0_i32_0 = arith.constant 0 : i32
    %c0_i32_1 = arith.constant 0 : i32
    return %c0_i32, %c0_i32_0 : i32, i32
  }
  func.func @transform_13(%arg0: i32) -> (i32, i32) {
    %c0_i32 = arith.constant 0 : i32
    %c0_i32_0 = arith.constant 0 : i32
    %c0_i32_1 = arith.constant 0 : i32
    return %c0_i32, %c0_i32_0 : i32, i32
  }
  func.func @transform_14(%arg0: i32) -> (i32, i32) {
    %c0_i32 = arith.constant 0 : i32
    %c0_i32_0 = arith.constant 0 : i32
    %c0_i32_1 = arith.constant 0 : i32
    return %c0_i32, %c0_i32_0 : i32, i32
  }
  func.func @transform_15(%arg0: i32) -> (i32, i32) {
    %c0_i32 = arith.constant 0 : i32
    %c0_i32_0 = arith.constant 0 : i32
    %c0_i32_1 = arith.constant 0 : i32
    return %c0_i32, %c0_i32_0 : i32, i32
  }
  func.func @transform_16(%arg0: i32) -> (i32, i32) {
    %c0_i32 = arith.constant 0 : i32
    %c0_i32_0 = arith.constant 0 : i32
    %c0_i32_1 = arith.constant 0 : i32
    return %c0_i32, %c0_i32_0 : i32, i32
  }
  func.func @transform_17(%arg0: i32) -> (i32, i32) {
    %c0_i32 = arith.constant 0 : i32
    %c0_i32_0 = arith.constant 0 : i32
    %c0_i32_1 = arith.constant 0 : i32
    return %c0_i32, %c0_i32_0 : i32, i32
  }
  func.func @transform_18(%arg0: i32) -> (i32, i32) {
    %c0_i32 = arith.constant 0 : i32
    %c0_i32_0 = arith.constant 0 : i32
    %c0_i32_1 = arith.constant 0 : i32
    return %c0_i32, %c0_i32_0 : i32, i32
  }
  func.func @transform_19(%arg0: i32) -> (i32, i32) {
    %c0_i32 = arith.constant 0 : i32
    %c0_i32_0 = arith.constant 0 : i32
    %c0_i32_1 = arith.constant 0 : i32
    return %c0_i32, %c0_i32_0 : i32, i32
  }
  func.func @transform_20(%arg0: i32) -> (i32, i32) {
    %c0_i32 = arith.constant 0 : i32
    %c0_i32_0 = arith.constant 0 : i32
    %c0_i32_1 = arith.constant 0 : i32
    return %c0_i32, %c0_i32_0 : i32, i32
  }
  func.func @transform_21(%arg0: i32) -> (i32, i32) {
    %c0_i32 = arith.constant 0 : i32
    %c0_i32_0 = arith.constant 0 : i32
    %c0_i32_1 = arith.constant 0 : i32
    return %c0_i32, %c0_i32_0 : i32, i32
  }
  func.func @transform_22(%arg0: i32) -> (i32, i32) {
    %c0_i32 = arith.constant 0 : i32
    %c0_i32_0 = arith.constant 0 : i32
    %c0_i32_1 = arith.constant 0 : i32
    return %c0_i32, %c0_i32_0 : i32, i32
  }
  func.func @transform_23(%arg0: i32) -> (i32, i32) {
    %c0_i32 = arith.constant 0 : i32
    %c0_i32_0 = arith.constant 0 : i32
    %c0_i32_1 = arith.constant 0 : i32
    return %c0_i32, %c0_i32_0 : i32, i32
  }
  func.func @transform_24(%arg0: i32) -> (i32, i32) {
    %c0_i32 = arith.constant 0 : i32
    %c0_i32_0 = arith.constant 0 : i32
    %c0_i32_1 = arith.constant 0 : i32
    return %c0_i32, %c0_i32_0 : i32, i32
  }
  func.func @transform_25(%arg0: i32) -> (i32, i32) {
    %c0_i32 = arith.constant 0 : i32
    %c0_i32_0 = arith.constant 0 : i32
    %c0_i32_1 = arith.constant 0 : i32
    return %c0_i32, %c0_i32_0 : i32, i32
  }
  func.func @transform_26(%arg0: i32) -> (i32, i32) {
    %c0_i32 = arith.constant 0 : i32
    %c0_i32_0 = arith.constant 0 : i32
    %c0_i32_1 = arith.constant 0 : i32
    return %c0_i32, %c0_i32_0 : i32, i32
  }
  func.func @transform_27(%arg0: i32) -> (i32, i32) {
    %c0_i32 = arith.constant 0 : i32
    %c0_i32_0 = arith.constant 0 : i32
    %c0_i32_1 = arith.constant 0 : i32
    return %c0_i32, %c0_i32_0 : i32, i32
  }
  func.func @transform_28(%arg0: i32) -> (i32, i32) {
    %c0_i32 = arith.constant 0 : i32
    %c0_i32_0 = arith.constant 0 : i32
    %c0_i32_1 = arith.constant 0 : i32
    return %c0_i32, %c0_i32_0 : i32, i32
  }
  func.func @transform_29(%arg0: i32) -> (i32, i32) {
    %c0_i32 = arith.constant 0 : i32
    %c0_i32_0 = arith.constant 0 : i32
    %c0_i32_1 = arith.constant 0 : i32
    return %c0_i32, %c0_i32_0 : i32, i32
  }
  func.func @transform_30(%arg0: i32) -> (i32, i32) {
    %c0_i32 = arith.constant 0 : i32
    %c0_i32_0 = arith.constant 0 : i32
    %c0_i32_1 = arith.constant 0 : i32
    return %c0_i32, %c0_i32_0 : i32, i32
  }
  func.func @transform_31(%arg0: i32) -> (i32, i32, i32) {
    %c0_i32 = arith.constant 0 : i32
    %c0_i32_0 = arith.constant 0 : i32
    %c0_i32_1 = arith.constant 0 : i32
    return %arg0, %c0_i32, %c0_i32_0 : i32, i32, i32
  }
  func.func @transform_32(%arg0: i32) -> (i32, i32, i32) {
    %c0_i32 = arith.constant 0 : i32
    %c0_i32_0 = arith.constant 0 : i32
    %c0_i32_1 = arith.constant 0 : i32
    return %arg0, %c0_i32, %c0_i32_0 : i32, i32, i32
  }
  func.func @transform_33(%arg0: i32) -> (i32, i32, i32) {
    %c0_i32 = arith.constant 0 : i32
    %c0_i32_0 = arith.constant 0 : i32
    %c0_i32_1 = arith.constant 0 : i32
    return %arg0, %c0_i32, %c0_i32_0 : i32, i32, i32
  }
}

</mosaic_0001>

<llo_original>
// kernel: tpu_custom_call.1
$region0: #{tpu_custom_call.1}
  #allocation0 [shape = 'u32[]', space=smem, size = 0x4, offset = 0x4, fixed_abs, tag = 'smem constant byte address 0x4 - core index']
  #allocation1 [shape = 'u32[144,128]{1,0:T(1,128)}', space=vmem, size = 0x12000, scoped, tag = 'internal scratch']
  #allocation2 [shape = 'f32[16,128]{1,0:T(8,128)}', space=vmem, size = 0x2000, scoped, tag = 'scratch operand']
  #allocation3 [shape = 'f32[8,128]{1,0:T(8,128)}', space=vmem, size = 0x1000, scoped, tag = 'scratch operand']
  %s0 = inlined_call_operand.smem [shape: u32[34], index: -1, kind: input, shape index: {}]
  %s1 = sld [smem:[%s0]]
  %s2 = scalar_lea.smem %s0, 1
  %s3 = sld [smem:[%s2]]
  %s4 = scalar_lea.smem %s0, 2
  %s5 = sld [smem:[%s4]]
  %s6 = scalar_lea.smem %s0, 3
  %s7 = sld [smem:[%s6]]
  %s8 = scalar_lea.smem %s0, 4
  %s9 = sld [smem:[%s8]]
  %s10 = scalar_lea.smem %s0, 5
  %s11 = sld [smem:[%s10]]
  %s12 = scalar_lea.smem %s0, 6
  %s13 = sld [smem:[%s12]]
  %s14 = scalar_lea.smem %s0, 7
  %s15 = sld [smem:[%s14]]
  %s16 = scalar_lea.smem %s0, 8
  %s17 = sld [smem:[%s16]]
  %s18 = scalar_lea.smem %s0, 9
  %s19 = sld [smem:[%s18]]
  %s20 = scalar_lea.smem %s0, 10
  %s21 = sld [smem:[%s20]]
  %s22 = scalar_lea.smem %s0, 11
  %s23 = sld [smem:[%s22]]
  %s24 = scalar_lea.smem %s0, 12
  %s25 = sld [smem:[%s24]]
  %s26 = scalar_lea.smem %s0, 13
  %s27 = sld [smem:[%s26]]
  %s28 = scalar_lea.smem %s0, 14
  %s29 = sld [smem:[%s28]]
  %s30 = scalar_lea.smem %s0, 15
  %s31 = sld [smem:[%s30]]
  %s32 = scalar_lea.smem %s0, 16
  %s33 = sld [smem:[%s32]]
  %s34 = scalar_lea.smem %s0, 17
  %s35 = sld [smem:[%s34]]
  %s36 = scalar_lea.smem %s0, 18
  %s37 = sld [smem:[%s36]]
  %s38 = scalar_lea.smem %s0, 19
  %s39 = sld [smem:[%s38]]
  %s40 = scalar_lea.smem %s0, 20
  %s41 = sld [smem:[%s40]]
  %s42 = scalar_lea.smem %s0, 21
  %s43 = sld [smem:[%s42]]
  %s44 = scalar_lea.smem %s0, 22
  %s45 = sld [smem:[%s44]]
  %s46 = scalar_lea.smem %s0, 23
  %s47 = sld [smem:[%s46]]
  %s48 = scalar_lea.smem %s0, 24
  %s49 = sld [smem:[%s48]]
  %s50 = scalar_lea.smem %s0, 25
  %s51 = sld [smem:[%s50]]
  %s52 = scalar_lea.smem %s0, 26
  %s53 = sld [smem:[%s52]]
  %s54 = scalar_lea.smem %s0, 27
  %s55 = sld [smem:[%s54]]
  %s56 = scalar_lea.smem %s0, 28
  %s57 = sld [smem:[%s56]]
  %s58 = scalar_lea.smem %s0, 29
  %s59 = sld [smem:[%s58]]
  %s60 = scalar_lea.smem %s0, 30
  %s61 = sld [smem:[%s60]]
  %s62 = scalar_lea.smem %s0, 31
  %s63 = sld [smem:[%s62]]
  %s64 = scalar_lea.smem %s0, 32
  %s65 = sld [smem:[%s64]]
  %s66 = scalar_lea.smem %s0, 33
  %s67 = sld [smem:[%s66]]
  %68 = xla_tuple %s63, %s65, %s67
  %s69 = sld [smem:[#allocation0]]
  $region269: #{tpu_custom_call.1} parent=0
    _
  %s71 = ssub.s32 1, %s69
  %s72 = scalar_select 0, %s71, %s69
  $region1: #{tpu_custom_call.1} parent=0
    #allocation4 [shape = 'u8[16384]{0}', space=vmem, size = 0x4000, scoped, tag = 'input window, operand 0']
    #allocation5 [shape = 's32[2]{0}', space=sflag, size = 0x8, scoped, tag = 'scoped memory for tpu_custom_call.1']
    #allocation6 [shape = 's32[2]{0}', space=sflag, size = 0x8, scoped, tag = 'scoped memory for tpu_custom_call.1']
    #allocation7 [shape = 'u8[4096]{0}', space=vmem, size = 0x1000, scoped, tag = 'input window, operand 1, single buffered']
    #allocation8 [shape = 's32[1]{0}', space=sflag, size = 0x4, scoped, tag = 'scoped memory for tpu_custom_call.1']
    #allocation9 [shape = 'u8[4096]{0}', space=vmem, size = 0x1000, scoped, tag = 'input window, operand 2, single buffered']
    #allocation10 [shape = 'u8[4096]{0}', space=vmem, size = 0x1000, scoped, tag = 'input window, operand 3, single buffered']
    #allocation11 [shape = 's32[1]{0}', space=sflag, size = 0x4, scoped, tag = 'scoped memory for tpu_custom_call.1']
    #allocation12 [shape = 'u8[512]{0}', space=vmem, size = 0x400, scoped, tag = 'input window, operand 4, single buffered']
    #allocation13 [shape = 'u8[512]{0}', space=vmem, size = 0x400, scoped, tag = 'input window, operand 5, single buffered']
    #allocation14 [shape = 's32[1]{0}', space=sflag, size = 0x4, scoped, tag = 'scoped memory for tpu_custom_call.1']
    #allocation15 [shape = 'u8[32768]{0}', space=vmem, size = 0x8000, scoped, tag = 'input window, operand 6, single buffered']
    #allocation16 [shape = 'u8[32768]{0}', space=vmem, size = 0x8000, scoped, tag = 'input window, operand 7, single buffered']
    #allocation17 [shape = 's32[1]{0}', space=sflag, size = 0x4, scoped, tag = 'scoped memory for tpu_custom_call.1']
    #allocation18 [shape = 'u8[32768]{0}', space=vmem, size = 0x8000, scoped, tag = 'input window, operand 8, single buffered']
    #allocation19 [shape = 'u8[512]{0}', space=vmem, size = 0x400, scoped, tag = 'input window, operand 9, single buffered']
    #allocation20 [shape = 's32[1]{0}', space=sflag, size = 0x4, scoped, tag = 'scoped memory for tpu_custom_call.1']
    #allocation21 [shape = 'u8[512]{0}', space=vmem, size = 0x400, scoped, tag = 'input window, operand 10, single buffered']
    #allocation22 [shape = 'u8[32768]{0}', space=vmem, size = 0x8000, scoped, tag = 'input window, operand 11, single buffered']
    #allocation23 [shape = 's32[1]{0}', space=sflag, size = 0x4, scoped, tag = 'scoped memory for tpu_custom_call.1']
    #allocation24 [shape = 'u8[32768]{0}', space=vmem, size = 0x8000, scoped, tag = 'input window, operand 12, single buffered']
    #allocation25 [shape = 'u8[32768]{0}', space=vmem, size = 0x8000, scoped, tag = 'input window, operand 13, single buffered']
    #allocation26 [shape = 's32[1]{0}', space=sflag, size = 0x4, scoped, tag = 'scoped memory for tpu_custom_call.1']
    #allocation27 [shape = 'u8[512]{0}', space=vmem, size = 0x400, scoped, tag = 'input window, operand 14, single buffered']
    #allocation28 [shape = 'u8[512]{0}', space=vmem, size = 0x400, scoped, tag = 'input window, operand 15, single buffered']
    #allocation29 [shape = 's32[1]{0}', space=sflag, size = 0x4, scoped, tag = 'scoped memory for tpu_custom_call.1']
    #allocation30 [shape = 'u8[32768]{0}', space=vmem, size = 0x8000, scoped, tag = 'input window, operand 16, single buffered']
    #allocation31 [shape = 'u8[32768]{0}', space=vmem, size = 0x8000, scoped, tag = 'input window, operand 18, single buffered']
    #allocation32 [shape = 's32[1]{0}', space=sflag, size = 0x4, scoped, tag = 'scoped memory for tpu_custom_call.1']
    #allocation33 [shape = 'u8[32768]{0}', space=vmem, size = 0x8000, scoped, tag = 'input window, operand 21, single buffered']
    #allocation34 [shape = 'u8[32768]{0}', space=vmem, size = 0x8000, scoped, tag = 'input window, operand 22, single buffered']
    #allocation35 [shape = 's32[1]{0}', space=sflag, size = 0x4, scoped, tag = 'scoped memory for tpu_custom_call.1']
    #allocation36 [shape = 'u8[32768]{0}', space=vmem, size = 0x8000, scoped, tag = 'input window, operand 23, single buffered']
    #allocation37 [shape = 'u8[32768]{0}', space=vmem, size = 0x8000, scoped, tag = 'input window, operand 26, single buffered']
    #allocation38 [shape = 's32[1]{0}', space=sflag, size = 0x4, scoped, tag = 'scoped memory for tpu_custom_call.1']
    #allocation39 [shape = 'u8[32768]{0}', space=vmem, size = 0x8000, scoped, tag = 'input window, operand 27, single buffered']
    #allocation40 [shape = 'u8[32768]{0}', space=vmem, size = 0x8000, scoped, tag = 'input window, operand 28, single buffered']
    #allocation41 [shape = 's32[1]{0}', space=sflag, size = 0x4, scoped, tag = 'scoped memory for tpu_custom_call.1']
    #allocation42 [shape = 'u8[16384]{0}', space=vmem, size = 0x4000, scoped, tag = 'output window, operand 0']
    #allocation43 [shape = 'u8[8192]{0}', space=vmem, size = 0x2000, scoped, tag = 'output window, operand 1']
    #allocation44 [shape = 's32[2]{0}', space=sflag, size = 0x8, scoped, tag = 'scoped memory for tpu_custom_call.1']
    #allocation45 [shape = 'u8[4096]{0}', space=vmem, size = 0x1000, scoped, tag = 'output window, operand 2']
    %73 = vsyncpa [#allocation5], 0
    %s74 = scalar_lea.sflag [#allocation5], 1
    %75 = vsyncpa %s74, 0
    %76 = vsyncpa [#allocation8], 0
    %77 = vsyncpa [#allocation11], 0
    %78 = vsyncpa [#allocation14], 0
    %79 = vsyncpa [#allocation17], 0
    %80 = vsyncpa [#allocation20], 0
    %81 = vsyncpa [#allocation23], 0
    %82 = vsyncpa [#allocation26], 0
    %83 = vsyncpa [#allocation29], 0
    %84 = vsyncpa [#allocation32], 0
    %85 = vsyncpa [#allocation35], 0
    %86 = vsyncpa [#allocation38], 0
    %87 = vsyncpa [#allocation41], 0
    %88 = vsyncpa [#allocation6], 0
    %s89 = scalar_lea.sflag [#allocation6], 1
    %90 = vsyncpa %s89, 0
    %91 = vsyncpa [#allocation44], 0
    %s92 = scalar_lea.sflag [#allocation44], 1
    %93 = vsyncpa %s92, 0
    loop: start=0, step=1, limit=4
    $region2: #{tpu_custom_call.1} parent=1 // loop_pre_header
      _
    $region3: #{tpu_custom_call.1} parent=1 // loop_header
      %s95 = sphi 0, %s99
      %p96 = scmp.ge.s32.totalorder %s95, 4
      %s105 = sphi 0, %s107
      %s108 = sphi 0, %s105
      %s109 = sphi 0, %s108
      %s125 = sphi 0, %s109
      %s129 = sphi 0, %s129
      %s131 = sphi 0, %s129
      %s132 = sphi 0, %s131
      %s146 = sphi 0, %s132
      %s150 = sphi 0, %s150
      %s152 = sphi 0, %s150
      %s153 = sphi 0, %s152
      %s167 = sphi 0, %s153
      %s171 = sphi 0, %s171
      %s173 = sphi 0, %s171
      %s174 = sphi 0, %s173
      %s188 = sphi 0, %s174
      %s192 = sphi 0, %s192
      %s194 = sphi 0, %s192
      %s195 = sphi 0, %s194
      %s209 = sphi 0, %s195
      %s213 = sphi 0, %s213
      %s215 = sphi 0, %s213
      %s216 = sphi 0, %s215
      %s230 = sphi 0, %s216
      %s234 = sphi 0, %s234
      %s236 = sphi 0, %s234
      %s237 = sphi 0, %s236
      %s251 = sphi 0, %s237
      %s255 = sphi 0, %s255
      %s257 = sphi 0, %s255
      %s258 = sphi 0, %s257
      %s272 = sphi 0, %s258
      %s276 = sphi 0, %s276
      %s278 = sphi 0, %s276
      %s279 = sphi 0, %s278
      %s293 = sphi 0, %s279
      %s297 = sphi 0, %s297
      %s299 = sphi 0, %s297
      %s300 = sphi 0, %s299
      %s314 = sphi 0, %s300
      %s318 = sphi 0, %s318
      %s320 = sphi 0, %s318
      %s321 = sphi 0, %s320
      %s335 = sphi 0, %s321
      %s339 = sphi 0, %s339
      %s341 = sphi 0, %s339
      %s342 = sphi 0, %s341
      %s356 = sphi 0, %s342
      %s360 = sphi 0, %s360
      %s362 = sphi 0, %s360
      %s363 = sphi 0, %s362
      %s377 = sphi 0, %s363
      %s381 = sphi 0, %s381
      %s383 = sphi 0, %s381
      %s384 = sphi 0, %s383
      %s398 = sphi 0, %s384
      %s402 = sphi 0, %s402
      %s404 = sphi 0, %s402
      %s405 = sphi 0, %s404
      %s419 = sphi 0, %s405
      %s423 = sphi 0, %s423
      %s425 = sphi 0, %s423
      %s426 = sphi 0, %s425
      %s440 = sphi 0, %s426
      %s444 = sphi 0, %s444
      %s446 = sphi 0, %s444
      %s447 = sphi 0, %s446
      %s461 = sphi 0, %s447
      %s465 = sphi 0, %s465
      %s467 = sphi 0, %s465
      %s468 = sphi 0, %s467
      %s482 = sphi 0, %s468
      %s486 = sphi 0, %s486
      %s488 = sphi 0, %s486
      %s489 = sphi 0, %s488
      %s503 = sphi 0, %s489
      %s507 = sphi 0, %s507
      %s509 = sphi 0, %s507
      %s510 = sphi 0, %s509
      %s524 = sphi 0, %s510
      %s528 = sphi 0, %s528
      %s530 = sphi 0, %s528
      %s531 = sphi 0, %s530
      %s545 = sphi 0, %s531
      %s549 = sphi 0, %s549
      %s551 = sphi 0, %s549
      %s552 = sphi 0, %s551
      %s566 = sphi 0, %s552
      %s570 = sphi 0, %s570
      %s572 = sphi 0, %s570
      %s573 = sphi 0, %s572
      %s587 = sphi 0, %s573
      %s591 = sphi 0, %s591
      %s593 = sphi 0, %s591
      %s594 = sphi 0, %s593
      %s608 = sphi 0, %s594
      %s612 = sphi 0, %s612
      %s614 = sphi 0, %s612
      %s615 = sphi 0, %s614
      %s629 = sphi 0, %s615
      %s633 = sphi 0, %s633
      %s635 = sphi 0, %s633
      %s636 = sphi 0, %s635
      %s650 = sphi 0, %s636
      %s654 = sphi 0, %s654
      %s656 = sphi 0, %s654
      %s657 = sphi 0, %s656
      %s671 = sphi 0, %s657
      %s675 = sphi 0, %s675
      %s677 = sphi 0, %s675
      %s678 = sphi 0, %s677
      %s692 = sphi 0, %s678
      %s696 = sphi 0, %s696
      %s698 = sphi 0, %s696
      %s699 = sphi 0, %s698
      %s713 = sphi 0, %s699
      %s717 = sphi 0, %s717
      %s719 = sphi 0, %s717
      %s720 = sphi 0, %s719
      %s734 = sphi 0, %s720
      %s738 = sphi 0, %s738
      %s740 = sphi 0, %s738
      %s741 = sphi 0, %s740
      %s755 = sphi 0, %s741
      %s761 = sphi 0, %s763
      %s764 = sphi 0, %s761
      %s765 = sphi 0, %s764
      %s781 = sphi 0, %s765
      %s787 = sphi 0, %s789
      %s790 = sphi 0, %s787
      %s791 = sphi 0, %s790
      %s807 = sphi 0, %s791
      %s813 = sphi 0, %s815
      %s816 = sphi 0, %s813
      %s817 = sphi 0, %s816
      %s833 = sphi 0, %s817
    $region4: #{tpu_custom_call.1} parent=1 // loop_header_branch
      %98 = sbr.rel (%p96) target = $region8
    $region5: #{tpu_custom_call.1} parent=1 // loop_body
      %s100 = ssub.s32 %s95, 1
      %s101 = ssub.s32 %s95, 2
      %s102 = sadd.s32 %s95, 1
      %s103 = ssub.s32 %s95, %s102
      %p104 = scmp.eq.s32.totalorder %s103, 0
      %s106 = sadd.s32 %s105, 1
      %s107 = scalar_select %p104, %s105, %s106
      %p110 = pneg %p104
      %p111 = scmp.eq.s32.totalorder %s95, 1
      %p112 = por %p110, %p111
      %p113 = scmp.ne.s32.totalorder %s105, %s108
      %p114 = scmp.eq.s32.totalorder %s95, 0
      %p115 = por %p113, %p114
      %p116 = scmp.ne.s32.totalorder %s105, %s108
      %p117 = scmp.eq.s32.totalorder %s100, 1
      %p118 = por %p116, %p117
      %p119 = scmp.ne.s32.totalorder %s108, %s109
      %p120 = scmp.eq.s32.totalorder %s100, 0
      %p121 = por %p119, %p120
      %p122 = scmp.ne.s32.totalorder %s108, %s109
      %p123 = scmp.eq.s32.totalorder %s101, 1
      %p124 = por %p122, %p123
      %p126 = scmp.ne.s32.totalorder %s109, %s125
      %p127 = scmp.eq.s32.totalorder %s101, 0
      %p128 = por %p126, %p127
      %s130 = sadd.s32 %s129, 1
      %p133 = scmp.eq.s32.totalorder %s95, 1
      %p134 = scmp.ne.s32.totalorder %s129, %s131
      %p135 = scmp.eq.s32.totalorder %s95, 0
      %p136 = por %p134, %p135
      %p137 = scmp.ne.s32.totalorder %s129, %s131
      %p138 = scmp.eq.s32.totalorder %s100, 1
      %p139 = por %p137, %p138
      %p140 = scmp.ne.s32.totalorder %s131, %s132
      %p141 = scmp.eq.s32.totalorder %s100, 0
      %p142 = por %p140, %p141
      %p143 = scmp.ne.s32.totalorder %s131, %s132
      %p144 = scmp.eq.s32.totalorder %s101, 1
      %p145 = por %p143, %p144
      %p147 = scmp.ne.s32.totalorder %s132, %s146
      %p148 = scmp.eq.s32.totalorder %s101, 0
      %p149 = por %p147, %p148
      %s151 = sadd.s32 %s150, 1
      %p154 = scmp.eq.s32.totalorder %s95, 1
      %p155 = scmp.ne.s32.totalorder %s150, %s152
      %p156 = scmp.eq.s32.totalorder %s95, 0
      %p157 = por %p155, %p156
      %p158 = scmp.ne.s32.totalorder %s150, %s152
      %p159 = scmp.eq.s32.totalorder %s100, 1
      %p160 = por %p158, %p159
      %p161 = scmp.ne.s32.totalorder %s152, %s153
      %p162 = scmp.eq.s32.totalorder %s100, 0
      %p163 = por %p161, %p162
      %p164 = scmp.ne.s32.totalorder %s152, %s153
      %p165 = scmp.eq.s32.totalorder %s101, 1
      %p166 = por %p164, %p165
      %p168 = scmp.ne.s32.totalorder %s153, %s167
      %p169 = scmp.eq.s32.totalorder %s101, 0
      %p170 = por %p168, %p169
      %s172 = sadd.s32 %s171, 1
      %p175 = scmp.eq.s32.totalorder %s95, 1
      %p176 = scmp.ne.s32.totalorder %s171, %s173
      %p177 = scmp.eq.s32.totalorder %s95, 0
      %p178 = por %p176, %p177
      %p179 = scmp.ne.s32.totalorder %s171, %s173
      %p180 = scmp.eq.s32.totalorder %s100, 1
      %p181 = por %p179, %p180
      %p182 = scmp.ne.s32.totalorder %s173, %s174
      %p183 = scmp.eq.s32.totalorder %s100, 0
      %p184 = por %p182, %p183
      %p185 = scmp.ne.s32.totalorder %s173, %s174
      %p186 = scmp.eq.s32.totalorder %s101, 1
      %p187 = por %p185, %p186
      %p189 = scmp.ne.s32.totalorder %s174, %s188
      %p190 = scmp.eq.s32.totalorder %s101, 0
      %p191 = por %p189, %p190
      %s193 = sadd.s32 %s192, 1
      %p196 = scmp.eq.s32.totalorder %s95, 1
      %p197 = scmp.ne.s32.totalorder %s192, %s194
      %p198 = scmp.eq.s32.totalorder %s95, 0
      %p199 = por %p197, %p198
      %p200 = scmp.ne.s32.totalorder %s192, %s194
      %p201 = scmp.eq.s32.totalorder %s100, 1
      %p202 = por %p200, %p201
      %p203 = scmp.ne.s32.totalorder %s194, %s195
      %p204 = scmp.eq.s32.totalorder %s100, 0
      %p205 = por %p203, %p204
      %p206 = scmp.ne.s32.totalorder %s194, %s195
      %p207 = scmp.eq.s32.totalorder %s101, 1
      %p208 = por %p206, %p207
      %p210 = scmp.ne.s32.totalorder %s195, %s209
      %p211 = scmp.eq.s32.totalorder %s101, 0
      %p212 = por %p210, %p211
      %s214 = sadd.s32 %s213, 1
      %p217 = scmp.eq.s32.totalorder %s95, 1
      %p218 = scmp.ne.s32.totalorder %s213, %s215
      %p219 = scmp.eq.s32.totalorder %s95, 0
      %p220 = por %p218, %p219
      %p221 = scmp.ne.s32.totalorder %s213, %s215
      %p222 = scmp.eq.s32.totalorder %s100, 1
      %p223 = por %p221, %p222
      %p224 = scmp.ne.s32.totalorder %s215, %s216
      %p225 = scmp.eq.s32.totalorder %s100, 0
      %p226 = por %p224, %p225
      %p227 = scmp.ne.s32.totalorder %s215, %s216
      %p228 = scmp.eq.s32.totalorder %s101, 1
      %p229 = por %p227, %p228
      %p231 = scmp.ne.s32.totalorder %s216, %s230
      %p232 = scmp.eq.s32.totalorder %s101, 0
      %p233 = por %p231, %p232
      %s235 = sadd.s32 %s234, 1
      %p238 = scmp.eq.s32.totalorder %s95, 1
      %p239 = scmp.ne.s32.totalorder %s234, %s236
      %p240 = scmp.eq.s32.totalorder %s95, 0
      %p241 = por %p239, %p240
      %p242 = scmp.ne.s32.totalorder %s234, %s236
      %p243 = scmp.eq.s32.totalorder %s100, 1
      %p244 = por %p242, %p243
      %p245 = scmp.ne.s32.totalorder %s236, %s237
      %p246 = scmp.eq.s32.totalorder %s100, 0
      %p247 = por %p245, %p246
      %p248 = scmp.ne.s32.totalorder %s236, %s237
      %p249 = scmp.eq.s32.totalorder %s101, 1
      %p250 = por %p248, %p249
      %p252 = scmp.ne.s32.totalorder %s237, %s251
      %p253 = scmp.eq.s32.totalorder %s101, 0
      %p254 = por %p252, %p253
      %s256 = sadd.s32 %s255, 1
      %p259 = scmp.eq.s32.totalorder %s95, 1
      %p260 = scmp.ne.s32.totalorder %s255, %s257
      %p261 = scmp.eq.s32.totalorder %s95, 0
      %p262 = por %p260, %p261
      %p263 = scmp.ne.s32.totalorder %s255, %s257
      %p264 = scmp.eq.s32.totalorder %s100, 1
      %p265 = por %p263, %p264
      %p266 = scmp.ne.s32.totalorder %s257, %s258
      %p267 = scmp.eq.s32.totalorder %s100, 0
      %p268 = por %p266, %p267
      %p269 = scmp.ne.s32.totalorder %s257, %s258
      %p270 = scmp.eq.s32.totalorder %s101, 1
      %p271 = por %p269, %p270
      %p273 = scmp.ne.s32.totalorder %s258, %s272
      %p274 = scmp.eq.s32.totalorder %s101, 0
      %p275 = por %p273, %p274
      %s277 = sadd.s32 %s276, 1
      %p280 = scmp.eq.s32.totalorder %s95, 1
      %p281 = scmp.ne.s32.totalorder %s276, %s278
      %p282 = scmp.eq.s32.totalorder %s95, 0
      %p283 = por %p281, %p282
      %p284 = scmp.ne.s32.totalorder %s276, %s278
      %p285 = scmp.eq.s32.totalorder %s100, 1
      %p286 = por %p284, %p285
      %p287 = scmp.ne.s32.totalorder %s278, %s279
      %p288 = scmp.eq.s32.totalorder %s100, 0
      %p289 = por %p287, %p288
      %p290 = scmp.ne.s32.totalorder %s278, %s279
      %p291 = scmp.eq.s32.totalorder %s101, 1
      %p292 = por %p290, %p291
      %p294 = scmp.ne.s32.totalorder %s279, %s293
      %p295 = scmp.eq.s32.totalorder %s101, 0
      %p296 = por %p294, %p295
      %s298 = sadd.s32 %s297, 1
      %p301 = scmp.eq.s32.totalorder %s95, 1
      %p302 = scmp.ne.s32.totalorder %s297, %s299
      %p303 = scmp.eq.s32.totalorder %s95, 0
      %p304 = por %p302, %p303
      %p305 = scmp.ne.s32.totalorder %s297, %s299
      %p306 = scmp.eq.s32.totalorder %s100, 1
      %p307 = por %p305, %p306
      %p308 = scmp.ne.s32.totalorder %s299, %s300
      %p309 = scmp.eq.s32.totalorder %s100, 0
      %p310 = por %p308, %p309
      %p311 = scmp.ne.s32.totalorder %s299, %s300
      %p312 = scmp.eq.s32.totalorder %s101, 1
      %p313 = por %p311, %p312
      %p315 = scmp.ne.s32.totalorder %s300, %s314
      %p316 = scmp.eq.s32.totalorder %s101, 0
      %p317 = por %p315, %p316
      %s319 = sadd.s32 %s318, 1
      %p322 = scmp.eq.s32.totalorder %s95, 1
      %p323 = scmp.ne.s32.totalorder %s318, %s320
      %p324 = scmp.eq.s32.totalorder %s95, 0
      %p325 = por %p323, %p324
      %p326 = scmp.ne.s32.totalorder %s318, %s320
      %p327 = scmp.eq.s32.totalorder %s100, 1
      %p328 = por %p326, %p327
      %p329 = scmp.ne.s32.totalorder %s320, %s321
      %p330 = scmp.eq.s32.totalorder %s100, 0
      %p331 = por %p329, %p330
      %p332 = scmp.ne.s32.totalorder %s320, %s321
      %p333 = scmp.eq.s32.totalorder %s101, 1
      %p334 = por %p332, %p333
      %p336 = scmp.ne.s32.totalorder %s321, %s335
      %p337 = scmp.eq.s32.totalorder %s101, 0
      %p338 = por %p336, %p337
      %s340 = sadd.s32 %s339, 1
      %p343 = scmp.eq.s32.totalorder %s95, 1
      %p344 = scmp.ne.s32.totalorder %s339, %s341
      %p345 = scmp.eq.s32.totalorder %s95, 0
      %p346 = por %p344, %p345
      %p347 = scmp.ne.s32.totalorder %s339, %s341
      %p348 = scmp.eq.s32.totalorder %s100, 1
      %p349 = por %p347, %p348
      %p350 = scmp.ne.s32.totalorder %s341, %s342
      %p351 = scmp.eq.s32.totalorder %s100, 0
      %p352 = por %p350, %p351
      %p353 = scmp.ne.s32.totalorder %s341, %s342
      %p354 = scmp.eq.s32.totalorder %s101, 1
      %p355 = por %p353, %p354
      %p357 = scmp.ne.s32.totalorder %s342, %s356
      %p358 = scmp.eq.s32.totalorder %s101, 0
      %p359 = por %p357, %p358
      %s361 = sadd.s32 %s360, 1
      %p364 = scmp.eq.s32.totalorder %s95, 1
      %p365 = scmp.ne.s32.totalorder %s360, %s362
      %p366 = scmp.eq.s32.totalorder %s95, 0
      %p367 = por %p365, %p366
      %p368 = scmp.ne.s32.totalorder %s360, %s362
      %p369 = scmp.eq.s32.totalorder %s100, 1
      %p370 = por %p368, %p369
      %p371 = scmp.ne.s32.totalorder %s362, %s363
      %p372 = scmp.eq.s32.totalorder %s100, 0
      %p373 = por %p371, %p372
      %p374 = scmp.ne.s32.totalorder %s362, %s363
      %p375 = scmp.eq.s32.totalorder %s101, 1
      %p376 = por %p374, %p375
      %p378 = scmp.ne.s32.totalorder %s363, %s377
      %p379 = scmp.eq.s32.totalorder %s101, 0
      %p380 = por %p378, %p379
      %s382 = sadd.s32 %s381, 1
      %p385 = scmp.eq.s32.totalorder %s95, 1
      %p386 = scmp.ne.s32.totalorder %s381, %s383
      %p387 = scmp.eq.s32.totalorder %s95, 0
      %p388 = por %p386, %p387
      %p389 = scmp.ne.s32.totalorder %s381, %s383
      %p390 = scmp.eq.s32.totalorder %s100, 1
      %p391 = por %p389, %p390
      %p392 = scmp.ne.s32.totalorder %s383, %s384
      %p393 = scmp.eq.s32.totalorder %s100, 0
      %p394 = por %p392, %p393
      %p395 = scmp.ne.s32.totalorder %s383, %s384
      %p396 = scmp.eq.s32.totalorder %s101, 1
      %p397 = por %p395, %p396
      %p399 = scmp.ne.s32.totalorder %s384, %s398
      %p400 = scmp.eq.s32.totalorder %s101, 0
      %p401 = por %p399, %p400
      %s403 = sadd.s32 %s402, 1
      %p406 = scmp.eq.s32.totalorder %s95, 1
      %p407 = scmp.ne.s32.totalorder %s402, %s404
      %p408 = scmp.eq.s32.totalorder %s95, 0
      %p409 = por %p407, %p408
      %p410 = scmp.ne.s32.totalorder %s402, %s404
      %p411 = scmp.eq.s32.totalorder %s100, 1
      %p412 = por %p410, %p411
      %p413 = scmp.ne.s32.totalorder %s404, %s405
      %p414 = scmp.eq.s32.totalorder %s100, 0
      %p415 = por %p413, %p414
      %p416 = scmp.ne.s32.totalorder %s404, %s405
      %p417 = scmp.eq.s32.totalorder %s101, 1
      %p418 = por %p416, %p417
      %p420 = scmp.ne.s32.totalorder %s405, %s419
      %p421 = scmp.eq.s32.totalorder %s101, 0
      %p422 = por %p420, %p421
      %s424 = sadd.s32 %s423, 1
      %p427 = scmp.eq.s32.totalorder %s95, 1
      %p428 = scmp.ne.s32.totalorder %s423, %s425
      %p429 = scmp.eq.s32.totalorder %s95, 0
      %p430 = por %p428, %p429
      %p431 = scmp.ne.s32.totalorder %s423, %s425
      %p432 = scmp.eq.s32.totalorder %s100, 1
      %p433 = por %p431, %p432
      %p434 = scmp.ne.s32.totalorder %s425, %s426
      %p435 = scmp.eq.s32.totalorder %s100, 0
      %p436 = por %p434, %p435
      %p437 = scmp.ne.s32.totalorder %s425, %s426
      %p438 = scmp.eq.s32.totalorder %s101, 1
      %p439 = por %p437, %p438
      %p441 = scmp.ne.s32.totalorder %s426, %s440
      %p442 = scmp.eq.s32.totalorder %s101, 0
      %p443 = por %p441, %p442
      %s445 = sadd.s32 %s444, 1
      %p448 = scmp.eq.s32.totalorder %s95, 1
      %p449 = scmp.ne.s32.totalorder %s444, %s446
      %p450 = scmp.eq.s32.totalorder %s95, 0
      %p451 = por %p449, %p450
      %p452 = scmp.ne.s32.totalorder %s444, %s446
      %p453 = scmp.eq.s32.totalorder %s100, 1
      %p454 = por %p452, %p453
      %p455 = scmp.ne.s32.totalorder %s446, %s447
      %p456 = scmp.eq.s32.totalorder %s100, 0
      %p457 = por %p455, %p456
      %p458 = scmp.ne.s32.totalorder %s446, %s447
      %p459 = scmp.eq.s32.totalorder %s101, 1
      %p460 = por %p458, %p459
      %p462 = scmp.ne.s32.totalorder %s447, %s461
      %p463 = scmp.eq.s32.totalorder %s101, 0
      %p464 = por %p462, %p463
      %s466 = sadd.s32 %s465, 1
      %p469 = scmp.eq.s32.totalorder %s95, 1
      %p470 = scmp.ne.s32.totalorder %s465, %s467
      %p471 = scmp.eq.s32.totalorder %s95, 0
      %p472 = por %p470, %p471
      %p473 = scmp.ne.s32.totalorder %s465, %s467
      %p474 = scmp.eq.s32.totalorder %s100, 1
      %p475 = por %p473, %p474
      %p476 = scmp.ne.s32.totalorder %s467, %s468
      %p477 = scmp.eq.s32.totalorder %s100, 0
      %p478 = por %p476, %p477
      %p479 = scmp.ne.s32.totalorder %s467, %s468
      %p480 = scmp.eq.s32.totalorder %s101, 1
      %p481 = por %p479, %p480
      %p483 = scmp.ne.s32.totalorder %s468, %s482
      %p484 = scmp.eq.s32.totalorder %s101, 0
      %p485 = por %p483, %p484
      %s487 = sadd.s32 %s486, 1
      %p490 = scmp.eq.s32.totalorder %s95, 1
      %p491 = scmp.ne.s32.totalorder %s486, %s488
      %p492 = scmp.eq.s32.totalorder %s95, 0
      %p493 = por %p491, %p492
      %p494 = scmp.ne.s32.totalorder %s486, %s488
      %p495 = scmp.eq.s32.totalorder %s100, 1
      %p496 = por %p494, %p495
      %p497 = scmp.ne.s32.totalorder %s488, %s489
      %p498 = scmp.eq.s32.totalorder %s100, 0
      %p499 = por %p497, %p498
      %p500 = scmp.ne.s32.totalorder %s488, %s489
      %p501 = scmp.eq.s32.totalorder %s101, 1
      %p502 = por %p500, %p501
      %p504 = scmp.ne.s32.totalorder %s489, %s503
      %p505 = scmp.eq.s32.totalorder %s101, 0
      %p506 = por %p504, %p505
      %s508 = sadd.s32 %s507, 1
      %p511 = scmp.eq.s32.totalorder %s95, 1
      %p512 = scmp.ne.s32.totalorder %s507, %s509
      %p513 = scmp.eq.s32.totalorder %s95, 0
      %p514 = por %p512, %p513
      %p515 = scmp.ne.s32.totalorder %s507, %s509
      %p516 = scmp.eq.s32.totalorder %s100, 1
      %p517 = por %p515, %p516
      %p518 = scmp.ne.s32.totalorder %s509, %s510
      %p519 = scmp.eq.s32.totalorder %s100, 0
      %p520 = por %p518, %p519
      %p521 = scmp.ne.s32.totalorder %s509, %s510
      %p522 = scmp.eq.s32.totalorder %s101, 1
      %p523 = por %p521, %p522
      %p525 = scmp.ne.s32.totalorder %s510, %s524
      %p526 = scmp.eq.s32.totalorder %s101, 0
      %p527 = por %p525, %p526
      %s529 = sadd.s32 %s528, 1
      %p532 = scmp.eq.s32.totalorder %s95, 1
      %p533 = scmp.ne.s32.totalorder %s528, %s530
      %p534 = scmp.eq.s32.totalorder %s95, 0
      %p535 = por %p533, %p534
      %p536 = scmp.ne.s32.totalorder %s528, %s530
      %p537 = scmp.eq.s32.totalorder %s100, 1
      %p538 = por %p536, %p537
      %p539 = scmp.ne.s32.totalorder %s530, %s531
      %p540 = scmp.eq.s32.totalorder %s100, 0
      %p541 = por %p539, %p540
      %p542 = scmp.ne.s32.totalorder %s530, %s531
      %p543 = scmp.eq.s32.totalorder %s101, 1
      %p544 = por %p542, %p543
      %p546 = scmp.ne.s32.totalorder %s531, %s545
      %p547 = scmp.eq.s32.totalorder %s101, 0
      %p548 = por %p546, %p547
      %s550 = sadd.s32 %s549, 1
      %p553 = scmp.eq.s32.totalorder %s95, 1
      %p554 = scmp.ne.s32.totalorder %s549, %s551
      %p555 = scmp.eq.s32.totalorder %s95, 0
      %p556 = por %p554, %p555
      %p557 = scmp.ne.s32.totalorder %s549, %s551
      %p558 = scmp.eq.s32.totalorder %s100, 1
      %p559 = por %p557, %p558
      %p560 = scmp.ne.s32.totalorder %s551, %s552
      %p561 = scmp.eq.s32.totalorder %s100, 0
      %p562 = por %p560, %p561
      %p563 = scmp.ne.s32.totalorder %s551, %s552
      %p564 = scmp.eq.s32.totalorder %s101, 1
      %p565 = por %p563, %p564
      %p567 = scmp.ne.s32.totalorder %s552, %s566
      %p568 = scmp.eq.s32.totalorder %s101, 0
      %p569 = por %p567, %p568
      %s571 = sadd.s32 %s570, 1
      %p574 = scmp.eq.s32.totalorder %s95, 1
      %p575 = scmp.ne.s32.totalorder %s570, %s572
      %p576 = scmp.eq.s32.totalorder %s95, 0
      %p577 = por %p575, %p576
      %p578 = scmp.ne.s32.totalorder %s570, %s572
      %p579 = scmp.eq.s32.totalorder %s100, 1
      %p580 = por %p578, %p579
      %p581 = scmp.ne.s32.totalorder %s572, %s573
      %p582 = scmp.eq.s32.totalorder %s100, 0
      %p583 = por %p581, %p582
      %p584 = scmp.ne.s32.totalorder %s572, %s573
      %p585 = scmp.eq.s32.totalorder %s101, 1
      %p586 = por %p584, %p585
      %p588 = scmp.ne.s32.totalorder %s573, %s587
      %p589 = scmp.eq.s32.totalorder %s101, 0
      %p590 = por %p588, %p589
      %s592 = sadd.s32 %s591, 1
      %p595 = scmp.eq.s32.totalorder %s95, 1
      %p596 = scmp.ne.s32.totalorder %s591, %s593
      %p597 = scmp.eq.s32.totalorder %s95, 0
      %p598 = por %p596, %p597
      %p599 = scmp.ne.s32.totalorder %s591, %s593
      %p600 = scmp.eq.s32.totalorder %s100, 1
      %p601 = por %p599, %p600
      %p602 = scmp.ne.s32.totalorder %s593, %s594
      %p603 = scmp.eq.s32.totalorder %s100, 0
      %p604 = por %p602, %p603
      %p605 = scmp.ne.s32.totalorder %s593, %s594
      %p606 = scmp.eq.s32.totalorder %s101, 1
      %p607 = por %p605, %p606
      %p609 = scmp.ne.s32.totalorder %s594, %s608
      %p610 = scmp.eq.s32.totalorder %s101, 0
      %p611 = por %p609, %p610
      %s613 = sadd.s32 %s612, 1
      %p616 = scmp.eq.s32.totalorder %s95, 1
      %p617 = scmp.ne.s32.totalorder %s612, %s614
      %p618 = scmp.eq.s32.totalorder %s95, 0
      %p619 = por %p617, %p618
      %p620 = scmp.ne.s32.totalorder %s612, %s614
      %p621 = scmp.eq.s32.totalorder %s100, 1
      %p622 = por %p620, %p621
      %p623 = scmp.ne.s32.totalorder %s614, %s615
      %p624 = scmp.eq.s32.totalorder %s100, 0
      %p625 = por %p623, %p624
      %p626 = scmp.ne.s32.totalorder %s614, %s615
      %p627 = scmp.eq.s32.totalorder %s101, 1
      %p628 = por %p626, %p627
      %p630 = scmp.ne.s32.totalorder %s615, %s629
      %p631 = scmp.eq.s32.totalorder %s101, 0
      %p632 = por %p630, %p631
      %s634 = sadd.s32 %s633, 1
      %p637 = scmp.eq.s32.totalorder %s95, 1
      %p638 = scmp.ne.s32.totalorder %s633, %s635
      %p639 = scmp.eq.s32.totalorder %s95, 0
      %p640 = por %p638, %p639
      %p641 = scmp.ne.s32.totalorder %s633, %s635
      %p642 = scmp.eq.s32.totalorder %s100, 1
      %p643 = por %p641, %p642
      %p644 = scmp.ne.s32.totalorder %s635, %s636
      %p645 = scmp.eq.s32.totalorder %s100, 0
      %p646 = por %p644, %p645
      %p647 = scmp.ne.s32.totalorder %s635, %s636
      %p648 = scmp.eq.s32.totalorder %s101, 1
      %p649 = por %p647, %p648
      %p651 = scmp.ne.s32.totalorder %s636, %s650
      %p652 = scmp.eq.s32.totalorder %s101, 0
      %p653 = por %p651, %p652
      %s655 = sadd.s32 %s654, 1
      %p658 = scmp.eq.s32.totalorder %s95, 1
      %p659 = scmp.ne.s32.totalorder %s654, %s656
      %p660 = scmp.eq.s32.totalorder %s95, 0
      %p661 = por %p659, %p660
      %p662 = scmp.ne.s32.totalorder %s654, %s656
      %p663 = scmp.eq.s32.totalorder %s100, 1
      %p664 = por %p662, %p663
      %p665 = scmp.ne.s32.totalorder %s656, %s657
      %p666 = scmp.eq.s32.totalorder %s100, 0
      %p667 = por %p665, %p666
      %p668 = scmp.ne.s32.totalorder %s656, %s657
      %p669 = scmp.eq.s32.totalorder %s101, 1
      %p670 = por %p668, %p669
      %p672 = scmp.ne.s32.totalorder %s657, %s671
      %p673 = scmp.eq.s32.totalorder %s101, 0
      %p674 = por %p672, %p673
      %s676 = sadd.s32 %s675, 1
      %p679 = scmp.eq.s32.totalorder %s95, 1
      %p680 = scmp.ne.s32.totalorder %s675, %s677
      %p681 = scmp.eq.s32.totalorder %s95, 0
      %p682 = por %p680, %p681
      %p683 = scmp.ne.s32.totalorder %s675, %s677
      %p684 = scmp.eq.s32.totalorder %s100, 1
      %p685 = por %p683, %p684
      %p686 = scmp.ne.s32.totalorder %s677, %s678
      %p687 = scmp.eq.s32.totalorder %s100, 0
      %p688 = por %p686, %p687
      %p689 = scmp.ne.s32.totalorder %s677, %s678
      %p690 = scmp.eq.s32.totalorder %s101, 1
      %p691 = por %p689, %p690
      %p693 = scmp.ne.s32.totalorder %s678, %s692
      %p694 = scmp.eq.s32.totalorder %s101, 0
      %p695 = por %p693, %p694
      %s697 = sadd.s32 %s696, 1
      %p700 = scmp.eq.s32.totalorder %s95, 1
      %p701 = scmp.ne.s32.totalorder %s696, %s698
      %p702 = scmp.eq.s32.totalorder %s95, 0
      %p703 = por %p701, %p702
      %p704 = scmp.ne.s32.totalorder %s696, %s698
      %p705 = scmp.eq.s32.totalorder %s100, 1
      %p706 = por %p704, %p705
      %p707 = scmp.ne.s32.totalorder %s698, %s699
      %p708 = scmp.eq.s32.totalorder %s100, 0
      %p709 = por %p707, %p708
      %p710 = scmp.ne.s32.totalorder %s698, %s699
      %p711 = scmp.eq.s32.totalorder %s101, 1
      %p712 = por %p710, %p711
      %p714 = scmp.ne.s32.totalorder %s699, %s713
      %p715 = scmp.eq.s32.totalorder %s101, 0
      %p716 = por %p714, %p715
      %s718 = sadd.s32 %s717, 1
      %p721 = scmp.eq.s32.totalorder %s95, 1
      %p722 = scmp.ne.s32.totalorder %s717, %s719
      %p723 = scmp.eq.s32.totalorder %s95, 0
      %p724 = por %p722, %p723
      %p725 = scmp.ne.s32.totalorder %s717, %s719
      %p726 = scmp.eq.s32.totalorder %s100, 1
      %p727 = por %p725, %p726
      %p728 = scmp.ne.s32.totalorder %s719, %s720
      %p729 = scmp.eq.s32.totalorder %s100, 0
      %p730 = por %p728, %p729
      %p731 = scmp.ne.s32.totalorder %s719, %s720
      %p732 = scmp.eq.s32.totalorder %s101, 1
      %p733 = por %p731, %p732
      %p735 = scmp.ne.s32.totalorder %s720, %s734
      %p736 = scmp.eq.s32.totalorder %s101, 0
      %p737 = por %p735, %p736
      %s739 = sadd.s32 %s738, 1
      %p742 = scmp.eq.s32.totalorder %s95, 1
      %p743 = scmp.ne.s32.totalorder %s738, %s740
      %p744 = scmp.eq.s32.totalorder %s95, 0
      %p745 = por %p743, %p744
      %p746 = scmp.ne.s32.totalorder %s738, %s740
      %p747 = scmp.eq.s32.totalorder %s100, 1
      %p748 = por %p746, %p747
      %p749 = scmp.ne.s32.totalorder %s740, %s741
      %p750 = scmp.eq.s32.totalorder %s100, 0
      %p751 = por %p749, %p750
      %p752 = scmp.ne.s32.totalorder %s740, %s741
      %p753 = scmp.eq.s32.totalorder %s101, 1
      %p754 = por %p752, %p753
      %p756 = scmp.ne.s32.totalorder %s741, %s755
      %p757 = scmp.eq.s32.totalorder %s101, 0
      %p758 = por %p756, %p757
      %s759 = ssub.s32 %s95, %s102
      %p760 = scmp.eq.s32.totalorder %s759, 0
      %s762 = sadd.s32 %s761, 1
      %s763 = scalar_select %p760, %s761, %s762
      %p766 = pneg %p760
      %p767 = scmp.eq.s32.totalorder %s95, 1
      %p768 = por %p766, %p767
      %p769 = scmp.ne.s32.totalorder %s761, %s764
      %p770 = scmp.eq.s32.totalorder %s95, 0
      %p771 = por %p769, %p770
      %p772 = scmp.ne.s32.totalorder %s761, %s764
      %p773 = scmp.eq.s32.totalorder %s100, 1
      %p774 = por %p772, %p773
      %p775 = scmp.ne.s32.totalorder %s764, %s765
      %p776 = scmp.eq.s32.totalorder %s100, 0
      %p777 = por %p775, %p776
      %p778 = scmp.ne.s32.totalorder %s764, %s765
      %p779 = scmp.eq.s32.totalorder %s101, 1
      %p780 = por %p778, %p779
      %p782 = scmp.ne.s32.totalorder %s765, %s781
      %p783 = scmp.eq.s32.totalorder %s101, 0
      %p784 = por %p782, %p783
      %s785 = ssub.s32 %s95, %s102
      %p786 = scmp.eq.s32.totalorder %s785, 0
      %s788 = sadd.s32 %s787, 1
      %s789 = scalar_select %p786, %s787, %s788
      %p792 = pneg %p786
      %p793 = scmp.eq.s32.totalorder %s95, 1
      %p794 = por %p792, %p793
      %p795 = scmp.ne.s32.totalorder %s787, %s790
      %p796 = scmp.eq.s32.totalorder %s95, 0
      %p797 = por %p795, %p796
      %p798 = scmp.ne.s32.totalorder %s787, %s790
      %p799 = scmp.eq.s32.totalorder %s100, 1
      %p800 = por %p798, %p799
      %p801 = scmp.ne.s32.totalorder %s790, %s791
      %p802 = scmp.eq.s32.totalorder %s100, 0
      %p803 = por %p801, %p802
      %p804 = scmp.ne.s32.totalorder %s790, %s791
      %p805 = scmp.eq.s32.totalorder %s101, 1
      %p806 = por %p804, %p805
      %p808 = scmp.ne.s32.totalorder %s791, %s807
      %p809 = scmp.eq.s32.totalorder %s101, 0
      %p810 = por %p808, %p809
      %s811 = ssub.s32 %s95, %s102
      %p812 = scmp.eq.s32.totalorder %s811, 0
      %s814 = sadd.s32 %s813, 1
      %s815 = scalar_select %p812, %s813, %s814
      %p818 = pneg %p812
      %p819 = scmp.eq.s32.totalorder %s95, 1
      %p820 = por %p818, %p819
      %p821 = scmp.ne.s32.totalorder %s813, %s816
      %p822 = scmp.eq.s32.totalorder %s95, 0
      %p823 = por %p821, %p822
      %p824 = scmp.ne.s32.totalorder %s813, %s816
      %p825 = scmp.eq.s32.totalorder %s100, 1
      %p826 = por %p824, %p825
      %p827 = scmp.ne.s32.totalorder %s816, %s817
      %p828 = scmp.eq.s32.totalorder %s100, 0
      %p829 = por %p827, %p828
      %p830 = scmp.ne.s32.totalorder %s816, %s817
      %p831 = scmp.eq.s32.totalorder %s101, 1
      %p832 = por %p830, %p831
      %p834 = scmp.ne.s32.totalorder %s817, %s833
      %p835 = scmp.eq.s32.totalorder %s101, 0
      %p836 = por %p834, %p835
      %p837 = scmp.le.s32.totalorder 1, %s95
      %p838 = scmp.lt.s32.totalorder %s95, 3
      %p839 = pnand %p837, %p838
      %p840 = pneg %p839
      // Predicated region
      $region9: #{tpu_custom_call.1} parent=5 // pred_check
        _
      $region10: #{tpu_custom_call.1} parent=5 // pred_check_branch
        %842 = sbr.rel (%p839) target = $region12
      $region11: #{tpu_custom_call.1} parent=5 // pred_region
        %s843 = ssub.s32 %s95, 1
        // Predicated region
        $region13: #{tpu_custom_call.1} parent=11 // pred_check
          %p844 = pneg %p142
        $region14: #{tpu_custom_call.1} parent=11 // pred_check_branch
          %846 = sbr.rel (%p844) target = $region16
        $region15: #{tpu_custom_call.1} parent=11 // pred_region
          %s848 = ssub.s32 128, 128
          %849 = vsyncadd [#allocation8], %s848
          %s850 = sshll.u32 [#allocation7], 4
          %s851 = int_to_ptr.vmem [resolvable:$true] %s850
          %856 = dma.hbm_to_vmem [thread:$0]  %s3, 128, %s851, [#allocation8], 64, 64, 4
        $region16: #{tpu_custom_call.1} parent=11 // pred_fallthru
          _
        // Predicated region
        $region17: #{tpu_custom_call.1} parent=11 // pred_check
          %p857 = pneg %p163
        $region18: #{tpu_custom_call.1} parent=11 // pred_check_branch
          %859 = sbr.rel (%p857) target = $region20
        $region19: #{tpu_custom_call.1} parent=11 // pred_region
          %s861 = ssub.s32 128, 128
          %862 = vsyncadd [#allocation8], %s861
          %s863 = sshll.u32 [#allocation9], 4
          %s864 = int_to_ptr.vmem [resolvable:$true] %s863
          %869 = dma.hbm_to_vmem [thread:$0]  %s5, 128, %s864, [#allocation8], 64, 64, 4
        $region20: #{tpu_custom_call.1} parent=11 // pred_fallthru
          _
        // Predicated region
        $region21: #{tpu_custom_call.1} parent=11 // pred_check
          %p870 = pneg %p184
        $region22: #{tpu_custom_call.1} parent=11 // pred_check_branch
          %872 = sbr.rel (%p870) target = $region24
        $region23: #{tpu_custom_call.1} parent=11 // pred_region
          %s874 = ssub.s32 128, 128
          %875 = vsyncadd [#allocation11], %s874
          %s876 = sshll.u32 [#allocation10], 4
          %s877 = int_to_ptr.vmem [resolvable:$true] %s876
          %882 = dma.hbm_to_vmem [thread:$0]  %s7, 128, %s877, [#allocation11], 64, 64, 4
        $region24: #{tpu_custom_call.1} parent=11 // pred_fallthru
          _
        // Predicated region
        $region25: #{tpu_custom_call.1} parent=11 // pred_check
          %p883 = pneg %p205
        $region26: #{tpu_custom_call.1} parent=11 // pred_check_branch
          %885 = sbr.rel (%p883) target = $region28
        $region27: #{tpu_custom_call.1} parent=11 // pred_region
          %s887 = ssub.s32 16, 16
          %888 = vsyncadd [#allocation11], %s887
          %s890 = sshll.u32 [#allocation12], 4
          %s891 = int_to_ptr.vmem [resolvable:$true] %s890
          %893 = dma.hbm_to_vmem [thread:$0]  %s9, 16, %s891, [#allocation11]
        $region28: #{tpu_custom_call.1} parent=11 // pred_fallthru
          _
        // Predicated region
        $region29: #{tpu_custom_call.1} parent=11 // pred_check
          %p894 = pneg %p226
        $region30: #{tpu_custom_call.1} parent=11 // pred_check_branch
          %896 = sbr.rel (%p894) target = $region32
        $region31: #{tpu_custom_call.1} parent=11 // pred_region
          %s898 = ssub.s32 16, 16
          %899 = vsyncadd [#allocation14], %s898
          %s901 = sshll.u32 [#allocation13], 4
          %s902 = int_to_ptr.vmem [resolvable:$true] %s901
          %904 = dma.hbm_to_vmem [thread:$0]  %s11, 16, %s902, [#allocation14]
        $region32: #{tpu_custom_call.1} parent=11 // pred_fallthru
          _
        // Predicated region
        $region33: #{tpu_custom_call.1} parent=11 // pred_check
          %p905 = pneg %p247
        $region34: #{tpu_custom_call.1} parent=11 // pred_check_branch
          %907 = sbr.rel (%p905) target = $region36
        $region35: #{tpu_custom_call.1} parent=11 // pred_region
          %s909 = ssub.s32 1024, 1024
          %910 = vsyncadd [#allocation14], %s909
          %s911 = sshll.u32 [#allocation15], 4
          %s912 = int_to_ptr.vmem [resolvable:$true] %s911
          %917 = dma.hbm_to_vmem [thread:$0]  %s13, 1024, %s912, [#allocation14], 64, 64, 4
        $region36: #{tpu_custom_call.1} parent=11 // pred_fallthru
          _
        // Predicated region
        $region37: #{tpu_custom_call.1} parent=11 // pred_check
          %p918 = pneg %p268
        $region38: #{tpu_custom_call.1} parent=11 // pred_check_branch
          %920 = sbr.rel (%p918) target = $region40
        $region39: #{tpu_custom_call.1} parent=11 // pred_region
          %s922 = ssub.s32 1024, 1024
          %923 = vsyncadd [#allocation17], %s922
          %s924 = sshll.u32 [#allocation16], 4
          %s925 = int_to_ptr.vmem [resolvable:$true] %s924
          %930 = dma.hbm_to_vmem [thread:$0]  %s15, 1024, %s925, [#allocation17], 64, 64, 4
        $region40: #{tpu_custom_call.1} parent=11 // pred_fallthru
          _
        // Predicated region
        $region41: #{tpu_custom_call.1} parent=11 // pred_check
          %p931 = pneg %p289
        $region42: #{tpu_custom_call.1} parent=11 // pred_check_branch
          %933 = sbr.rel (%p931) target = $region44
        $region43: #{tpu_custom_call.1} parent=11 // pred_region
          %s935 = ssub.s32 1024, 1024
          %936 = vsyncadd [#allocation17], %s935
          %s937 = sshll.u32 [#allocation18], 4
          %s938 = int_to_ptr.vmem [resolvable:$true] %s937
          %943 = dma.hbm_to_vmem [thread:$0]  %s17, 1024, %s938, [#allocation17], 64, 64, 4
        $region44: #{tpu_custom_call.1} parent=11 // pred_fallthru
          _
        // Predicated region
        $region45: #{tpu_custom_call.1} parent=11 // pred_check
          %p944 = pneg %p310
        $region46: #{tpu_custom_call.1} parent=11 // pred_check_branch
          %946 = sbr.rel (%p944) target = $region48
        $region47: #{tpu_custom_call.1} parent=11 // pred_region
          %s948 = ssub.s32 16, 16
          %949 = vsyncadd [#allocation20], %s948
          %s951 = sshll.u32 [#allocation19], 4
          %s952 = int_to_ptr.vmem [resolvable:$true] %s951
          %954 = dma.hbm_to_vmem [thread:$0]  %s19, 16, %s952, [#allocation20]
        $region48: #{tpu_custom_call.1} parent=11 // pred_fallthru
          _
        // Predicated region
        $region49: #{tpu_custom_call.1} parent=11 // pred_check
          %p955 = pneg %p331
        $region50: #{tpu_custom_call.1} parent=11 // pred_check_branch
          %957 = sbr.rel (%p955) target = $region52
        $region51: #{tpu_custom_call.1} parent=11 // pred_region
          %s959 = ssub.s32 16, 16
          %960 = vsyncadd [#allocation20], %s959
          %s962 = sshll.u32 [#allocation21], 4
          %s963 = int_to_ptr.vmem [resolvable:$true] %s962
          %965 = dma.hbm_to_vmem [thread:$0]  %s21, 16, %s963, [#allocation20]
        $region52: #{tpu_custom_call.1} parent=11 // pred_fallthru
          _
        // Predicated region
        $region53: #{tpu_custom_call.1} parent=11 // pred_check
          %p966 = pneg %p352
        $region54: #{tpu_custom_call.1} parent=11 // pred_check_branch
          %968 = sbr.rel (%p966) target = $region56
        $region55: #{tpu_custom_call.1} parent=11 // pred_region
          %s970 = ssub.s32 1024, 1024
          %971 = vsyncadd [#allocation23], %s970
          %s972 = sshll.u32 [#allocation22], 4
          %s973 = int_to_ptr.vmem [resolvable:$true] %s972
          %978 = dma.hbm_to_vmem [thread:$0]  %s23, 1024, %s973, [#allocation23], 64, 64, 4
        $region56: #{tpu_custom_call.1} parent=11 // pred_fallthru
          _
        // Predicated region
        $region57: #{tpu_custom_call.1} parent=11 // pred_check
          %p979 = pneg %p373
        $region58: #{tpu_custom_call.1} parent=11 // pred_check_branch
          %981 = sbr.rel (%p979) target = $region60
        $region59: #{tpu_custom_call.1} parent=11 // pred_region
          %s983 = ssub.s32 1024, 1024
          %984 = vsyncadd [#allocation23], %s983
          %s985 = sshll.u32 [#allocation24], 4
          %s986 = int_to_ptr.vmem [resolvable:$true] %s985
          %991 = dma.hbm_to_vmem [thread:$0]  %s25, 1024, %s986, [#allocation23], 64, 64, 4
        $region60: #{tpu_custom_call.1} parent=11 // pred_fallthru
          _
        // Predicated region
        $region61: #{tpu_custom_call.1} parent=11 // pred_check
          %p992 = pneg %p394
        $region62: #{tpu_custom_call.1} parent=11 // pred_check_branch
          %994 = sbr.rel (%p992) target = $region64
        $region63: #{tpu_custom_call.1} parent=11 // pred_region
          %s996 = ssub.s32 1024, 1024
          %997 = vsyncadd [#allocation26], %s996
          %s998 = sshll.u32 [#allocation25], 4
          %s999 = int_to_ptr.vmem [resolvable:$true] %s998
          %1004 = dma.hbm_to_vmem [thread:$0]  %s27, 1024, %s999, [#allocation26], 64, 64, 4
        $region64: #{tpu_custom_call.1} parent=11 // pred_fallthru
          _
        // Predicated region
        $region65: #{tpu_custom_call.1} parent=11 // pred_check
          %p1005 = pneg %p415
        $region66: #{tpu_custom_call.1} parent=11 // pred_check_branch
          %1007 = sbr.rel (%p1005) target = $region68
        $region67: #{tpu_custom_call.1} parent=11 // pred_region
          %s1009 = ssub.s32 16, 16
          %1010 = vsyncadd [#allocation26], %s1009
          %s1012 = sshll.u32 [#allocation27], 4
          %s1013 = int_to_ptr.vmem [resolvable:$true] %s1012
          %1015 = dma.hbm_to_vmem [thread:$0]  %s29, 16, %s1013, [#allocation26]
        $region68: #{tpu_custom_call.1} parent=11 // pred_fallthru
          _
        // Predicated region
        $region69: #{tpu_custom_call.1} parent=11 // pred_check
          %p1016 = pneg %p436
        $region70: #{tpu_custom_call.1} parent=11 // pred_check_branch
          %1018 = sbr.rel (%p1016) target = $region72
        $region71: #{tpu_custom_call.1} parent=11 // pred_region
          %s1020 = ssub.s32 16, 16
          %1021 = vsyncadd [#allocation29], %s1020
          %s1023 = sshll.u32 [#allocation28], 4
          %s1024 = int_to_ptr.vmem [resolvable:$true] %s1023
          %1026 = dma.hbm_to_vmem [thread:$0]  %s31, 16, %s1024, [#allocation29]
        $region72: #{tpu_custom_call.1} parent=11 // pred_fallthru
          _
        // Predicated region
        $region73: #{tpu_custom_call.1} parent=11 // pred_check
          %p1027 = pneg %p457
        $region74: #{tpu_custom_call.1} parent=11 // pred_check_branch
          %1029 = sbr.rel (%p1027) target = $region76
        $region75: #{tpu_custom_call.1} parent=11 // pred_region
          %s1031 = ssub.s32 1024, 1024
          %1032 = vsyncadd [#allocation29], %s1031
          %s1033 = sshll.u32 [#allocation30], 4
          %s1034 = int_to_ptr.vmem [resolvable:$true] %s1033
          %1039 = dma.hbm_to_vmem [thread:$0]  %s33, 1024, %s1034, [#allocation29], 64, 64, 4
        $region76: #{tpu_custom_call.1} parent=11 // pred_fallthru
          _
        // Predicated region
        $region77: #{tpu_custom_call.1} parent=11 // pred_check
          %p1040 = pneg %p478
        $region78: #{tpu_custom_call.1} parent=11 // pred_check_branch
          %1042 = sbr.rel (%p1040) target = $region80
        $region79: #{tpu_custom_call.1} parent=11 // pred_region
          _
        $region80: #{tpu_custom_call.1} parent=11 // pred_fallthru
          _
        // Predicated region
        $region81: #{tpu_custom_call.1} parent=11 // pred_check
          %p1043 = pneg %p499
        $region82: #{tpu_custom_call.1} parent=11 // pred_check_branch
          %1045 = sbr.rel (%p1043) target = $region84
        $region83: #{tpu_custom_call.1} parent=11 // pred_region
          %s1047 = ssub.s32 1024, 1024
          %1048 = vsyncadd [#allocation32], %s1047
          %s1049 = sshll.u32 [#allocation31], 4
          %s1050 = int_to_ptr.vmem [resolvable:$true] %s1049
          %1055 = dma.hbm_to_vmem [thread:$0]  %s37, 1024, %s1050, [#allocation32], 64, 64, 4
        $region84: #{tpu_custom_call.1} parent=11 // pred_fallthru
          _
        // Predicated region
        $region85: #{tpu_custom_call.1} parent=11 // pred_check
          %p1056 = pneg %p520
        $region86: #{tpu_custom_call.1} parent=11 // pred_check_branch
          %1058 = sbr.rel (%p1056) target = $region88
        $region87: #{tpu_custom_call.1} parent=11 // pred_region
          _
        $region88: #{tpu_custom_call.1} parent=11 // pred_fallthru
          _
        // Predicated region
        $region89: #{tpu_custom_call.1} parent=11 // pred_check
          %p1059 = pneg %p541
        $region90: #{tpu_custom_call.1} parent=11 // pred_check_branch
          %1061 = sbr.rel (%p1059) target = $region92
        $region91: #{tpu_custom_call.1} parent=11 // pred_region
          _
        $region92: #{tpu_custom_call.1} parent=11 // pred_fallthru
          _
        // Predicated region
        $region93: #{tpu_custom_call.1} parent=11 // pred_check
          %p1062 = pneg %p562
        $region94: #{tpu_custom_call.1} parent=11 // pred_check_branch
          %1064 = sbr.rel (%p1062) target = $region96
        $region95: #{tpu_custom_call.1} parent=11 // pred_region
          %s1066 = ssub.s32 1024, 1024
          %1067 = vsyncadd [#allocation32], %s1066
          %s1068 = sshll.u32 [#allocation33], 4
          %s1069 = int_to_ptr.vmem [resolvable:$true] %s1068
          %1074 = dma.hbm_to_vmem [thread:$0]  %s43, 1024, %s1069, [#allocation32], 64, 64, 4
        $region96: #{tpu_custom_call.1} parent=11 // pred_fallthru
          _
        // Predicated region
        $region97: #{tpu_custom_call.1} parent=11 // pred_check
          %p1075 = pneg %p583
        $region98: #{tpu_custom_call.1} parent=11 // pred_check_branch
          %1077 = sbr.rel (%p1075) target = $region100
        $region99: #{tpu_custom_call.1} parent=11 // pred_region
          %s1079 = ssub.s32 1024, 1024
          %1080 = vsyncadd [#allocation35], %s1079
          %s1081 = sshll.u32 [#allocation34], 4
          %s1082 = int_to_ptr.vmem [resolvable:$true] %s1081
          %1087 = dma.hbm_to_vmem [thread:$0]  %s45, 1024, %s1082, [#allocation35], 64, 64, 4
        $region100: #{tpu_custom_call.1} parent=11 // pred_fallthru
          _
        // Predicated region
        $region101: #{tpu_custom_call.1} parent=11 // pred_check
          %p1088 = pneg %p604
        $region102: #{tpu_custom_call.1} parent=11 // pred_check_branch
          %1090 = sbr.rel (%p1088) target = $region104
        $region103: #{tpu_custom_call.1} parent=11 // pred_region
          %s1092 = ssub.s32 1024, 1024
          %1093 = vsyncadd [#allocation35], %s1092
          %s1094 = sshll.u32 [#allocation36], 4
          %s1095 = int_to_ptr.vmem [resolvable:$true] %s1094
          %1100 = dma.hbm_to_vmem [thread:$0]  %s47, 1024, %s1095, [#allocation35], 64, 64, 4
        $region104: #{tpu_custom_call.1} parent=11 // pred_fallthru
          _
        // Predicated region
        $region105: #{tpu_custom_call.1} parent=11 // pred_check
          %p1101 = pneg %p625
        $region106: #{tpu_custom_call.1} parent=11 // pred_check_branch
          %1103 = sbr.rel (%p1101) target = $region108
        $region107: #{tpu_custom_call.1} parent=11 // pred_region
          _
        $region108: #{tpu_custom_call.1} parent=11 // pred_fallthru
          _
        // Predicated region
        $region109: #{tpu_custom_call.1} parent=11 // pred_check
          %p1104 = pneg %p646
        $region110: #{tpu_custom_call.1} parent=11 // pred_check_branch
          %1106 = sbr.rel (%p1104) target = $region112
        $region111: #{tpu_custom_call.1} parent=11 // pred_region
          _
        $region112: #{tpu_custom_call.1} parent=11 // pred_fallthru
          _
        // Predicated region
        $region113: #{tpu_custom_call.1} parent=11 // pred_check
          %p1107 = pneg %p667
        $region114: #{tpu_custom_call.1} parent=11 // pred_check_branch
          %1109 = sbr.rel (%p1107) target = $region116
        $region115: #{tpu_custom_call.1} parent=11 // pred_region
          %s1111 = ssub.s32 1024, 1024
          %1112 = vsyncadd [#allocation38], %s1111
          %s1113 = sshll.u32 [#allocation37], 4
          %s1114 = int_to_ptr.vmem [resolvable:$true] %s1113
          %1119 = dma.hbm_to_vmem [thread:$0]  %s53, 1024, %s1114, [#allocation38], 64, 64, 4
        $region116: #{tpu_custom_call.1} parent=11 // pred_fallthru
          _
        // Predicated region
        $region117: #{tpu_custom_call.1} parent=11 // pred_check
          %p1120 = pneg %p688
        $region118: #{tpu_custom_call.1} parent=11 // pred_check_branch
          %1122 = sbr.rel (%p1120) target = $region120
        $region119: #{tpu_custom_call.1} parent=11 // pred_region
          %s1124 = ssub.s32 1024, 1024
          %1125 = vsyncadd [#allocation38], %s1124
          %s1126 = sshll.u32 [#allocation39], 4
          %s1127 = int_to_ptr.vmem [resolvable:$true] %s1126
          %1132 = dma.hbm_to_vmem [thread:$0]  %s55, 1024, %s1127, [#allocation38], 64, 64, 4
        $region120: #{tpu_custom_call.1} parent=11 // pred_fallthru
          _
        // Predicated region
        $region121: #{tpu_custom_call.1} parent=11 // pred_check
          %p1133 = pneg %p709
        $region122: #{tpu_custom_call.1} parent=11 // pred_check_branch
          %1135 = sbr.rel (%p1133) target = $region124
        $region123: #{tpu_custom_call.1} parent=11 // pred_region
          %s1137 = ssub.s32 1024, 1024
          %1138 = vsyncadd [#allocation41], %s1137
          %s1139 = sshll.u32 [#allocation40], 4
          %s1140 = int_to_ptr.vmem [resolvable:$true] %s1139
          %1145 = dma.hbm_to_vmem [thread:$0]  %s57, 1024, %s1140, [#allocation41], 64, 64, 4
        $region124: #{tpu_custom_call.1} parent=11 // pred_fallthru
          _
        // Predicated region
        $region125: #{tpu_custom_call.1} parent=11 // pred_check
          %p1146 = pneg %p730
        $region126: #{tpu_custom_call.1} parent=11 // pred_check_branch
          %1148 = sbr.rel (%p1146) target = $region128
        $region127: #{tpu_custom_call.1} parent=11 // pred_region
          _
        $region128: #{tpu_custom_call.1} parent=11 // pred_fallthru
          _
        // Predicated region
        $region129: #{tpu_custom_call.1} parent=11 // pred_check
          %p1149 = pneg %p751
        $region130: #{tpu_custom_call.1} parent=11 // pred_check_branch
          %1151 = sbr.rel (%p1149) target = $region132
        $region131: #{tpu_custom_call.1} parent=11 // pred_region
          _
        $region132: #{tpu_custom_call.1} parent=11 // pred_fallthru
          _
      $region12: #{tpu_custom_call.1} parent=5 // pred_fallthru
        _
      %p1152 = scmp.lt.s32.totalorder %s95, 2
      // Predicated region
      $region133: #{tpu_custom_call.1} parent=5 // pred_check
        %p1153 = pneg %p1152
      $region134: #{tpu_custom_call.1} parent=5 // pred_check_branch
        %1155 = sbr.rel (%p1153) target = $region136
      $region135: #{tpu_custom_call.1} parent=5 // pred_region
        // Predicated region
        $region137: #{tpu_custom_call.1} parent=135 // pred_check
          %p1156 = pneg %p115
        $region138: #{tpu_custom_call.1} parent=135 // pred_check_branch
          %1158 = sbr.rel (%p1156) target = $region140
        $region139: #{tpu_custom_call.1} parent=135 // pred_region
          %s1159 = sand.u32 %s105, 1
          %s1160 = scalar_lea.sflag [#allocation5], %s1159
          %s1161 = sand.u32 %s105, 1
          %s1162 = smul.addr %s1161, 16
          %s1163 = scalar_lea.vmem [#allocation4], %s1162
          %s1165 = ssub.s32 256, 256
          %1166 = vsyncadd %s1160, %s1165
          %s1167 = smul.addr %s95, 2
          %s1168 = smul.addr %s1167, 128
          %s1169 = scalar_lea.hbm %s1, %s1168
          %s1170 = sshll.u32 %s1163, 4
          %s1171 = int_to_ptr.vmem [resolvable:$true] %s1170
          %1176 = dma.hbm_to_vmem [thread:$0]  %s1169, 256, %s1171, %s1160, 128, 128, 8
        $region140: #{tpu_custom_call.1} parent=135 // pred_fallthru
          _
      $region136: #{tpu_custom_call.1} parent=5 // pred_fallthru
        _
      %p1177 = scmp.le.s32.totalorder 1, %s95
      %p1178 = scmp.lt.s32.totalorder %s95, 3
      %p1179 = pnand %p1177, %p1178
      %p1180 = pneg %p1179
      // Predicated region
      $region141: #{tpu_custom_call.1} parent=5 // pred_check
        _
      $region142: #{tpu_custom_call.1} parent=5 // pred_check_branch
        %1182 = sbr.rel (%p1179) target = $region144
      $region143: #{tpu_custom_call.1} parent=5 // pred_region
        %s1183 = ssub.s32 %s95, 1
        %s1184 = sand.u32 %s108, 1
        %s1185 = scalar_lea.sflag [#allocation5], %s1184
        %s1186 = sand.u32 %s108, 1
        %s1187 = smul.addr %s1186, 16
        %s1188 = scalar_lea.vmem [#allocation4], %s1187
        // Predicated region
        $region145: #{tpu_custom_call.1} parent=143 // pred_check
          %p1189 = pneg %p121
        $region146: #{tpu_custom_call.1} parent=143 // pred_check_branch
          %1191 = sbr.rel (%p1189) target = $region148
        $region147: #{tpu_custom_call.1} parent=143 // pred_region
          %1192 = dma.done %s1185, 256
        $region148: #{tpu_custom_call.1} parent=143 // pred_fallthru
          _
        // Predicated region
        $region149: #{tpu_custom_call.1} parent=143 // pred_check
          %p1193 = pneg %p142
        $region150: #{tpu_custom_call.1} parent=143 // pred_check_branch
          %1195 = sbr.rel (%p1193) target = $region152
        $region151: #{tpu_custom_call.1} parent=143 // pred_region
          %1196 = dma.done [#allocation8], 128
        $region152: #{tpu_custom_call.1} parent=143 // pred_fallthru
          _
        // Predicated region
        $region153: #{tpu_custom_call.1} parent=143 // pred_check
          %p1197 = pneg %p163
        $region154: #{tpu_custom_call.1} parent=143 // pred_check_branch
          %1199 = sbr.rel (%p1197) target = $region156
        $region155: #{tpu_custom_call.1} parent=143 // pred_region
          %1200 = dma.done [#allocation8], 128
        $region156: #{tpu_custom_call.1} parent=143 // pred_fallthru
          _
        // Predicated region
        $region157: #{tpu_custom_call.1} parent=143 // pred_check
          %p1201 = pneg %p184
        $region158: #{tpu_custom_call.1} parent=143 // pred_check_branch
          %1203 = sbr.rel (%p1201) target = $region160
        $region159: #{tpu_custom_call.1} parent=143 // pred_region
          %1204 = dma.done [#allocation11], 128
        $region160: #{tpu_custom_call.1} parent=143 // pred_fallthru
          _
        // Predicated region
        $region161: #{tpu_custom_call.1} parent=143 // pred_check
          %p1205 = pneg %p205
        $region162: #{tpu_custom_call.1} parent=143 // pred_check_branch
          %1207 = sbr.rel (%p1205) target = $region164
        $region163: #{tpu_custom_call.1} parent=143 // pred_region
          %1208 = dma.done [#allocation11], 16
        $region164: #{tpu_custom_call.1} parent=143 // pred_fallthru
          _
        // Predicated region
        $region165: #{tpu_custom_call.1} parent=143 // pred_check
          %p1209 = pneg %p226
        $region166: #{tpu_custom_call.1} parent=143 // pred_check_branch
          %1211 = sbr.rel (%p1209) target = $region168
        $region167: #{tpu_custom_call.1} parent=143 // pred_region
          %1212 = dma.done [#allocation14], 16
        $region168: #{tpu_custom_call.1} parent=143 // pred_fallthru
          _
        // Predicated region
        $region169: #{tpu_custom_call.1} parent=143 // pred_check
          %p1213 = pneg %p247
        $region170: #{tpu_custom_call.1} parent=143 // pred_check_branch
          %1215 = sbr.rel (%p1213) target = $region172
        $region171: #{tpu_custom_call.1} parent=143 // pred_region
          %1216 = dma.done [#allocation14], 1024
        $region172: #{tpu_custom_call.1} parent=143 // pred_fallthru
          _
        // Predicated region
        $region173: #{tpu_custom_call.1} parent=143 // pred_check
          %p1217 = pneg %p268
        $region174: #{tpu_custom_call.1} parent=143 // pred_check_branch
          %1219 = sbr.rel (%p1217) target = $region176
        $region175: #{tpu_custom_call.1} parent=143 // pred_region
          %1220 = dma.done [#allocation17], 1024
        $region176: #{tpu_custom_call.1} parent=143 // pred_fallthru
          _
        // Predicated region
        $region177: #{tpu_custom_call.1} parent=143 // pred_check
          %p1221 = pneg %p289
        $region178: #{tpu_custom_call.1} parent=143 // pred_check_branch
          %1223 = sbr.rel (%p1221) target = $region180
        $region179: #{tpu_custom_call.1} parent=143 // pred_region
          %1224 = dma.done [#allocation17], 1024
        $region180: #{tpu_custom_call.1} parent=143 // pred_fallthru
          _
        // Predicated region
        $region181: #{tpu_custom_call.1} parent=143 // pred_check
          %p1225 = pneg %p310
        $region182: #{tpu_custom_call.1} parent=143 // pred_check_branch
          %1227 = sbr.rel (%p1225) target = $region184
        $region183: #{tpu_custom_call.1} parent=143 // pred_region
          %1228 = dma.done [#allocation20], 16
        $region184: #{tpu_custom_call.1} parent=143 // pred_fallthru
          _
        // Predicated region
        $region185: #{tpu_custom_call.1} parent=143 // pred_check
          %p1229 = pneg %p331
        $region186: #{tpu_custom_call.1} parent=143 // pred_check_branch
          %1231 = sbr.rel (%p1229) target = $region188
        $region187: #{tpu_custom_call.1} parent=143 // pred_region
          %1232 = dma.done [#allocation20], 16
        $region188: #{tpu_custom_call.1} parent=143 // pred_fallthru
          _
        // Predicated region
        $region189: #{tpu_custom_call.1} parent=143 // pred_check
          %p1233 = pneg %p352
        $region190: #{tpu_custom_call.1} parent=143 // pred_check_branch
          %1235 = sbr.rel (%p1233) target = $region192
        $region191: #{tpu_custom_call.1} parent=143 // pred_region
          %1236 = dma.done [#allocation23], 1024
        $region192: #{tpu_custom_call.1} parent=143 // pred_fallthru
          _
        // Predicated region
        $region193: #{tpu_custom_call.1} parent=143 // pred_check
          %p1237 = pneg %p373
        $region194: #{tpu_custom_call.1} parent=143 // pred_check_branch
          %1239 = sbr.rel (%p1237) target = $region196
        $region195: #{tpu_custom_call.1} parent=143 // pred_region
          %1240 = dma.done [#allocation23], 1024
        $region196: #{tpu_custom_call.1} parent=143 // pred_fallthru
          _
        // Predicated region
        $region197: #{tpu_custom_call.1} parent=143 // pred_check
          %p1241 = pneg %p394
        $region198: #{tpu_custom_call.1} parent=143 // pred_check_branch
          %1243 = sbr.rel (%p1241) target = $region200
        $region199: #{tpu_custom_call.1} parent=143 // pred_region
          %1244 = dma.done [#allocation26], 1024
        $region200: #{tpu_custom_call.1} parent=143 // pred_fallthru
          _
        // Predicated region
        $region201: #{tpu_custom_call.1} parent=143 // pred_check
          %p1245 = pneg %p415
        $region202: #{tpu_custom_call.1} parent=143 // pred_check_branch
          %1247 = sbr.rel (%p1245) target = $region204
        $region203: #{tpu_custom_call.1} parent=143 // pred_region
          %1248 = dma.done [#allocation26], 16
        $region204: #{tpu_custom_call.1} parent=143 // pred_fallthru
          _
        // Predicated region
        $region205: #{tpu_custom_call.1} parent=143 // pred_check
          %p1249 = pneg %p436
        $region206: #{tpu_custom_call.1} parent=143 // pred_check_branch
          %1251 = sbr.rel (%p1249) target = $region208
        $region207: #{tpu_custom_call.1} parent=143 // pred_region
          %1252 = dma.done [#allocation29], 16
        $region208: #{tpu_custom_call.1} parent=143 // pred_fallthru
          _
        // Predicated region
        $region209: #{tpu_custom_call.1} parent=143 // pred_check
          %p1253 = pneg %p457
        $region210: #{tpu_custom_call.1} parent=143 // pred_check_branch
          %1255 = sbr.rel (%p1253) target = $region212
        $region211: #{tpu_custom_call.1} parent=143 // pred_region
          %1256 = dma.done [#allocation29], 1024
        $region212: #{tpu_custom_call.1} parent=143 // pred_fallthru
          _
        // Predicated region
        $region213: #{tpu_custom_call.1} parent=143 // pred_check
          %p1257 = pneg %p499
        $region214: #{tpu_custom_call.1} parent=143 // pred_check_branch
          %1259 = sbr.rel (%p1257) target = $region216
        $region215: #{tpu_custom_call.1} parent=143 // pred_region
          %1260 = dma.done [#allocation32], 1024
        $region216: #{tpu_custom_call.1} parent=143 // pred_fallthru
          _
        // Predicated region
        $region217: #{tpu_custom_call.1} parent=143 // pred_check
          %p1261 = pneg %p562
        $region218: #{tpu_custom_call.1} parent=143 // pred_check_branch
          %1263 = sbr.rel (%p1261) target = $region220
        $region219: #{tpu_custom_call.1} parent=143 // pred_region
          %1264 = dma.done [#allocation32], 1024
        $region220: #{tpu_custom_call.1} parent=143 // pred_fallthru
          _
        // Predicated region
        $region221: #{tpu_custom_call.1} parent=143 // pred_check
          %p1265 = pneg %p583
        $region222: #{tpu_custom_call.1} parent=143 // pred_check_branch
          %1267 = sbr.rel (%p1265) target = $region224
        $region223: #{tpu_custom_call.1} parent=143 // pred_region
          %1268 = dma.done [#allocation35], 1024
        $region224: #{tpu_custom_call.1} parent=143 // pred_fallthru
          _
        // Predicated region
        $region225: #{tpu_custom_call.1} parent=143 // pred_check
          %p1269 = pneg %p604
        $region226: #{tpu_custom_call.1} parent=143 // pred_check_branch
          %1271 = sbr.rel (%p1269) target = $region228
        $region227: #{tpu_custom_call.1} parent=143 // pred_region
          %1272 = dma.done [#allocation35], 1024
        $region228: #{tpu_custom_call.1} parent=143 // pred_fallthru
          _
        // Predicated region
        $region229: #{tpu_custom_call.1} parent=143 // pred_check
          %p1273 = pneg %p667
        $region230: #{tpu_custom_call.1} parent=143 // pred_check_branch
          %1275 = sbr.rel (%p1273) target = $region232
        $region231: #{tpu_custom_call.1} parent=143 // pred_region
          %1276 = dma.done [#allocation38], 1024
        $region232: #{tpu_custom_call.1} parent=143 // pred_fallthru
          _
        // Predicated region
        $region233: #{tpu_custom_call.1} parent=143 // pred_check
          %p1277 = pneg %p688
        $region234: #{tpu_custom_call.1} parent=143 // pred_check_branch
          %1279 = sbr.rel (%p1277) target = $region236
        $region235: #{tpu_custom_call.1} parent=143 // pred_region
          %1280 = dma.done [#allocation38], 1024
        $region236: #{tpu_custom_call.1} parent=143 // pred_fallthru
          _
        // Predicated region
        $region237: #{tpu_custom_call.1} parent=143 // pred_check
          %p1281 = pneg %p709
        $region238: #{tpu_custom_call.1} parent=143 // pred_check_branch
          %1283 = sbr.rel (%p1281) target = $region240
        $region239: #{tpu_custom_call.1} parent=143 // pred_region
          %1284 = dma.done [#allocation41], 1024
        $region240: #{tpu_custom_call.1} parent=143 // pred_fallthru
          _
        %s1285 = sand.u32 %s108, 1
        %s1286 = scalar_lea.sflag [#allocation5], %s1285
        %s1287 = sand.u32 %s108, 1
        %s1288 = smul.addr %s1287, 16
        %s1289 = scalar_lea.vmem [#allocation4], %s1288
        %p1290 = pneg %p121
        %p1291 = pneg %p118
        %p1292 = pneg %p142
        %p1293 = pneg %p139
        %p1294 = pneg %p163
        %p1295 = pneg %p160
        %p1296 = pneg %p184
        %p1297 = pneg %p181
        %p1298 = pneg %p205
        %p1299 = pneg %p202
        %p1300 = pneg %p226
        %p1301 = pneg %p223
        %p1302 = pneg %p247
        %p1303 = pneg %p244
        %p1304 = pneg %p268
        %p1305 = pneg %p265
        %p1306 = pneg %p289
        %p1307 = pneg %p286
        %p1308 = pneg %p310
        %p1309 = pneg %p307
        %p1310 = pneg %p331
        %p1311 = pneg %p328
        %p1312 = pneg %p352
        %p1313 = pneg %p349
        %p1314 = pneg %p373
        %p1315 = pneg %p370
        %p1316 = pneg %p394
        %p1317 = pneg %p391
        %p1318 = pneg %p415
        %p1319 = pneg %p412
        %p1320 = pneg %p436
        %p1321 = pneg %p433
        %p1322 = pneg %p457
        %p1323 = pneg %p454
        %p1324 = pneg %p478
        %p1325 = pneg %p475
        %p1326 = pneg %p499
        %p1327 = pneg %p496
        %p1328 = pneg %p520
        %p1329 = pneg %p517
        %p1330 = pneg %p541
        %p1331 = pneg %p538
        %p1332 = pneg %p562
        %p1333 = pneg %p559
        %p1334 = pneg %p583
        %p1335 = pneg %p580
        %p1336 = pneg %p604
        %p1337 = pneg %p601
        %p1338 = pneg %p625
        %p1339 = pneg %p622
        %p1340 = pneg %p646
        %p1341 = pneg %p643
        %p1342 = pneg %p667
        %p1343 = pneg %p664
        %p1344 = pneg %p688
        %p1345 = pneg %p685
        %p1346 = pneg %p709
        %p1347 = pneg %p706
        %p1348 = pneg %p730
        %p1349 = pneg %p727
        %p1350 = pneg %p751
        %p1351 = pneg %p748
        %p1352 = pneg %p777
        %p1353 = pneg %p774
        %s1354 = sand.u32 %s764, 1
        %s1355 = scalar_lea.sflag [#allocation6], %s1354
        %s1356 = sand.u32 %s764, 1
        %s1357 = smul.addr %s1356, 16
        %s1358 = scalar_lea.vmem [#allocation42], %s1357
        %p1359 = pneg %p803
        %p1360 = pneg %p800
        %s1361 = sand.u32 %s100, 1
        %s1362 = scalar_lea.sflag [#allocation44], %s1361
        %s1363 = sand.u32 %s790, 1
        %s1364 = smul.addr %s1363, 8
        %s1365 = scalar_lea.vmem [#allocation43], %s1364
        %p1366 = pneg %p829
        %p1367 = pneg %p826
        %s1368 = sand.u32 %s100, 1
        %s1369 = scalar_lea.sflag [#allocation44], %s1368
        %s1370 = sand.u32 %s816, 1
        %s1371 = smul.addr %s1370, 4
        %s1372 = scalar_lea.vmem [#allocation45], %s1371
        %v1374 = vld [vmem:[%s1188] sm:$0xff]
        %v1375 = vld [vmem:[%s1188 + $0x8] sm:$0xff]
        %v1376 = vpack.c.bf16 %v1375, %v1374
        %v1377 = vld [vmem:[#allocation7] sm:$0xf]
        %v1378 = vld [vmem:[#allocation7 + $0x4] sm:$0xf]
        %v1379 = vld [vmem:[#allocation9] sm:$0xf]
        %v1380 = vld [vmem:[#allocation9 + $0x4] sm:$0xf]
        %v1381 = vld [vmem:[#allocation10] sm:$0xf]
        %v1382 = vld [vmem:[#allocation10 + $0x4] sm:$0xf]
        %v1383 = vld [vmem:[#allocation12] sm:$0x1]
        %v1384 = vld [vmem:[#allocation13] sm:$0x1]
        %v1386 = vshrl.u32 %v1376, 16
        %v1388 = vrot.slane %v1386, 7
        %v1389 = vshll.u32 %v1376, 16
        %v1391 = vor.u32 %v1388, %v1389
        %vm1393 = vcmask 1040384
        %vm1394 = vsmask.f32 256
        %vm1395 = vmand %vm1393, %vm1394
        %v1396 = vsel %vm1395, 0, %v1391
        %v1397 = vrot.slane %v1389, 1
        %v1398 = vor.u32 %v1386, %v1397
        %vm1400 = vcmask 1047552
        %vm1401 = vsmask.f32 7424
        %vm1402 = vmand %vm1400, %vm1401
        %v1403 = vsel %vm1402, %v1398, 0
        %v1406 = vunpack.c.l.b16 %v1379
        %v1407 = vunpack.c.l.b16 %v1380
        %v1408 = vpack.c.b16 %v1407, %v1406
        %vm1410 = vcmask 130048
        %v1411 = vsel %vm1410, %v1376, 0
        %1413 = vmatprep.subr.bf16.mxu0 0
        %1414 = vmatpush1.bf16.msra.mxu0 %v1408
        %1415 = vmatprep.subr.bf16.mxu0 0
        %1416 = vmatpush1.bf16.msra.mxu0 0
        %1417 = vmatprep.subr.bf16.mxu0 0
        %1418 = vmatpush1.bf16.msra.mxu0 0
        %1419 = vmatprep.subr.bf16.mxu0 0
        %1420 = vmatpush1.bf16.msra.mxu0 0
        %1421 = vmatprep.subr.bf16.mxu0 0
        %1422 = vmatpush1.bf16.msra.mxu0 0
        %1423 = vmatprep.subr.bf16.mxu0 0
        %1424 = vmatpush1.bf16.msra.mxu0 0
        %1425 = vmatprep.subr.bf16.mxu0 0
        %1426 = vmatpush1.bf16.msra.mxu0 0
        %1427 = vmatprep.subr.bf16.mxu0 0
        %1428 = vmatpush1.bf16.msra.mxu0 0
        %1429 = vmatprep.subr.bf16.mxu0 0
        %1430 = vmatpush1.bf16.msra.mxu0 0
        %1431 = vmatprep.subr.bf16.mxu0 0
        %1432 = vmatpush1.bf16.msra.mxu0 0
        %1433 = vmatprep.subr.bf16.mxu0 0
        %1434 = vmatpush1.bf16.msra.mxu0 0
        %1435 = vmatprep.subr.bf16.mxu0 0
        %1436 = vmatpush1.bf16.msra.mxu0 0
        %1437 = vmatprep.subr.bf16.mxu0 0
        %1438 = vmatpush1.bf16.msra.mxu0 0
        %1439 = vmatprep.subr.bf16.mxu0 0
        %1440 = vmatpush1.bf16.msra.mxu0 0
        %1441 = vmatprep.subr.bf16.mxu0 0
        %1442 = vmatpush1.bf16.msra.mxu0 0
        %1443 = vmatprep.subr.bf16.mxu0 0
        %1444 = vmatpush1.bf16.msra.mxu0 0
        %1445 = vmatprep.mubr.bf16.mxu0 0
        %1446 = vmatmul.mubr.bf16.gmra.mrb[0].mxu0 %v1411
        %v1447 = vpop.f32.mrb[0].mxu0
        %v1448 = vadd.f32 0.0, %v1447
        %v1449 = vpop.f32.mrb[0].mxu0
        %v1450 = vpop.f32.mrb[0].mxu0
        %v1451 = vadd.f32 0.0, %v1450
        %v1452 = vpop.f32.mrb[0].mxu0
        %1453 = vdwg.mxu0
        %v1456 = vunpack.c.l.b16 %v1377
        %v1457 = vunpack.c.l.b16 %v1378
        %v1458 = vpack.c.b16 %v1457, %v1456
        %v1461 = vsel %vm1410, %v1396, 0
        %1463 = vmatprep.subr.bf16.mxu0 0
        %1464 = vmatpush1.bf16.msra.mxu0 %v1458
        %1465 = vmatprep.subr.bf16.mxu0 0
        %1466 = vmatpush1.bf16.msra.mxu0 0
        %1467 = vmatprep.subr.bf16.mxu0 0
        %1468 = vmatpush1.bf16.msra.mxu0 0
        %1469 = vmatprep.subr.bf16.mxu0 0
        %1470 = vmatpush1.bf16.msra.mxu0 0
        %1471 = vmatprep.subr.bf16.mxu0 0
        %1472 = vmatpush1.bf16.msra.mxu0 0
        %1473 = vmatprep.subr.bf16.mxu0 0
        %1474 = vmatpush1.bf16.msra.mxu0 0
        %1475 = vmatprep.subr.bf16.mxu0 0
        %1476 = vmatpush1.bf16.msra.mxu0 0
        %1477 = vmatprep.subr.bf16.mxu0 0
        %1478 = vmatpush1.bf16.msra.mxu0 0
        %1479 = vmatprep.subr.bf16.mxu0 0
        %1480 = vmatpush1.bf16.msra.mxu0 0
        %1481 = vmatprep.subr.bf16.mxu0 0
        %1482 = vmatpush1.bf16.msra.mxu0 0
        %1483 = vmatprep.subr.bf16.mxu0 0
        %1484 = vmatpush1.bf16.msra.mxu0 0
        %1485 = vmatprep.subr.bf16.mxu0 0
        %1486 = vmatpush1.bf16.msra.mxu0 0
        %1487 = vmatprep.subr.bf16.mxu0 0
        %1488 = vmatpush1.bf16.msra.mxu0 0
        %1489 = vmatprep.subr.bf16.mxu0 0
        %1490 = vmatpush1.bf16.msra.mxu0 0
        %1491 = vmatprep.subr.bf16.mxu0 0
        %1492 = vmatpush1.bf16.msra.mxu0 0
        %1493 = vmatprep.subr.bf16.mxu0 0
        %1494 = vmatpush1.bf16.msra.mxu0 0
        %1495 = vmatprep.mubr.bf16.mxu0 0
        %1496 = vmatmul.mubr.bf16.gmra.mrb[0].mxu0 %v1461
        %v1497 = vpop.f32.mrb[0].mxu0
        %v1498 = vadd.f32 %v1448, %v1497
        %v1499 = vpop.f32.mrb[0].mxu0
        %v1500 = vpop.f32.mrb[0].mxu0
        %v1501 = vadd.f32 %v1451, %v1500
        %v1502 = vpop.f32.mrb[0].mxu0
        %1503 = vdwg.mxu0
        %v1506 = vunpack.c.l.b16 %v1381
        %v1507 = vunpack.c.l.b16 %v1382
        %v1508 = vpack.c.b16 %v1507, %v1506
        %v1511 = vsel %vm1410, %v1403, 0
        %1513 = vmatprep.subr.bf16.mxu0 0
        %1514 = vmatpush1.bf16.msra.mxu0 %v1508
        %1515 = vmatprep.subr.bf16.mxu0 0
        %1516 = vmatpush1.bf16.msra.mxu0 0
        %1517 = vmatprep.subr.bf16.mxu0 0
        %1518 = vmatpush1.bf16.msra.mxu0 0
        %1519 = vmatprep.subr.bf16.mxu0 0
        %1520 = vmatpush1.bf16.msra.mxu0 0
        %1521 = vmatprep.subr.bf16.mxu0 0
        %1522 = vmatpush1.bf16.msra.mxu0 0
        %1523 = vmatprep.subr.bf16.mxu0 0
        %1524 = vmatpush1.bf16.msra.mxu0 0
        %1525 = vmatprep.subr.bf16.mxu0 0
        %1526 = vmatpush1.bf16.msra.mxu0 0
        %1527 = vmatprep.subr.bf16.mxu0 0
        %1528 = vmatpush1.bf16.msra.mxu0 0
        %1529 = vmatprep.subr.bf16.mxu0 0
        %1530 = vmatpush1.bf16.msra.mxu0 0
        %1531 = vmatprep.subr.bf16.mxu0 0
        %1532 = vmatpush1.bf16.msra.mxu0 0
        %1533 = vmatprep.subr.bf16.mxu0 0
        %1534 = vmatpush1.bf16.msra.mxu0 0
        %1535 = vmatprep.subr.bf16.mxu0 0
        %1536 = vmatpush1.bf16.msra.mxu0 0
        %1537 = vmatprep.subr.bf16.mxu0 0
        %1538 = vmatpush1.bf16.msra.mxu0 0
        %1539 = vmatprep.subr.bf16.mxu0 0
        %1540 = vmatpush1.bf16.msra.mxu0 0
        %1541 = vmatprep.subr.bf16.mxu0 0
        %1542 = vmatpush1.bf16.msra.mxu0 0
        %1543 = vmatprep.subr.bf16.mxu0 0
        %1544 = vmatpush1.bf16.msra.mxu0 0
        %1545 = vmatprep.mubr.bf16.mxu0 0
        %1546 = vmatmul.mubr.bf16.gmra.mrb[0].mxu0 %v1511
        %v1547 = vpop.f32.mrb[0].mxu0
        %v1548 = vadd.f32 0.0, %v1547
        %v1549 = vpop.f32.mrb[0].mxu0
        %v1550 = vpop.f32.mrb[0].mxu0
        %v1551 = vadd.f32 0.0, %v1550
        %v1552 = vpop.f32.mrb[0].mxu0
        %1553 = vdwg.mxu0
        %v1554 = vadd.f32 %v1498, %v1548
        %v1555 = vadd.f32 %v1501, %v1551
        %v1557 = vlaneseq
        %v1558 = vshrl.u32 %v1557, 7
        %v1559 = vsub.s32 0, %v1558
        %v1560 = vrot.slane %v1383, %v1559
        %v1562 = vmul.f32 %v1554, %v1560
        %v1563 = vmul.f32 %v1555, %v1560
        %v1565 = vlaneseq
        %v1566 = vshrl.u32 %v1565, 7
        %v1567 = vsub.s32 0, %v1566
        %v1568 = vrot.slane %v1384, %v1567
        %v1570 = vadd.f32 %v1562, %v1568
        %v1571 = vadd.f32 %v1563, %v1568
        %v1572 = vmax.f32 %v1570, 0.0
        %v1573 = vmax.f32 %v1571, 0.0
        %v1574 = vpack.c.bf16 %v1573, %v1572
        %v1575 = vld [vmem:[#allocation15] sm:$0xf]
        %v1576 = vld [vmem:[#allocation15 + $0x4] sm:$0xf]
        %v1577 = vld [vmem:[#allocation15 + $0x8] sm:$0xf]
        %v1578 = vld [vmem:[#allocation15 + $0xc] sm:$0xf]
        %v1579 = vld [vmem:[#allocation15 + $0x10] sm:$0xf]
        %v1580 = vld [vmem:[#allocation15 + $0x14] sm:$0xf]
        %v1581 = vld [vmem:[#allocation15 + $0x18] sm:$0xf]
        %v1582 = vld [vmem:[#allocation15 + $0x1c] sm:$0xf]
        %v1583 = vld [vmem:[#allocation15 + $0x20] sm:$0xf]
        %v1584 = vld [vmem:[#allocation15 + $0x24] sm:$0xf]
        %v1585 = vld [vmem:[#allocation15 + $0x28] sm:$0xf]
        %v1586 = vld [vmem:[#allocation15 + $0x2c] sm:$0xf]
        %v1587 = vld [vmem:[#allocation15 + $0x30] sm:$0xf]
        %v1588 = vld [vmem:[#allocation15 + $0x34] sm:$0xf]
        %v1589 = vld [vmem:[#allocation15 + $0x38] sm:$0xf]
        %v1590 = vld [vmem:[#allocation15 + $0x3c] sm:$0xf]
        %v1591 = vld [vmem:[#allocation16] sm:$0xf]
        %v1592 = vld [vmem:[#allocation16 + $0x4] sm:$0xf]
        %v1593 = vld [vmem:[#allocation16 + $0x8] sm:$0xf]
        %v1594 = vld [vmem:[#allocation16 + $0xc] sm:$0xf]
        %v1595 = vld [vmem:[#allocation16 + $0x10] sm:$0xf]
        %v1596 = vld [vmem:[#allocation16 + $0x14] sm:$0xf]
        %v1597 = vld [vmem:[#allocation16 + $0x18] sm:$0xf]
        %v1598 = vld [vmem:[#allocation16 + $0x1c] sm:$0xf]
        %v1599 = vld [vmem:[#allocation16 + $0x20] sm:$0xf]
        %v1600 = vld [vmem:[#allocation16 + $0x24] sm:$0xf]
        %v1601 = vld [vmem:[#allocation16 + $0x28] sm:$0xf]
        %v1602 = vld [vmem:[#allocation16 + $0x2c] sm:$0xf]
        %v1603 = vld [vmem:[#allocation16 + $0x30] sm:$0xf]
        %v1604 = vld [vmem:[#allocation16 + $0x34] sm:$0xf]
        %v1605 = vld [vmem:[#allocation16 + $0x38] sm:$0xf]
        %v1606 = vld [vmem:[#allocation16 + $0x3c] sm:$0xf]
        %v1607 = vld [vmem:[#allocation18] sm:$0xf]
        %v1608 = vld [vmem:[#allocation18 + $0x4] sm:$0xf]
        %v1609 = vld [vmem:[#allocation18 + $0x8] sm:$0xf]
        %v1610 = vld [vmem:[#allocation18 + $0xc] sm:$0xf]
        %v1611 = vld [vmem:[#allocation18 + $0x10] sm:$0xf]
        %v1612 = vld [vmem:[#allocation18 + $0x14] sm:$0xf]
        %v1613 = vld [vmem:[#allocation18 + $0x18] sm:$0xf]
        %v1614 = vld [vmem:[#allocation18 + $0x1c] sm:$0xf]
        %v1615 = vld [vmem:[#allocation18 + $0x20] sm:$0xf]
        %v1616 = vld [vmem:[#allocation18 + $0x24] sm:$0xf]
        %v1617 = vld [vmem:[#allocation18 + $0x28] sm:$0xf]
        %v1618 = vld [vmem:[#allocation18 + $0x2c] sm:$0xf]
        %v1619 = vld [vmem:[#allocation18 + $0x30] sm:$0xf]
        %v1620 = vld [vmem:[#allocation18 + $0x34] sm:$0xf]
        %v1621 = vld [vmem:[#allocation18 + $0x38] sm:$0xf]
        %v1622 = vld [vmem:[#allocation18 + $0x3c] sm:$0xf]
        %v1623 = vld [vmem:[#allocation19] sm:$0x1]
        %v1624 = vld [vmem:[#allocation21] sm:$0x1]
        %v1626 = vshrl.u32 %v1574, 16
        %v1628 = vrot.slane %v1626, 7
        %v1629 = vshll.u32 %v1574, 16
        %v1631 = vor.u32 %v1628, %v1629
        %v1633 = vsel %vm1395, 0, %v1631
        %v1634 = vrot.slane %v1629, 1
        %v1635 = vor.u32 %v1626, %v1634
        %v1637 = vsel %vm1402, %v1635, 0
        %v1654 = vunpack.c.l.b16 %v1591
        %v1655 = vunpack.c.l.b16 %v1592
        %v1656 = vunpack.c.l.b16 %v1593
        %v1657 = vunpack.c.l.b16 %v1594
        %v1658 = vunpack.c.l.b16 %v1595
        %v1659 = vunpack.c.l.b16 %v1596
        %v1660 = vunpack.c.l.b16 %v1597
        %v1661 = vunpack.c.l.b16 %v1598
        %v1662 = vunpack.c.l.b16 %v1599
        %v1663 = vunpack.c.l.b16 %v1600
        %v1664 = vunpack.c.l.b16 %v1601
        %v1665 = vunpack.c.l.b16 %v1602
        %v1666 = vunpack.c.l.b16 %v1603
        %v1667 = vunpack.c.l.b16 %v1604
        %v1668 = vunpack.c.l.b16 %v1605
        %v1669 = vunpack.c.l.b16 %v1606
        %v1670 = vpack.c.b16 %v1655, %v1654
        %v1671 = vpack.c.b16 %v1657, %v1656
        %v1672 = vpack.c.b16 %v1659, %v1658
        %v1673 = vpack.c.b16 %v1661, %v1660
        %v1674 = vpack.c.b16 %v1663, %v1662
        %v1675 = vpack.c.b16 %v1665, %v1664
        %v1676 = vpack.c.b16 %v1667, %v1666
        %v1677 = vpack.c.b16 %v1669, %v1668
        %1686 = vmatprep.subr.bf16.mxu0 0
        %1687 = vmatpush1.bf16.msra.mxu0 %v1670
        %1688 = vmatprep.subr.bf16.mxu0 0
        %1689 = vmatpush1.bf16.msra.mxu0 %v1671
        %1690 = vmatprep.subr.bf16.mxu0 0
        %1691 = vmatpush1.bf16.msra.mxu0 %v1672
        %1692 = vmatprep.subr.bf16.mxu0 0
        %1693 = vmatpush1.bf16.msra.mxu0 %v1673
        %1694 = vmatprep.subr.bf16.mxu0 0
        %1695 = vmatpush1.bf16.msra.mxu0 %v1674
        %1696 = vmatprep.subr.bf16.mxu0 0
        %1697 = vmatpush1.bf16.msra.mxu0 %v1675
        %1698 = vmatprep.subr.bf16.mxu0 0
        %1699 = vmatpush1.bf16.msra.mxu0 %v1676
        %1700 = vmatprep.subr.bf16.mxu0 0
        %1701 = vmatpush1.bf16.msra.mxu0 %v1677
        %1702 = vmatprep.subr.bf16.mxu0 0
        %1703 = vmatpush1.bf16.msra.mxu0 0
        %1704 = vmatprep.subr.bf16.mxu0 0
        %1705 = vmatpush1.bf16.msra.mxu0 0
        %1706 = vmatprep.subr.bf16.mxu0 0
        %1707 = vmatpush1.bf16.msra.mxu0 0
        %1708 = vmatprep.subr.bf16.mxu0 0
        %1709 = vmatpush1.bf16.msra.mxu0 0
        %1710 = vmatprep.subr.bf16.mxu0 0
        %1711 = vmatpush1.bf16.msra.mxu0 0
        %1712 = vmatprep.subr.bf16.mxu0 0
        %1713 = vmatpush1.bf16.msra.mxu0 0
        %1714 = vmatprep.subr.bf16.mxu0 0
        %1715 = vmatpush1.bf16.msra.mxu0 0
        %1716 = vmatprep.subr.bf16.mxu0 0
        %1717 = vmatpush1.bf16.msra.mxu0 0
        %1718 = vmatprep.mubr.bf16.mxu0 0
        %1719 = vmatmul.mubr.bf16.gmra.mrb[0].mxu0 %v1574
        %v1720 = vpop.f32.mrb[0].mxu0
        %v1721 = vadd.f32 0.0, %v1720
        %v1722 = vpop.f32.mrb[0].mxu0
        %v1723 = vpop.f32.mrb[0].mxu0
        %v1724 = vadd.f32 0.0, %v1723
        %v1725 = vpop.f32.mrb[0].mxu0
        %1726 = vdwg.mxu0
        %v1743 = vunpack.c.l.b16 %v1575
        %v1744 = vunpack.c.l.b16 %v1576
        %v1745 = vunpack.c.l.b16 %v1577
        %v1746 = vunpack.c.l.b16 %v1578
        %v1747 = vunpack.c.l.b16 %v1579
        %v1748 = vunpack.c.l.b16 %v1580
        %v1749 = vunpack.c.l.b16 %v1581
        %v1750 = vunpack.c.l.b16 %v1582
        %v1751 = vunpack.c.l.b16 %v1583
        %v1752 = vunpack.c.l.b16 %v1584
        %v1753 = vunpack.c.l.b16 %v1585
        %v1754 = vunpack.c.l.b16 %v1586
        %v1755 = vunpack.c.l.b16 %v1587
        %v1756 = vunpack.c.l.b16 %v1588
        %v1757 = vunpack.c.l.b16 %v1589
        %v1758 = vunpack.c.l.b16 %v1590
        %v1759 = vpack.c.b16 %v1744, %v1743
        %v1760 = vpack.c.b16 %v1746, %v1745
        %v1761 = vpack.c.b16 %v1748, %v1747
        %v1762 = vpack.c.b16 %v1750, %v1749
        %v1763 = vpack.c.b16 %v1752, %v1751
        %v1764 = vpack.c.b16 %v1754, %v1753
        %v1765 = vpack.c.b16 %v1756, %v1755
        %v1766 = vpack.c.b16 %v1758, %v1757
        %1775 = vmatprep.subr.bf16.mxu0 0
        %1776 = vmatpush1.bf16.msra.mxu0 %v1759
        %1777 = vmatprep.subr.bf16.mxu0 0
        %1778 = vmatpush1.bf16.msra.mxu0 %v1760
        %1779 = vmatprep.subr.bf16.mxu0 0
        %1780 = vmatpush1.bf16.msra.mxu0 %v1761
        %1781 = vmatprep.subr.bf16.mxu0 0
        %1782 = vmatpush1.bf16.msra.mxu0 %v1762
        %1783 = vmatprep.subr.bf16.mxu0 0
        %1784 = vmatpush1.bf16.msra.mxu0 %v1763
        %1785 = vmatprep.subr.bf16.mxu0 0
        %1786 = vmatpush1.bf16.msra.mxu0 %v1764
        %1787 = vmatprep.subr.bf16.mxu0 0
        %1788 = vmatpush1.bf16.msra.mxu0 %v1765
        %1789 = vmatprep.subr.bf16.mxu0 0
        %1790 = vmatpush1.bf16.msra.mxu0 %v1766
        %1791 = vmatprep.subr.bf16.mxu0 0
        %1792 = vmatpush1.bf16.msra.mxu0 0
        %1793 = vmatprep.subr.bf16.mxu0 0
        %1794 = vmatpush1.bf16.msra.mxu0 0
        %1795 = vmatprep.subr.bf16.mxu0 0
        %1796 = vmatpush1.bf16.msra.mxu0 0
        %1797 = vmatprep.subr.bf16.mxu0 0
        %1798 = vmatpush1.bf16.msra.mxu0 0
        %1799 = vmatprep.subr.bf16.mxu0 0
        %1800 = vmatpush1.bf16.msra.mxu0 0
        %1801 = vmatprep.subr.bf16.mxu0 0
        %1802 = vmatpush1.bf16.msra.mxu0 0
        %1803 = vmatprep.subr.bf16.mxu0 0
        %1804 = vmatpush1.bf16.msra.mxu0 0
        %1805 = vmatprep.subr.bf16.mxu0 0
        %1806 = vmatpush1.bf16.msra.mxu0 0
        %1807 = vmatprep.mubr.bf16.mxu0 0
        %1808 = vmatmul.mubr.bf16.gmra.mrb[0].mxu0 %v1633
        %v1809 = vpop.f32.mrb[0].mxu0
        %v1810 = vadd.f32 %v1721, %v1809
        %v1811 = vpop.f32.mrb[0].mxu0
        %v1812 = vpop.f32.mrb[0].mxu0
        %v1813 = vadd.f32 %v1724, %v1812
        %v1814 = vpop.f32.mrb[0].mxu0
        %1815 = vdwg.mxu0
        %v1832 = vunpack.c.l.b16 %v1607
        %v1833 = vunpack.c.l.b16 %v1608
        %v1834 = vunpack.c.l.b16 %v1609
        %v1835 = vunpack.c.l.b16 %v1610
        %v1836 = vunpack.c.l.b16 %v1611
        %v1837 = vunpack.c.l.b16 %v1612
        %v1838 = vunpack.c.l.b16 %v1613
        %v1839 = vunpack.c.l.b16 %v1614
        %v1840 = vunpack.c.l.b16 %v1615
        %v1841 = vunpack.c.l.b16 %v1616
        %v1842 = vunpack.c.l.b16 %v1617
        %v1843 = vunpack.c.l.b16 %v1618
        %v1844 = vunpack.c.l.b16 %v1619
        %v1845 = vunpack.c.l.b16 %v1620
        %v1846 = vunpack.c.l.b16 %v1621
        %v1847 = vunpack.c.l.b16 %v1622
        %v1848 = vpack.c.b16 %v1833, %v1832
        %v1849 = vpack.c.b16 %v1835, %v1834
        %v1850 = vpack.c.b16 %v1837, %v1836
        %v1851 = vpack.c.b16 %v1839, %v1838
        %v1852 = vpack.c.b16 %v1841, %v1840
        %v1853 = vpack.c.b16 %v1843, %v1842
        %v1854 = vpack.c.b16 %v1845, %v1844
        %v1855 = vpack.c.b16 %v1847, %v1846
        %1864 = vmatprep.subr.bf16.mxu0 0
        %1865 = vmatpush1.bf16.msra.mxu0 %v1848
        %1866 = vmatprep.subr.bf16.mxu0 0
        %1867 = vmatpush1.bf16.msra.mxu0 %v1849
        %1868 = vmatprep.subr.bf16.mxu0 0
        %1869 = vmatpush1.bf16.msra.mxu0 %v1850
        %1870 = vmatprep.subr.bf16.mxu0 0
        %1871 = vmatpush1.bf16.msra.mxu0 %v1851
        %1872 = vmatprep.subr.bf16.mxu0 0
        %1873 = vmatpush1.bf16.msra.mxu0 %v1852
        %1874 = vmatprep.subr.bf16.mxu0 0
        %1875 = vmatpush1.bf16.msra.mxu0 %v1853
        %1876 = vmatprep.subr.bf16.mxu0 0
        %1877 = vmatpush1.bf16.msra.mxu0 %v1854
        %1878 = vmatprep.subr.bf16.mxu0 0
        %1879 = vmatpush1.bf16.msra.mxu0 %v1855
        %1880 = vmatprep.subr.bf16.mxu0 0
        %1881 = vmatpush1.bf16.msra.mxu0 0
        %1882 = vmatprep.subr.bf16.mxu0 0
        %1883 = vmatpush1.bf16.msra.mxu0 0
        %1884 = vmatprep.subr.bf16.mxu0 0
        %1885 = vmatpush1.bf16.msra.mxu0 0
        %1886 = vmatprep.subr.bf16.mxu0 0
        %1887 = vmatpush1.bf16.msra.mxu0 0
        %1888 = vmatprep.subr.bf16.mxu0 0
        %1889 = vmatpush1.bf16.msra.mxu0 0
        %1890 = vmatprep.subr.bf16.mxu0 0
        %1891 = vmatpush1.bf16.msra.mxu0 0
        %1892 = vmatprep.subr.bf16.mxu0 0
        %1893 = vmatpush1.bf16.msra.mxu0 0
        %1894 = vmatprep.subr.bf16.mxu0 0
        %1895 = vmatpush1.bf16.msra.mxu0 0
        %1896 = vmatprep.mubr.bf16.mxu0 0
        %1897 = vmatmul.mubr.bf16.gmra.mrb[0].mxu0 %v1637
        %v1898 = vpop.f32.mrb[0].mxu0
        %v1899 = vadd.f32 0.0, %v1898
        %v1900 = vpop.f32.mrb[0].mxu0
        %v1901 = vpop.f32.mrb[0].mxu0
        %v1902 = vadd.f32 0.0, %v1901
        %v1903 = vpop.f32.mrb[0].mxu0
        %1904 = vdwg.mxu0
        %v1905 = vadd.f32 %v1810, %v1899
        %v1906 = vadd.f32 %v1813, %v1902
        %v1908 = vlaneseq
        %v1909 = vshrl.u32 %v1908, 7
        %v1910 = vsub.s32 0, %v1909
        %v1911 = vrot.slane %v1623, %v1910
        %v1913 = vmul.f32 %v1905, %v1911
        %v1914 = vmul.f32 %v1906, %v1911
        %v1916 = vlaneseq
        %v1917 = vshrl.u32 %v1916, 7
        %v1918 = vsub.s32 0, %v1917
        %v1919 = vrot.slane %v1624, %v1918
        %v1921 = vadd.f32 %v1913, %v1919
        %v1922 = vadd.f32 %v1914, %v1919
        %v1923 = vmax.f32 %v1921, 0.0
        %v1924 = vmax.f32 %v1922, 0.0
        %1925 = vst [vmem:[%s1358] sm:$0xff] %v1923
        %1926 = vst [vmem:[%s1358 + $0x8] sm:$0xff] %v1924
        %1927 = vst [vmem:[#allocation2] sm:$0xff] %v1923
        %1928 = vst [vmem:[#allocation2 + $0x8] sm:$0xff] %v1924
        %v1929 = vld [vmem:[#allocation2] ss:$2 sm:$0xff]
        %s1930 = scalar_lea.vmem [#allocation2], 1
        %v1931 = vld [vmem:[%s1930] ss:$2 sm:$0xff]
        %v1932 = vmax.f32 %v1929, %v1931
        %1934 = vrot.lane.b32.xlu0 %v1932, 120
        %v1935 = vpop.permute.xlu0 %1934
        %v1937 = vmax.f32 %v1932, %v1935
        %v1938 = vpack.c.bf16 %v1937, %v1937
        %v1939 = vld [vmem:[#allocation22] sm:$0xf]
        %v1940 = vld [vmem:[#allocation22 + $0x4] sm:$0xf]
        %v1941 = vld [vmem:[#allocation22 + $0x8] sm:$0xf]
        %v1942 = vld [vmem:[#allocation22 + $0xc] sm:$0xf]
        %v1943 = vld [vmem:[#allocation22 + $0x10] sm:$0xf]
        %v1944 = vld [vmem:[#allocation22 + $0x14] sm:$0xf]
        %v1945 = vld [vmem:[#allocation22 + $0x18] sm:$0xf]
        %v1946 = vld [vmem:[#allocation22 + $0x1c] sm:$0xf]
        %v1947 = vld [vmem:[#allocation22 + $0x20] sm:$0xf]
        %v1948 = vld [vmem:[#allocation22 + $0x24] sm:$0xf]
        %v1949 = vld [vmem:[#allocation22 + $0x28] sm:$0xf]
        %v1950 = vld [vmem:[#allocation22 + $0x2c] sm:$0xf]
        %v1951 = vld [vmem:[#allocation22 + $0x30] sm:$0xf]
        %v1952 = vld [vmem:[#allocation22 + $0x34] sm:$0xf]
        %v1953 = vld [vmem:[#allocation22 + $0x38] sm:$0xf]
        %v1954 = vld [vmem:[#allocation22 + $0x3c] sm:$0xf]
        %v1955 = vld [vmem:[#allocation24] sm:$0xf]
        %v1956 = vld [vmem:[#allocation24 + $0x4] sm:$0xf]
        %v1957 = vld [vmem:[#allocation24 + $0x8] sm:$0xf]
        %v1958 = vld [vmem:[#allocation24 + $0xc] sm:$0xf]
        %v1959 = vld [vmem:[#allocation24 + $0x10] sm:$0xf]
        %v1960 = vld [vmem:[#allocation24 + $0x14] sm:$0xf]
        %v1961 = vld [vmem:[#allocation24 + $0x18] sm:$0xf]
        %v1962 = vld [vmem:[#allocation24 + $0x1c] sm:$0xf]
        %v1963 = vld [vmem:[#allocation24 + $0x20] sm:$0xf]
        %v1964 = vld [vmem:[#allocation24 + $0x24] sm:$0xf]
        %v1965 = vld [vmem:[#allocation24 + $0x28] sm:$0xf]
        %v1966 = vld [vmem:[#allocation24 + $0x2c] sm:$0xf]
        %v1967 = vld [vmem:[#allocation24 + $0x30] sm:$0xf]
        %v1968 = vld [vmem:[#allocation24 + $0x34] sm:$0xf]
        %v1969 = vld [vmem:[#allocation24 + $0x38] sm:$0xf]
        %v1970 = vld [vmem:[#allocation24 + $0x3c] sm:$0xf]
        %v1971 = vld [vmem:[#allocation25] sm:$0xf]
        %v1972 = vld [vmem:[#allocation25 + $0x4] sm:$0xf]
        %v1973 = vld [vmem:[#allocation25 + $0x8] sm:$0xf]
        %v1974 = vld [vmem:[#allocation25 + $0xc] sm:$0xf]
        %v1975 = vld [vmem:[#allocation25 + $0x10] sm:$0xf]
        %v1976 = vld [vmem:[#allocation25 + $0x14] sm:$0xf]
        %v1977 = vld [vmem:[#allocation25 + $0x18] sm:$0xf]
        %v1978 = vld [vmem:[#allocation25 + $0x1c] sm:$0xf]
        %v1979 = vld [vmem:[#allocation25 + $0x20] sm:$0xf]
        %v1980 = vld [vmem:[#allocation25 + $0x24] sm:$0xf]
        %v1981 = vld [vmem:[#allocation25 + $0x28] sm:$0xf]
        %v1982 = vld [vmem:[#allocation25 + $0x2c] sm:$0xf]
        %v1983 = vld [vmem:[#allocation25 + $0x30] sm:$0xf]
        %v1984 = vld [vmem:[#allocation25 + $0x34] sm:$0xf]
        %v1985 = vld [vmem:[#allocation25 + $0x38] sm:$0xf]
        %v1986 = vld [vmem:[#allocation25 + $0x3c] sm:$0xf]
        %v1987 = vld [vmem:[#allocation27] sm:$0x1]
        %v1988 = vld [vmem:[#allocation28] sm:$0x1]
        %v1990 = vshrl.u32 %v1938, 16
        %v1992 = vrot.slane %v1990, 7
        %v1993 = vshll.u32 %v1938, 16
        %v1995 = vor.u32 %v1992, %v1993
        %v1997 = vsel %vm1395, 0, %v1995
        %v1998 = vrot.slane %v1993, 1
        %v1999 = vor.u32 %v1990, %v1998
        %vm2001 = vcmask 1043456
        %vm2002 = vsmask.f32 3328
        %vm2003 = vmand %vm2001, %vm2002
        %v2004 = vsel %vm2003, %v1999, 0
        %v2021 = vunpack.c.l.b16 %v1955
        %v2022 = vunpack.c.l.b16 %v1956
        %v2023 = vunpack.c.l.b16 %v1957
        %v2024 = vunpack.c.l.b16 %v1958
        %v2025 = vunpack.c.l.b16 %v1959
        %v2026 = vunpack.c.l.b16 %v1960
        %v2027 = vunpack.c.l.b16 %v1961
        %v2028 = vunpack.c.l.b16 %v1962
        %v2029 = vunpack.c.l.b16 %v1963
        %v2030 = vunpack.c.l.b16 %v1964
        %v2031 = vunpack.c.l.b16 %v1965
        %v2032 = vunpack.c.l.b16 %v1966
        %v2033 = vunpack.c.l.b16 %v1967
        %v2034 = vunpack.c.l.b16 %v1968
        %v2035 = vunpack.c.l.b16 %v1969
        %v2036 = vunpack.c.l.b16 %v1970
        %v2037 = vpack.c.b16 %v2022, %v2021
        %v2038 = vpack.c.b16 %v2024, %v2023
        %v2039 = vpack.c.b16 %v2026, %v2025
        %v2040 = vpack.c.b16 %v2028, %v2027
        %v2041 = vpack.c.b16 %v2030, %v2029
        %v2042 = vpack.c.b16 %v2032, %v2031
        %v2043 = vpack.c.b16 %v2034, %v2033
        %v2044 = vpack.c.b16 %v2036, %v2035
        %2053 = vmatprep.subr.bf16.mxu0 0
        %2054 = vmatpush1.bf16.msra.mxu0 %v2037
        %2055 = vmatprep.subr.bf16.mxu0 0
        %2056 = vmatpush1.bf16.msra.mxu0 %v2038
        %2057 = vmatprep.subr.bf16.mxu0 0
        %2058 = vmatpush1.bf16.msra.mxu0 %v2039
        %2059 = vmatprep.subr.bf16.mxu0 0
        %2060 = vmatpush1.bf16.msra.mxu0 %v2040
        %2061 = vmatprep.subr.bf16.mxu0 0
        %2062 = vmatpush1.bf16.msra.mxu0 %v2041
        %2063 = vmatprep.subr.bf16.mxu0 0
        %2064 = vmatpush1.bf16.msra.mxu0 %v2042
        %2065 = vmatprep.subr.bf16.mxu0 0
        %2066 = vmatpush1.bf16.msra.mxu0 %v2043
        %2067 = vmatprep.subr.bf16.mxu0 0
        %2068 = vmatpush1.bf16.msra.mxu0 %v2044
        %2069 = vmatprep.subr.bf16.mxu0 0
        %2070 = vmatpush1.bf16.msra.mxu0 0
        %2071 = vmatprep.subr.bf16.mxu0 0
        %2072 = vmatpush1.bf16.msra.mxu0 0
        %2073 = vmatprep.subr.bf16.mxu0 0
        %2074 = vmatpush1.bf16.msra.mxu0 0
        %2075 = vmatprep.subr.bf16.mxu0 0
        %2076 = vmatpush1.bf16.msra.mxu0 0
        %2077 = vmatprep.subr.bf16.mxu0 0
        %2078 = vmatpush1.bf16.msra.mxu0 0
        %2079 = vmatprep.subr.bf16.mxu0 0
        %2080 = vmatpush1.bf16.msra.mxu0 0
        %2081 = vmatprep.subr.bf16.mxu0 0
        %2082 = vmatpush1.bf16.msra.mxu0 0
        %2083 = vmatprep.subr.bf16.mxu0 0
        %2084 = vmatpush1.bf16.msra.mxu0 0
        %2085 = vmatprep.mubr.bf16.mxu0 0
        %2086 = vmatmul.mubr.bf16.gmra.mrb[0].mxu0 %v1938
        %v2087 = vpop.f32.mrb[0].mxu0
        %v2088 = vadd.f32 0.0, %v2087
        %v2089 = vpop.f32.mrb[0].mxu0
        %v2090 = vpop.f32.mrb[0].mxu0
        %v2091 = vpop.f32.mrb[0].mxu0
        %2092 = vdwg.mxu0
        %v2109 = vunpack.c.l.b16 %v1939
        %v2110 = vunpack.c.l.b16 %v1940
        %v2111 = vunpack.c.l.b16 %v1941
        %v2112 = vunpack.c.l.b16 %v1942
        %v2113 = vunpack.c.l.b16 %v1943
        %v2114 = vunpack.c.l.b16 %v1944
        %v2115 = vunpack.c.l.b16 %v1945
        %v2116 = vunpack.c.l.b16 %v1946
        %v2117 = vunpack.c.l.b16 %v1947
        %v2118 = vunpack.c.l.b16 %v1948
        %v2119 = vunpack.c.l.b16 %v1949
        %v2120 = vunpack.c.l.b16 %v1950
        %v2121 = vunpack.c.l.b16 %v1951
        %v2122 = vunpack.c.l.b16 %v1952
        %v2123 = vunpack.c.l.b16 %v1953
        %v2124 = vunpack.c.l.b16 %v1954
        %v2125 = vpack.c.b16 %v2110, %v2109
        %v2126 = vpack.c.b16 %v2112, %v2111
        %v2127 = vpack.c.b16 %v2114, %v2113
        %v2128 = vpack.c.b16 %v2116, %v2115
        %v2129 = vpack.c.b16 %v2118, %v2117
        %v2130 = vpack.c.b16 %v2120, %v2119
        %v2131 = vpack.c.b16 %v2122, %v2121
        %v2132 = vpack.c.b16 %v2124, %v2123
        %2141 = vmatprep.subr.bf16.mxu0 0
        %2142 = vmatpush1.bf16.msra.mxu0 %v2125
        %2143 = vmatprep.subr.bf16.mxu0 0
        %2144 = vmatpush1.bf16.msra.mxu0 %v2126
        %2145 = vmatprep.subr.bf16.mxu0 0
        %2146 = vmatpush1.bf16.msra.mxu0 %v2127
        %2147 = vmatprep.subr.bf16.mxu0 0
        %2148 = vmatpush1.bf16.msra.mxu0 %v2128
        %2149 = vmatprep.subr.bf16.mxu0 0
        %2150 = vmatpush1.bf16.msra.mxu0 %v2129
        %2151 = vmatprep.subr.bf16.mxu0 0
        %2152 = vmatpush1.bf16.msra.mxu0 %v2130
        %2153 = vmatprep.subr.bf16.mxu0 0
        %2154 = vmatpush1.bf16.msra.mxu0 %v2131
        %2155 = vmatprep.subr.bf16.mxu0 0
        %2156 = vmatpush1.bf16.msra.mxu0 %v2132
        %2157 = vmatprep.subr.bf16.mxu0 0
        %2158 = vmatpush1.bf16.msra.mxu0 0
        %2159 = vmatprep.subr.bf16.mxu0 0
        %2160 = vmatpush1.bf16.msra.mxu0 0
        %2161 = vmatprep.subr.bf16.mxu0 0
        %2162 = vmatpush1.bf16.msra.mxu0 0
        %2163 = vmatprep.subr.bf16.mxu0 0
        %2164 = vmatpush1.bf16.msra.mxu0 0
        %2165 = vmatprep.subr.bf16.mxu0 0
        %2166 = vmatpush1.bf16.msra.mxu0 0
        %2167 = vmatprep.subr.bf16.mxu0 0
        %2168 = vmatpush1.bf16.msra.mxu0 0
        %2169 = vmatprep.subr.bf16.mxu0 0
        %2170 = vmatpush1.bf16.msra.mxu0 0
        %2171 = vmatprep.subr.bf16.mxu0 0
        %2172 = vmatpush1.bf16.msra.mxu0 0
        %2173 = vmatprep.mubr.bf16.mxu0 0
        %2174 = vmatmul.mubr.bf16.gmra.mrb[0].mxu0 %v1997
        %v2175 = vpop.f32.mrb[0].mxu0
        %v2176 = vadd.f32 %v2088, %v2175
        %v2177 = vpop.f32.mrb[0].mxu0
        %v2178 = vpop.f32.mrb[0].mxu0
        %v2179 = vpop.f32.mrb[0].mxu0
        %2180 = vdwg.mxu0
        %v2197 = vunpack.c.l.b16 %v1971
        %v2198 = vunpack.c.l.b16 %v1972
        %v2199 = vunpack.c.l.b16 %v1973
        %v2200 = vunpack.c.l.b16 %v1974
        %v2201 = vunpack.c.l.b16 %v1975
        %v2202 = vunpack.c.l.b16 %v1976
        %v2203 = vunpack.c.l.b16 %v1977
        %v2204 = vunpack.c.l.b16 %v1978
        %v2205 = vunpack.c.l.b16 %v1979
        %v2206 = vunpack.c.l.b16 %v1980
        %v2207 = vunpack.c.l.b16 %v1981
        %v2208 = vunpack.c.l.b16 %v1982
        %v2209 = vunpack.c.l.b16 %v1983
        %v2210 = vunpack.c.l.b16 %v1984
        %v2211 = vunpack.c.l.b16 %v1985
        %v2212 = vunpack.c.l.b16 %v1986
        %v2213 = vpack.c.b16 %v2198, %v2197
        %v2214 = vpack.c.b16 %v2200, %v2199
        %v2215 = vpack.c.b16 %v2202, %v2201
        %v2216 = vpack.c.b16 %v2204, %v2203
        %v2217 = vpack.c.b16 %v2206, %v2205
        %v2218 = vpack.c.b16 %v2208, %v2207
        %v2219 = vpack.c.b16 %v2210, %v2209
        %v2220 = vpack.c.b16 %v2212, %v2211
        %2229 = vmatprep.subr.bf16.mxu0 0
        %2230 = vmatpush1.bf16.msra.mxu0 %v2213
        %2231 = vmatprep.subr.bf16.mxu0 0
        %2232 = vmatpush1.bf16.msra.mxu0 %v2214
        %2233 = vmatprep.subr.bf16.mxu0 0
        %2234 = vmatpush1.bf16.msra.mxu0 %v2215
        %2235 = vmatprep.subr.bf16.mxu0 0
        %2236 = vmatpush1.bf16.msra.mxu0 %v2216
        %2237 = vmatprep.subr.bf16.mxu0 0
        %2238 = vmatpush1.bf16.msra.mxu0 %v2217
        %2239 = vmatprep.subr.bf16.mxu0 0
        %2240 = vmatpush1.bf16.msra.mxu0 %v2218
        %2241 = vmatprep.subr.bf16.mxu0 0
        %2242 = vmatpush1.bf16.msra.mxu0 %v2219
        %2243 = vmatprep.subr.bf16.mxu0 0
        %2244 = vmatpush1.bf16.msra.mxu0 %v2220
        %2245 = vmatprep.subr.bf16.mxu0 0
        %2246 = vmatpush1.bf16.msra.mxu0 0
        %2247 = vmatprep.subr.bf16.mxu0 0
        %2248 = vmatpush1.bf16.msra.mxu0 0
        %2249 = vmatprep.subr.bf16.mxu0 0
        %2250 = vmatpush1.bf16.msra.mxu0 0
        %2251 = vmatprep.subr.bf16.mxu0 0
        %2252 = vmatpush1.bf16.msra.mxu0 0
        %2253 = vmatprep.subr.bf16.mxu0 0
        %2254 = vmatpush1.bf16.msra.mxu0 0
        %2255 = vmatprep.subr.bf16.mxu0 0
        %2256 = vmatpush1.bf16.msra.mxu0 0
        %2257 = vmatprep.subr.bf16.mxu0 0
        %2258 = vmatpush1.bf16.msra.mxu0 0
        %2259 = vmatprep.subr.bf16.mxu0 0
        %2260 = vmatpush1.bf16.msra.mxu0 0
        %2261 = vmatprep.mubr.bf16.mxu0 0
        %2262 = vmatmul.mubr.bf16.gmra.mrb[0].mxu0 %v2004
        %v2263 = vpop.f32.mrb[0].mxu0
        %v2264 = vadd.f32 0.0, %v2263
        %v2265 = vpop.f32.mrb[0].mxu0
        %v2266 = vpop.f32.mrb[0].mxu0
        %v2267 = vpop.f32.mrb[0].mxu0
        %2268 = vdwg.mxu0
        %v2269 = vadd.f32 %v2176, %v2264
        %v2271 = vlaneseq
        %v2272 = vshrl.u32 %v2271, 7
        %v2273 = vsub.s32 0, %v2272
        %v2274 = vrot.slane %v1987, %v2273
        %v2276 = vmul.f32 %v2269, %v2274
        %v2278 = vlaneseq
        %v2279 = vshrl.u32 %v2278, 7
        %v2280 = vsub.s32 0, %v2279
        %v2281 = vrot.slane %v1988, %v2280
        %v2283 = vadd.f32 %v2276, %v2281
        %v2284 = vmax.f32 %v2283, 0.0
        %v2285 = vpack.c.bf16 %v2284, %v2284
        %v2286 = vld [vmem:[#allocation30] sm:$0xf]
        %v2287 = vld [vmem:[#allocation30 + $0x4] sm:$0xf]
        %v2288 = vld [vmem:[#allocation30 + $0x8] sm:$0xf]
        %v2289 = vld [vmem:[#allocation30 + $0xc] sm:$0xf]
        %v2290 = vld [vmem:[#allocation30 + $0x10] sm:$0xf]
        %v2291 = vld [vmem:[#allocation30 + $0x14] sm:$0xf]
        %v2292 = vld [vmem:[#allocation30 + $0x18] sm:$0xf]
        %v2293 = vld [vmem:[#allocation30 + $0x1c] sm:$0xf]
        %v2294 = vld [vmem:[#allocation30 + $0x20] sm:$0xf]
        %v2295 = vld [vmem:[#allocation30 + $0x24] sm:$0xf]
        %v2296 = vld [vmem:[#allocation30 + $0x28] sm:$0xf]
        %v2297 = vld [vmem:[#allocation30 + $0x2c] sm:$0xf]
        %v2298 = vld [vmem:[#allocation30 + $0x30] sm:$0xf]
        %v2299 = vld [vmem:[#allocation30 + $0x34] sm:$0xf]
        %v2300 = vld [vmem:[#allocation30 + $0x38] sm:$0xf]
        %v2301 = vld [vmem:[#allocation30 + $0x3c] sm:$0xf]
        %v2302 = vld [vmem:[%s35] sm:$0xf]
        %v2303 = vld [vmem:[%s35 + $0x4] sm:$0xf]
        %v2304 = vld [vmem:[%s35 + $0x8] sm:$0xf]
        %v2305 = vld [vmem:[%s35 + $0xc] sm:$0xf]
        %v2306 = vld [vmem:[%s35 + $0x10] sm:$0xf]
        %v2307 = vld [vmem:[%s35 + $0x14] sm:$0xf]
        %v2308 = vld [vmem:[%s35 + $0x18] sm:$0xf]
        %v2309 = vld [vmem:[%s35 + $0x1c] sm:$0xf]
        %v2310 = vld [vmem:[%s35 + $0x20] sm:$0xf]
        %v2311 = vld [vmem:[%s35 + $0x24] sm:$0xf]
        %v2312 = vld [vmem:[%s35 + $0x28] sm:$0xf]
        %v2313 = vld [vmem:[%s35 + $0x2c] sm:$0xf]
        %v2314 = vld [vmem:[%s35 + $0x30] sm:$0xf]
        %v2315 = vld [vmem:[%s35 + $0x34] sm:$0xf]
        %v2316 = vld [vmem:[%s35 + $0x38] sm:$0xf]
        %v2317 = vld [vmem:[%s35 + $0x3c] sm:$0xf]
        %v2318 = vld [vmem:[#allocation31] sm:$0xf]
        %v2319 = vld [vmem:[#allocation31 + $0x4] sm:$0xf]
        %v2320 = vld [vmem:[#allocation31 + $0x8] sm:$0xf]
        %v2321 = vld [vmem:[#allocation31 + $0xc] sm:$0xf]
        %v2322 = vld [vmem:[#allocation31 + $0x10] sm:$0xf]
        %v2323 = vld [vmem:[#allocation31 + $0x14] sm:$0xf]
        %v2324 = vld [vmem:[#allocation31 + $0x18] sm:$0xf]
        %v2325 = vld [vmem:[#allocation31 + $0x1c] sm:$0xf]
        %v2326 = vld [vmem:[#allocation31 + $0x20] sm:$0xf]
        %v2327 = vld [vmem:[#allocation31 + $0x24] sm:$0xf]
        %v2328 = vld [vmem:[#allocation31 + $0x28] sm:$0xf]
        %v2329 = vld [vmem:[#allocation31 + $0x2c] sm:$0xf]
        %v2330 = vld [vmem:[#allocation31 + $0x30] sm:$0xf]
        %v2331 = vld [vmem:[#allocation31 + $0x34] sm:$0xf]
        %v2332 = vld [vmem:[#allocation31 + $0x38] sm:$0xf]
        %v2333 = vld [vmem:[#allocation31 + $0x3c] sm:$0xf]
        %v2334 = vld [vmem:[%s39] sm:$0x1]
        %v2335 = vld [vmem:[%s41] sm:$0x1]
        %v2337 = vshrl.u32 %v2285, 16
        %v2339 = vrot.slane %v2337, 7
        %v2340 = vshll.u32 %v2285, 16
        %v2342 = vor.u32 %v2339, %v2340
        %v2344 = vsel %vm1395, 0, %v2342
        %v2345 = vrot.slane %v2340, 1
        %v2346 = vor.u32 %v2337, %v2345
        %v2348 = vsel %vm2003, %v2346, 0
        %v2365 = vunpack.c.l.b16 %v2302
        %v2366 = vunpack.c.l.b16 %v2303
        %v2367 = vunpack.c.l.b16 %v2304
        %v2368 = vunpack.c.l.b16 %v2305
        %v2369 = vunpack.c.l.b16 %v2306
        %v2370 = vunpack.c.l.b16 %v2307
        %v2371 = vunpack.c.l.b16 %v2308
        %v2372 = vunpack.c.l.b16 %v2309
        %v2373 = vunpack.c.l.b16 %v2310
        %v2374 = vunpack.c.l.b16 %v2311
        %v2375 = vunpack.c.l.b16 %v2312
        %v2376 = vunpack.c.l.b16 %v2313
        %v2377 = vunpack.c.l.b16 %v2314
        %v2378 = vunpack.c.l.b16 %v2315
        %v2379 = vunpack.c.l.b16 %v2316
        %v2380 = vunpack.c.l.b16 %v2317
        %v2381 = vpack.c.b16 %v2366, %v2365
        %v2382 = vpack.c.b16 %v2368, %v2367
        %v2383 = vpack.c.b16 %v2370, %v2369
        %v2384 = vpack.c.b16 %v2372, %v2371
        %v2385 = vpack.c.b16 %v2374, %v2373
        %v2386 = vpack.c.b16 %v2376, %v2375
        %v2387 = vpack.c.b16 %v2378, %v2377
        %v2388 = vpack.c.b16 %v2380, %v2379
        %2397 = vmatprep.subr.bf16.mxu0 0
        %2398 = vmatpush1.bf16.msra.mxu0 %v2381
        %2399 = vmatprep.subr.bf16.mxu0 0
        %2400 = vmatpush1.bf16.msra.mxu0 %v2382
        %2401 = vmatprep.subr.bf16.mxu0 0
        %2402 = vmatpush1.bf16.msra.mxu0 %v2383
        %2403 = vmatprep.subr.bf16.mxu0 0
        %2404 = vmatpush1.bf16.msra.mxu0 %v2384
        %2405 = vmatprep.subr.bf16.mxu0 0
        %2406 = vmatpush1.bf16.msra.mxu0 %v2385
        %2407 = vmatprep.subr.bf16.mxu0 0
        %2408 = vmatpush1.bf16.msra.mxu0 %v2386
        %2409 = vmatprep.subr.bf16.mxu0 0
        %2410 = vmatpush1.bf16.msra.mxu0 %v2387
        %2411 = vmatprep.subr.bf16.mxu0 0
        %2412 = vmatpush1.bf16.msra.mxu0 %v2388
        %2413 = vmatprep.subr.bf16.mxu0 0
        %2414 = vmatpush1.bf16.msra.mxu0 0
        %2415 = vmatprep.subr.bf16.mxu0 0
        %2416 = vmatpush1.bf16.msra.mxu0 0
        %2417 = vmatprep.subr.bf16.mxu0 0
        %2418 = vmatpush1.bf16.msra.mxu0 0
        %2419 = vmatprep.subr.bf16.mxu0 0
        %2420 = vmatpush1.bf16.msra.mxu0 0
        %2421 = vmatprep.subr.bf16.mxu0 0
        %2422 = vmatpush1.bf16.msra.mxu0 0
        %2423 = vmatprep.subr.bf16.mxu0 0
        %2424 = vmatpush1.bf16.msra.mxu0 0
        %2425 = vmatprep.subr.bf16.mxu0 0
        %2426 = vmatpush1.bf16.msra.mxu0 0
        %2427 = vmatprep.subr.bf16.mxu0 0
        %2428 = vmatpush1.bf16.msra.mxu0 0
        %2429 = vmatprep.mubr.bf16.mxu0 0
        %2430 = vmatmul.mubr.bf16.gmra.mrb[0].mxu0 %v2285
        %v2431 = vpop.f32.mrb[0].mxu0
        %v2432 = vadd.f32 0.0, %v2431
        %v2433 = vpop.f32.mrb[0].mxu0
        %v2434 = vpop.f32.mrb[0].mxu0
        %v2435 = vpop.f32.mrb[0].mxu0
        %2436 = vdwg.mxu0
        %v2453 = vunpack.c.l.b16 %v2286
        %v2454 = vunpack.c.l.b16 %v2287
        %v2455 = vunpack.c.l.b16 %v2288
        %v2456 = vunpack.c.l.b16 %v2289
        %v2457 = vunpack.c.l.b16 %v2290
        %v2458 = vunpack.c.l.b16 %v2291
        %v2459 = vunpack.c.l.b16 %v2292
        %v2460 = vunpack.c.l.b16 %v2293
        %v2461 = vunpack.c.l.b16 %v2294
        %v2462 = vunpack.c.l.b16 %v2295
        %v2463 = vunpack.c.l.b16 %v2296
        %v2464 = vunpack.c.l.b16 %v2297
        %v2465 = vunpack.c.l.b16 %v2298
        %v2466 = vunpack.c.l.b16 %v2299
        %v2467 = vunpack.c.l.b16 %v2300
        %v2468 = vunpack.c.l.b16 %v2301
        %v2469 = vpack.c.b16 %v2454, %v2453
        %v2470 = vpack.c.b16 %v2456, %v2455
        %v2471 = vpack.c.b16 %v2458, %v2457
        %v2472 = vpack.c.b16 %v2460, %v2459
        %v2473 = vpack.c.b16 %v2462, %v2461
        %v2474 = vpack.c.b16 %v2464, %v2463
        %v2475 = vpack.c.b16 %v2466, %v2465
        %v2476 = vpack.c.b16 %v2468, %v2467
        %2485 = vmatprep.subr.bf16.mxu0 0
        %2486 = vmatpush1.bf16.msra.mxu0 %v2469
        %2487 = vmatprep.subr.bf16.mxu0 0
        %2488 = vmatpush1.bf16.msra.mxu0 %v2470
        %2489 = vmatprep.subr.bf16.mxu0 0
        %2490 = vmatpush1.bf16.msra.mxu0 %v2471
        %2491 = vmatprep.subr.bf16.mxu0 0
        %2492 = vmatpush1.bf16.msra.mxu0 %v2472
        %2493 = vmatprep.subr.bf16.mxu0 0
        %2494 = vmatpush1.bf16.msra.mxu0 %v2473
        %2495 = vmatprep.subr.bf16.mxu0 0
        %2496 = vmatpush1.bf16.msra.mxu0 %v2474
        %2497 = vmatprep.subr.bf16.mxu0 0
        %2498 = vmatpush1.bf16.msra.mxu0 %v2475
        %2499 = vmatprep.subr.bf16.mxu0 0
        %2500 = vmatpush1.bf16.msra.mxu0 %v2476
        %2501 = vmatprep.subr.bf16.mxu0 0
        %2502 = vmatpush1.bf16.msra.mxu0 0
        %2503 = vmatprep.subr.bf16.mxu0 0
        %2504 = vmatpush1.bf16.msra.mxu0 0
        %2505 = vmatprep.subr.bf16.mxu0 0
        %2506 = vmatpush1.bf16.msra.mxu0 0
        %2507 = vmatprep.subr.bf16.mxu0 0
        %2508 = vmatpush1.bf16.msra.mxu0 0
        %2509 = vmatprep.subr.bf16.mxu0 0
        %2510 = vmatpush1.bf16.msra.mxu0 0
        %2511 = vmatprep.subr.bf16.mxu0 0
        %2512 = vmatpush1.bf16.msra.mxu0 0
        %2513 = vmatprep.subr.bf16.mxu0 0
        %2514 = vmatpush1.bf16.msra.mxu0 0
        %2515 = vmatprep.subr.bf16.mxu0 0
        %2516 = vmatpush1.bf16.msra.mxu0 0
        %2517 = vmatprep.mubr.bf16.mxu0 0
        %2518 = vmatmul.mubr.bf16.gmra.mrb[0].mxu0 %v2344
        %v2519 = vpop.f32.mrb[0].mxu0
        %v2520 = vadd.f32 %v2432, %v2519
        %v2521 = vpop.f32.mrb[0].mxu0
        %v2522 = vpop.f32.mrb[0].mxu0
        %v2523 = vpop.f32.mrb[0].mxu0
        %2524 = vdwg.mxu0
        %v2541 = vunpack.c.l.b16 %v2318
        %v2542 = vunpack.c.l.b16 %v2319
        %v2543 = vunpack.c.l.b16 %v2320
        %v2544 = vunpack.c.l.b16 %v2321
        %v2545 = vunpack.c.l.b16 %v2322
        %v2546 = vunpack.c.l.b16 %v2323
        %v2547 = vunpack.c.l.b16 %v2324
        %v2548 = vunpack.c.l.b16 %v2325
        %v2549 = vunpack.c.l.b16 %v2326
        %v2550 = vunpack.c.l.b16 %v2327
        %v2551 = vunpack.c.l.b16 %v2328
        %v2552 = vunpack.c.l.b16 %v2329
        %v2553 = vunpack.c.l.b16 %v2330
        %v2554 = vunpack.c.l.b16 %v2331
        %v2555 = vunpack.c.l.b16 %v2332
        %v2556 = vunpack.c.l.b16 %v2333
        %v2557 = vpack.c.b16 %v2542, %v2541
        %v2558 = vpack.c.b16 %v2544, %v2543
        %v2559 = vpack.c.b16 %v2546, %v2545
        %v2560 = vpack.c.b16 %v2548, %v2547
        %v2561 = vpack.c.b16 %v2550, %v2549
        %v2562 = vpack.c.b16 %v2552, %v2551
        %v2563 = vpack.c.b16 %v2554, %v2553
        %v2564 = vpack.c.b16 %v2556, %v2555
        %2573 = vmatprep.subr.bf16.mxu0 0
        %2574 = vmatpush1.bf16.msra.mxu0 %v2557
        %2575 = vmatprep.subr.bf16.mxu0 0
        %2576 = vmatpush1.bf16.msra.mxu0 %v2558
        %2577 = vmatprep.subr.bf16.mxu0 0
        %2578 = vmatpush1.bf16.msra.mxu0 %v2559
        %2579 = vmatprep.subr.bf16.mxu0 0
        %2580 = vmatpush1.bf16.msra.mxu0 %v2560
        %2581 = vmatprep.subr.bf16.mxu0 0
        %2582 = vmatpush1.bf16.msra.mxu0 %v2561
        %2583 = vmatprep.subr.bf16.mxu0 0
        %2584 = vmatpush1.bf16.msra.mxu0 %v2562
        %2585 = vmatprep.subr.bf16.mxu0 0
        %2586 = vmatpush1.bf16.msra.mxu0 %v2563
        %2587 = vmatprep.subr.bf16.mxu0 0
        %2588 = vmatpush1.bf16.msra.mxu0 %v2564
        %2589 = vmatprep.subr.bf16.mxu0 0
        %2590 = vmatpush1.bf16.msra.mxu0 0
        %2591 = vmatprep.subr.bf16.mxu0 0
        %2592 = vmatpush1.bf16.msra.mxu0 0
        %2593 = vmatprep.subr.bf16.mxu0 0
        %2594 = vmatpush1.bf16.msra.mxu0 0
        %2595 = vmatprep.subr.bf16.mxu0 0
        %2596 = vmatpush1.bf16.msra.mxu0 0
        %2597 = vmatprep.subr.bf16.mxu0 0
        %2598 = vmatpush1.bf16.msra.mxu0 0
        %2599 = vmatprep.subr.bf16.mxu0 0
        %2600 = vmatpush1.bf16.msra.mxu0 0
        %2601 = vmatprep.subr.bf16.mxu0 0
        %2602 = vmatpush1.bf16.msra.mxu0 0
        %2603 = vmatprep.subr.bf16.mxu0 0
        %2604 = vmatpush1.bf16.msra.mxu0 0
        %2605 = vmatprep.mubr.bf16.mxu0 0
        %2606 = vmatmul.mubr.bf16.gmra.mrb[0].mxu0 %v2348
        %v2607 = vpop.f32.mrb[0].mxu0
        %v2608 = vadd.f32 0.0, %v2607
        %v2609 = vpop.f32.mrb[0].mxu0
        %v2610 = vpop.f32.mrb[0].mxu0
        %v2611 = vpop.f32.mrb[0].mxu0
        %2612 = vdwg.mxu0
        %v2613 = vadd.f32 %v2520, %v2608
        %v2615 = vlaneseq
        %v2616 = vshrl.u32 %v2615, 7
        %v2617 = vsub.s32 0, %v2616
        %v2618 = vrot.slane %v2334, %v2617
        %v2620 = vmul.f32 %v2613, %v2618
        %v2622 = vlaneseq
        %v2623 = vshrl.u32 %v2622, 7
        %v2624 = vsub.s32 0, %v2623
        %v2625 = vrot.slane %v2335, %v2624
        %v2627 = vadd.f32 %v2620, %v2625
        %v2628 = vmax.f32 %v2627, 0.0
        %2629 = vst [vmem:[%s1365] sm:$0xff] %v2628
        %2630 = vst [vmem:[#allocation3] sm:$0xff] %v2628
        %v2631 = vld [vmem:[#allocation3] ss:$2 sm:$0xf]
        %s2632 = scalar_lea.vmem [#allocation3], 1
        %v2633 = vld [vmem:[%s2632] ss:$2 sm:$0xf]
        %v2634 = vmax.f32 %v2631, %v2633
        %2636 = vrot.lane.b32.xlu0 %v2634, 112
        %v2637 = vpop.permute.xlu0 %2636
        %v2639 = vmax.f32 %v2634, %v2637
        %v2640 = vpack.c.bf16 %v2639, %v2639
        %v2641 = vld [vmem:[#allocation33] sm:$0xf]
        %v2642 = vld [vmem:[#allocation33 + $0x4] sm:$0xf]
        %v2643 = vld [vmem:[#allocation33 + $0x8] sm:$0xf]
        %v2644 = vld [vmem:[#allocation33 + $0xc] sm:$0xf]
        %v2645 = vld [vmem:[#allocation33 + $0x10] sm:$0xf]
        %v2646 = vld [vmem:[#allocation33 + $0x14] sm:$0xf]
        %v2647 = vld [vmem:[#allocation33 + $0x18] sm:$0xf]
        %v2648 = vld [vmem:[#allocation33 + $0x1c] sm:$0xf]
        %v2649 = vld [vmem:[#allocation33 + $0x20] sm:$0xf]
        %v2650 = vld [vmem:[#allocation33 + $0x24] sm:$0xf]
        %v2651 = vld [vmem:[#allocation33 + $0x28] sm:$0xf]
        %v2652 = vld [vmem:[#allocation33 + $0x2c] sm:$0xf]
        %v2653 = vld [vmem:[#allocation33 + $0x30] sm:$0xf]
        %v2654 = vld [vmem:[#allocation33 + $0x34] sm:$0xf]
        %v2655 = vld [vmem:[#allocation33 + $0x38] sm:$0xf]
        %v2656 = vld [vmem:[#allocation33 + $0x3c] sm:$0xf]
        %v2657 = vld [vmem:[#allocation34] sm:$0xf]
        %v2658 = vld [vmem:[#allocation34 + $0x4] sm:$0xf]
        %v2659 = vld [vmem:[#allocation34 + $0x8] sm:$0xf]
        %v2660 = vld [vmem:[#allocation34 + $0xc] sm:$0xf]
        %v2661 = vld [vmem:[#allocation34 + $0x10] sm:$0xf]
        %v2662 = vld [vmem:[#allocation34 + $0x14] sm:$0xf]
        %v2663 = vld [vmem:[#allocation34 + $0x18] sm:$0xf]
        %v2664 = vld [vmem:[#allocation34 + $0x1c] sm:$0xf]
        %v2665 = vld [vmem:[#allocation34 + $0x20] sm:$0xf]
        %v2666 = vld [vmem:[#allocation34 + $0x24] sm:$0xf]
        %v2667 = vld [vmem:[#allocation34 + $0x28] sm:$0xf]
        %v2668 = vld [vmem:[#allocation34 + $0x2c] sm:$0xf]
        %v2669 = vld [vmem:[#allocation34 + $0x30] sm:$0xf]
        %v2670 = vld [vmem:[#allocation34 + $0x34] sm:$0xf]
        %v2671 = vld [vmem:[#allocation34 + $0x38] sm:$0xf]
        %v2672 = vld [vmem:[#allocation34 + $0x3c] sm:$0xf]
        %v2673 = vld [vmem:[#allocation36] sm:$0xf]
        %v2674 = vld [vmem:[#allocation36 + $0x4] sm:$0xf]
        %v2675 = vld [vmem:[#allocation36 + $0x8] sm:$0xf]
        %v2676 = vld [vmem:[#allocation36 + $0xc] sm:$0xf]
        %v2677 = vld [vmem:[#allocation36 + $0x10] sm:$0xf]
        %v2678 = vld [vmem:[#allocation36 + $0x14] sm:$0xf]
        %v2679 = vld [vmem:[#allocation36 + $0x18] sm:$0xf]
        %v2680 = vld [vmem:[#allocation36 + $0x1c] sm:$0xf]
        %v2681 = vld [vmem:[#allocation36 + $0x20] sm:$0xf]
        %v2682 = vld [vmem:[#allocation36 + $0x24] sm:$0xf]
        %v2683 = vld [vmem:[#allocation36 + $0x28] sm:$0xf]
        %v2684 = vld [vmem:[#allocation36 + $0x2c] sm:$0xf]
        %v2685 = vld [vmem:[#allocation36 + $0x30] sm:$0xf]
        %v2686 = vld [vmem:[#allocation36 + $0x34] sm:$0xf]
        %v2687 = vld [vmem:[#allocation36 + $0x38] sm:$0xf]
        %v2688 = vld [vmem:[#allocation36 + $0x3c] sm:$0xf]
        %v2689 = vld [vmem:[%s49] sm:$0x1]
        %v2690 = vld [vmem:[%s51] sm:$0x1]
        %v2692 = vshrl.u32 %v2640, 16
        %v2694 = vrot.slane %v2692, 7
        %v2695 = vshll.u32 %v2640, 16
        %v2697 = vor.u32 %v2694, %v2695
        %v2699 = vsel %vm1395, 0, %v2697
        %v2700 = vrot.slane %v2695, 1
        %v2701 = vor.u32 %v2692, %v2700
        %vm2703 = vcmask 1041408
        %vm2704 = vsmask.f32 1280
        %vm2705 = vmand %vm2703, %vm2704
        %v2706 = vsel %vm2705, %v2701, 0
        %v2723 = vunpack.c.l.b16 %v2657
        %v2724 = vunpack.c.l.b16 %v2658
        %v2725 = vunpack.c.l.b16 %v2659
        %v2726 = vunpack.c.l.b16 %v2660
        %v2727 = vunpack.c.l.b16 %v2661
        %v2728 = vunpack.c.l.b16 %v2662
        %v2729 = vunpack.c.l.b16 %v2663
        %v2730 = vunpack.c.l.b16 %v2664
        %v2731 = vunpack.c.l.b16 %v2665
        %v2732 = vunpack.c.l.b16 %v2666
        %v2733 = vunpack.c.l.b16 %v2667
        %v2734 = vunpack.c.l.b16 %v2668
        %v2735 = vunpack.c.l.b16 %v2669
        %v2736 = vunpack.c.l.b16 %v2670
        %v2737 = vunpack.c.l.b16 %v2671
        %v2738 = vunpack.c.l.b16 %v2672
        %v2739 = vpack.c.b16 %v2724, %v2723
        %v2740 = vpack.c.b16 %v2726, %v2725
        %v2741 = vpack.c.b16 %v2728, %v2727
        %v2742 = vpack.c.b16 %v2730, %v2729
        %v2743 = vpack.c.b16 %v2732, %v2731
        %v2744 = vpack.c.b16 %v2734, %v2733
        %v2745 = vpack.c.b16 %v2736, %v2735
        %v2746 = vpack.c.b16 %v2738, %v2737
        %2755 = vmatprep.subr.bf16.mxu0 0
        %2756 = vmatpush1.bf16.msra.mxu0 %v2739
        %2757 = vmatprep.subr.bf16.mxu0 0
        %2758 = vmatpush1.bf16.msra.mxu0 %v2740
        %2759 = vmatprep.subr.bf16.mxu0 0
        %2760 = vmatpush1.bf16.msra.mxu0 %v2741
        %2761 = vmatprep.subr.bf16.mxu0 0
        %2762 = vmatpush1.bf16.msra.mxu0 %v2742
        %2763 = vmatprep.subr.bf16.mxu0 0
        %2764 = vmatpush1.bf16.msra.mxu0 %v2743
        %2765 = vmatprep.subr.bf16.mxu0 0
        %2766 = vmatpush1.bf16.msra.mxu0 %v2744
        %2767 = vmatprep.subr.bf16.mxu0 0
        %2768 = vmatpush1.bf16.msra.mxu0 %v2745
        %2769 = vmatprep.subr.bf16.mxu0 0
        %2770 = vmatpush1.bf16.msra.mxu0 %v2746
        %2771 = vmatprep.subr.bf16.mxu0 0
        %2772 = vmatpush1.bf16.msra.mxu0 0
        %2773 = vmatprep.subr.bf16.mxu0 0
        %2774 = vmatpush1.bf16.msra.mxu0 0
        %2775 = vmatprep.subr.bf16.mxu0 0
        %2776 = vmatpush1.bf16.msra.mxu0 0
        %2777 = vmatprep.subr.bf16.mxu0 0
        %2778 = vmatpush1.bf16.msra.mxu0 0
        %2779 = vmatprep.subr.bf16.mxu0 0
        %2780 = vmatpush1.bf16.msra.mxu0 0
        %2781 = vmatprep.subr.bf16.mxu0 0
        %2782 = vmatpush1.bf16.msra.mxu0 0
        %2783 = vmatprep.subr.bf16.mxu0 0
        %2784 = vmatpush1.bf16.msra.mxu0 0
        %2785 = vmatprep.subr.bf16.mxu0 0
        %2786 = vmatpush1.bf16.msra.mxu0 0
        %2787 = vmatprep.mubr.bf16.mxu0 0
        %2788 = vmatmul.mubr.bf16.gmra.mrb[0].mxu0 %v2640
        %v2789 = vpop.f32.mrb[0].mxu0
        %v2790 = vadd.f32 0.0, %v2789
        %v2791 = vpop.f32.mrb[0].mxu0
        %v2792 = vpop.f32.mrb[0].mxu0
        %v2793 = vpop.f32.mrb[0].mxu0
        %2794 = vdwg.mxu0
        %v2811 = vunpack.c.l.b16 %v2641
        %v2812 = vunpack.c.l.b16 %v2642
        %v2813 = vunpack.c.l.b16 %v2643
        %v2814 = vunpack.c.l.b16 %v2644
        %v2815 = vunpack.c.l.b16 %v2645
        %v2816 = vunpack.c.l.b16 %v2646
        %v2817 = vunpack.c.l.b16 %v2647
        %v2818 = vunpack.c.l.b16 %v2648
        %v2819 = vunpack.c.l.b16 %v2649
        %v2820 = vunpack.c.l.b16 %v2650
        %v2821 = vunpack.c.l.b16 %v2651
        %v2822 = vunpack.c.l.b16 %v2652
        %v2823 = vunpack.c.l.b16 %v2653
        %v2824 = vunpack.c.l.b16 %v2654
        %v2825 = vunpack.c.l.b16 %v2655
        %v2826 = vunpack.c.l.b16 %v2656
        %v2827 = vpack.c.b16 %v2812, %v2811
        %v2828 = vpack.c.b16 %v2814, %v2813
        %v2829 = vpack.c.b16 %v2816, %v2815
        %v2830 = vpack.c.b16 %v2818, %v2817
        %v2831 = vpack.c.b16 %v2820, %v2819
        %v2832 = vpack.c.b16 %v2822, %v2821
        %v2833 = vpack.c.b16 %v2824, %v2823
        %v2834 = vpack.c.b16 %v2826, %v2825
        %2843 = vmatprep.subr.bf16.mxu0 0
        %2844 = vmatpush1.bf16.msra.mxu0 %v2827
        %2845 = vmatprep.subr.bf16.mxu0 0
        %2846 = vmatpush1.bf16.msra.mxu0 %v2828
        %2847 = vmatprep.subr.bf16.mxu0 0
        %2848 = vmatpush1.bf16.msra.mxu0 %v2829
        %2849 = vmatprep.subr.bf16.mxu0 0
        %2850 = vmatpush1.bf16.msra.mxu0 %v2830
        %2851 = vmatprep.subr.bf16.mxu0 0
        %2852 = vmatpush1.bf16.msra.mxu0 %v2831
        %2853 = vmatprep.subr.bf16.mxu0 0
        %2854 = vmatpush1.bf16.msra.mxu0 %v2832
        %2855 = vmatprep.subr.bf16.mxu0 0
        %2856 = vmatpush1.bf16.msra.mxu0 %v2833
        %2857 = vmatprep.subr.bf16.mxu0 0
        %2858 = vmatpush1.bf16.msra.mxu0 %v2834
        %2859 = vmatprep.subr.bf16.mxu0 0
        %2860 = vmatpush1.bf16.msra.mxu0 0
        %2861 = vmatprep.subr.bf16.mxu0 0
        %2862 = vmatpush1.bf16.msra.mxu0 0
        %2863 = vmatprep.subr.bf16.mxu0 0
        %2864 = vmatpush1.bf16.msra.mxu0 0
        %2865 = vmatprep.subr.bf16.mxu0 0
        %2866 = vmatpush1.bf16.msra.mxu0 0
        %2867 = vmatprep.subr.bf16.mxu0 0
        %2868 = vmatpush1.bf16.msra.mxu0 0
        %2869 = vmatprep.subr.bf16.mxu0 0
        %2870 = vmatpush1.bf16.msra.mxu0 0
        %2871 = vmatprep.subr.bf16.mxu0 0
        %2872 = vmatpush1.bf16.msra.mxu0 0
        %2873 = vmatprep.subr.bf16.mxu0 0
        %2874 = vmatpush1.bf16.msra.mxu0 0
        %2875 = vmatprep.mubr.bf16.mxu0 0
        %2876 = vmatmul.mubr.bf16.gmra.mrb[0].mxu0 %v2699
        %v2877 = vpop.f32.mrb[0].mxu0
        %v2878 = vadd.f32 %v2790, %v2877
        %v2879 = vpop.f32.mrb[0].mxu0
        %v2880 = vpop.f32.mrb[0].mxu0
        %v2881 = vpop.f32.mrb[0].mxu0
        %2882 = vdwg.mxu0
        %v2899 = vunpack.c.l.b16 %v2673
        %v2900 = vunpack.c.l.b16 %v2674
        %v2901 = vunpack.c.l.b16 %v2675
        %v2902 = vunpack.c.l.b16 %v2676
        %v2903 = vunpack.c.l.b16 %v2677
        %v2904 = vunpack.c.l.b16 %v2678
        %v2905 = vunpack.c.l.b16 %v2679
        %v2906 = vunpack.c.l.b16 %v2680
        %v2907 = vunpack.c.l.b16 %v2681
        %v2908 = vunpack.c.l.b16 %v2682
        %v2909 = vunpack.c.l.b16 %v2683
        %v2910 = vunpack.c.l.b16 %v2684
        %v2911 = vunpack.c.l.b16 %v2685
        %v2912 = vunpack.c.l.b16 %v2686
        %v2913 = vunpack.c.l.b16 %v2687
        %v2914 = vunpack.c.l.b16 %v2688
        %v2915 = vpack.c.b16 %v2900, %v2899
        %v2916 = vpack.c.b16 %v2902, %v2901
        %v2917 = vpack.c.b16 %v2904, %v2903
        %v2918 = vpack.c.b16 %v2906, %v2905
        %v2919 = vpack.c.b16 %v2908, %v2907
        %v2920 = vpack.c.b16 %v2910, %v2909
        %v2921 = vpack.c.b16 %v2912, %v2911
        %v2922 = vpack.c.b16 %v2914, %v2913
        %2931 = vmatprep.subr.bf16.mxu0 0
        %2932 = vmatpush1.bf16.msra.mxu0 %v2915
        %2933 = vmatprep.subr.bf16.mxu0 0
        %2934 = vmatpush1.bf16.msra.mxu0 %v2916
        %2935 = vmatprep.subr.bf16.mxu0 0
        %2936 = vmatpush1.bf16.msra.mxu0 %v2917
        %2937 = vmatprep.subr.bf16.mxu0 0
        %2938 = vmatpush1.bf16.msra.mxu0 %v2918
        %2939 = vmatprep.subr.bf16.mxu0 0
        %2940 = vmatpush1.bf16.msra.mxu0 %v2919
        %2941 = vmatprep.subr.bf16.mxu0 0
        %2942 = vmatpush1.bf16.msra.mxu0 %v2920
        %2943 = vmatprep.subr.bf16.mxu0 0
        %2944 = vmatpush1.bf16.msra.mxu0 %v2921
        %2945 = vmatprep.subr.bf16.mxu0 0
        %2946 = vmatpush1.bf16.msra.mxu0 %v2922
        %2947 = vmatprep.subr.bf16.mxu0 0
        %2948 = vmatpush1.bf16.msra.mxu0 0
        %2949 = vmatprep.subr.bf16.mxu0 0
        %2950 = vmatpush1.bf16.msra.mxu0 0
        %2951 = vmatprep.subr.bf16.mxu0 0
        %2952 = vmatpush1.bf16.msra.mxu0 0
        %2953 = vmatprep.subr.bf16.mxu0 0
        %2954 = vmatpush1.bf16.msra.mxu0 0
        %2955 = vmatprep.subr.bf16.mxu0 0
        %2956 = vmatpush1.bf16.msra.mxu0 0
        %2957 = vmatprep.subr.bf16.mxu0 0
        %2958 = vmatpush1.bf16.msra.mxu0 0
        %2959 = vmatprep.subr.bf16.mxu0 0
        %2960 = vmatpush1.bf16.msra.mxu0 0
        %2961 = vmatprep.subr.bf16.mxu0 0
        %2962 = vmatpush1.bf16.msra.mxu0 0
        %2963 = vmatprep.mubr.bf16.mxu0 0
        %2964 = vmatmul.mubr.bf16.gmra.mrb[0].mxu0 %v2706
        %v2965 = vpop.f32.mrb[0].mxu0
        %v2966 = vadd.f32 0.0, %v2965
        %v2967 = vpop.f32.mrb[0].mxu0
        %v2968 = vpop.f32.mrb[0].mxu0
        %v2969 = vpop.f32.mrb[0].mxu0
        %2970 = vdwg.mxu0
        %v2971 = vadd.f32 %v2878, %v2966
        %v2973 = vlaneseq
        %v2974 = vshrl.u32 %v2973, 7
        %v2975 = vsub.s32 0, %v2974
        %v2976 = vrot.slane %v2689, %v2975
        %v2978 = vmul.f32 %v2971, %v2976
        %v2980 = vlaneseq
        %v2981 = vshrl.u32 %v2980, 7
        %v2982 = vsub.s32 0, %v2981
        %v2983 = vrot.slane %v2690, %v2982
        %v2985 = vadd.f32 %v2978, %v2983
        %v2986 = vmax.f32 %v2985, 0.0
        %v2987 = vpack.c.bf16 %v2986, %v2986
        %v2988 = vld [vmem:[#allocation37] sm:$0xf]
        %v2989 = vld [vmem:[#allocation37 + $0x4] sm:$0xf]
        %v2990 = vld [vmem:[#allocation37 + $0x8] sm:$0xf]
        %v2991 = vld [vmem:[#allocation37 + $0xc] sm:$0xf]
        %v2992 = vld [vmem:[#allocation37 + $0x10] sm:$0xf]
        %v2993 = vld [vmem:[#allocation37 + $0x14] sm:$0xf]
        %v2994 = vld [vmem:[#allocation37 + $0x18] sm:$0xf]
        %v2995 = vld [vmem:[#allocation37 + $0x1c] sm:$0xf]
        %v2996 = vld [vmem:[#allocation37 + $0x20] sm:$0xf]
        %v2997 = vld [vmem:[#allocation37 + $0x24] sm:$0xf]
        %v2998 = vld [vmem:[#allocation37 + $0x28] sm:$0xf]
        %v2999 = vld [vmem:[#allocation37 + $0x2c] sm:$0xf]
        %v3000 = vld [vmem:[#allocation37 + $0x30] sm:$0xf]
        %v3001 = vld [vmem:[#allocation37 + $0x34] sm:$0xf]
        %v3002 = vld [vmem:[#allocation37 + $0x38] sm:$0xf]
        %v3003 = vld [vmem:[#allocation37 + $0x3c] sm:$0xf]
        %v3004 = vld [vmem:[#allocation39] sm:$0xf]
        %v3005 = vld [vmem:[#allocation39 + $0x4] sm:$0xf]
        %v3006 = vld [vmem:[#allocation39 + $0x8] sm:$0xf]
        %v3007 = vld [vmem:[#allocation39 + $0xc] sm:$0xf]
        %v3008 = vld [vmem:[#allocation39 + $0x10] sm:$0xf]
        %v3009 = vld [vmem:[#allocation39 + $0x14] sm:$0xf]
        %v3010 = vld [vmem:[#allocation39 + $0x18] sm:$0xf]
        %v3011 = vld [vmem:[#allocation39 + $0x1c] sm:$0xf]
        %v3012 = vld [vmem:[#allocation39 + $0x20] sm:$0xf]
        %v3013 = vld [vmem:[#allocation39 + $0x24] sm:$0xf]
        %v3014 = vld [vmem:[#allocation39 + $0x28] sm:$0xf]
        %v3015 = vld [vmem:[#allocation39 + $0x2c] sm:$0xf]
        %v3016 = vld [vmem:[#allocation39 + $0x30] sm:$0xf]
        %v3017 = vld [vmem:[#allocation39 + $0x34] sm:$0xf]
        %v3018 = vld [vmem:[#allocation39 + $0x38] sm:$0xf]
        %v3019 = vld [vmem:[#allocation39 + $0x3c] sm:$0xf]
        %v3020 = vld [vmem:[#allocation40] sm:$0xf]
        %v3021 = vld [vmem:[#allocation40 + $0x4] sm:$0xf]
        %v3022 = vld [vmem:[#allocation40 + $0x8] sm:$0xf]
        %v3023 = vld [vmem:[#allocation40 + $0xc] sm:$0xf]
        %v3024 = vld [vmem:[#allocation40 + $0x10] sm:$0xf]
        %v3025 = vld [vmem:[#allocation40 + $0x14] sm:$0xf]
        %v3026 = vld [vmem:[#allocation40 + $0x18] sm:$0xf]
        %v3027 = vld [vmem:[#allocation40 + $0x1c] sm:$0xf]
        %v3028 = vld [vmem:[#allocation40 + $0x20] sm:$0xf]
        %v3029 = vld [vmem:[#allocation40 + $0x24] sm:$0xf]
        %v3030 = vld [vmem:[#allocation40 + $0x28] sm:$0xf]
        %v3031 = vld [vmem:[#allocation40 + $0x2c] sm:$0xf]
        %v3032 = vld [vmem:[#allocation40 + $0x30] sm:$0xf]
        %v3033 = vld [vmem:[#allocation40 + $0x34] sm:$0xf]
        %v3034 = vld [vmem:[#allocation40 + $0x38] sm:$0xf]
        %v3035 = vld [vmem:[#allocation40 + $0x3c] sm:$0xf]
        %v3036 = vld [vmem:[%s59] sm:$0x1]
        %v3037 = vld [vmem:[%s61] sm:$0x1]
        %v3039 = vshrl.u32 %v2987, 16
        %v3041 = vrot.slane %v3039, 7
        %v3042 = vshll.u32 %v2987, 16
        %v3044 = vor.u32 %v3041, %v3042
        %v3046 = vsel %vm1395, 0, %v3044
        %v3047 = vrot.slane %v3042, 1
        %v3048 = vor.u32 %v3039, %v3047
        %v3050 = vsel %vm2705, %v3048, 0
        %v3067 = vunpack.c.l.b16 %v3004
        %v3068 = vunpack.c.l.b16 %v3005
        %v3069 = vunpack.c.l.b16 %v3006
        %v3070 = vunpack.c.l.b16 %v3007
        %v3071 = vunpack.c.l.b16 %v3008
        %v3072 = vunpack.c.l.b16 %v3009
        %v3073 = vunpack.c.l.b16 %v3010
        %v3074 = vunpack.c.l.b16 %v3011
        %v3075 = vunpack.c.l.b16 %v3012
        %v3076 = vunpack.c.l.b16 %v3013
        %v3077 = vunpack.c.l.b16 %v3014
        %v3078 = vunpack.c.l.b16 %v3015
        %v3079 = vunpack.c.l.b16 %v3016
        %v3080 = vunpack.c.l.b16 %v3017
        %v3081 = vunpack.c.l.b16 %v3018
        %v3082 = vunpack.c.l.b16 %v3019
        %v3083 = vpack.c.b16 %v3068, %v3067
        %v3084 = vpack.c.b16 %v3070, %v3069
        %v3085 = vpack.c.b16 %v3072, %v3071
        %v3086 = vpack.c.b16 %v3074, %v3073
        %v3087 = vpack.c.b16 %v3076, %v3075
        %v3088 = vpack.c.b16 %v3078, %v3077
        %v3089 = vpack.c.b16 %v3080, %v3079
        %v3090 = vpack.c.b16 %v3082, %v3081
        %3099 = vmatprep.subr.bf16.mxu0 0
        %3100 = vmatpush1.bf16.msra.mxu0 %v3083
        %3101 = vmatprep.subr.bf16.mxu0 0
        %3102 = vmatpush1.bf16.msra.mxu0 %v3084
        %3103 = vmatprep.subr.bf16.mxu0 0
        %3104 = vmatpush1.bf16.msra.mxu0 %v3085
        %3105 = vmatprep.subr.bf16.mxu0 0
        %3106 = vmatpush1.bf16.msra.mxu0 %v3086
        %3107 = vmatprep.subr.bf16.mxu0 0
        %3108 = vmatpush1.bf16.msra.mxu0 %v3087
        %3109 = vmatprep.subr.bf16.mxu0 0
        %3110 = vmatpush1.bf16.msra.mxu0 %v3088
        %3111 = vmatprep.subr.bf16.mxu0 0
        %3112 = vmatpush1.bf16.msra.mxu0 %v3089
        %3113 = vmatprep.subr.bf16.mxu0 0
        %3114 = vmatpush1.bf16.msra.mxu0 %v3090
        %3115 = vmatprep.subr.bf16.mxu0 0
        %3116 = vmatpush1.bf16.msra.mxu0 0
        %3117 = vmatprep.subr.bf16.mxu0 0
        %3118 = vmatpush1.bf16.msra.mxu0 0
        %3119 = vmatprep.subr.bf16.mxu0 0
        %3120 = vmatpush1.bf16.msra.mxu0 0
        %3121 = vmatprep.subr.bf16.mxu0 0
        %3122 = vmatpush1.bf16.msra.mxu0 0
        %3123 = vmatprep.subr.bf16.mxu0 0
        %3124 = vmatpush1.bf16.msra.mxu0 0
        %3125 = vmatprep.subr.bf16.mxu0 0
        %3126 = vmatpush1.bf16.msra.mxu0 0
        %3127 = vmatprep.subr.bf16.mxu0 0
        %3128 = vmatpush1.bf16.msra.mxu0 0
        %3129 = vmatprep.subr.bf16.mxu0 0
        %3130 = vmatpush1.bf16.msra.mxu0 0
        %3131 = vmatprep.mubr.bf16.mxu0 0
        %3132 = vmatmul.mubr.bf16.gmra.mrb[0].mxu0 %v2987
        %v3133 = vpop.f32.mrb[0].mxu0
        %v3134 = vadd.f32 0.0, %v3133
        %v3135 = vpop.f32.mrb[0].mxu0
        %v3136 = vpop.f32.mrb[0].mxu0
        %v3137 = vpop.f32.mrb[0].mxu0
        %3138 = vdwg.mxu0
        %v3155 = vunpack.c.l.b16 %v2988
        %v3156 = vunpack.c.l.b16 %v2989
        %v3157 = vunpack.c.l.b16 %v2990
        %v3158 = vunpack.c.l.b16 %v2991
        %v3159 = vunpack.c.l.b16 %v2992
        %v3160 = vunpack.c.l.b16 %v2993
        %v3161 = vunpack.c.l.b16 %v2994
        %v3162 = vunpack.c.l.b16 %v2995
        %v3163 = vunpack.c.l.b16 %v2996
        %v3164 = vunpack.c.l.b16 %v2997
        %v3165 = vunpack.c.l.b16 %v2998
        %v3166 = vunpack.c.l.b16 %v2999
        %v3167 = vunpack.c.l.b16 %v3000
        %v3168 = vunpack.c.l.b16 %v3001
        %v3169 = vunpack.c.l.b16 %v3002
        %v3170 = vunpack.c.l.b16 %v3003
        %v3171 = vpack.c.b16 %v3156, %v3155
        %v3172 = vpack.c.b16 %v3158, %v3157
        %v3173 = vpack.c.b16 %v3160, %v3159
        %v3174 = vpack.c.b16 %v3162, %v3161
        %v3175 = vpack.c.b16 %v3164, %v3163
        %v3176 = vpack.c.b16 %v3166, %v3165
        %v3177 = vpack.c.b16 %v3168, %v3167
        %v3178 = vpack.c.b16 %v3170, %v3169
        %3187 = vmatprep.subr.bf16.mxu0 0
        %3188 = vmatpush1.bf16.msra.mxu0 %v3171
        %3189 = vmatprep.subr.bf16.mxu0 0
        %3190 = vmatpush1.bf16.msra.mxu0 %v3172
        %3191 = vmatprep.subr.bf16.mxu0 0
        %3192 = vmatpush1.bf16.msra.mxu0 %v3173
        %3193 = vmatprep.subr.bf16.mxu0 0
        %3194 = vmatpush1.bf16.msra.mxu0 %v3174
        %3195 = vmatprep.subr.bf16.mxu0 0
        %3196 = vmatpush1.bf16.msra.mxu0 %v3175
        %3197 = vmatprep.subr.bf16.mxu0 0
        %3198 = vmatpush1.bf16.msra.mxu0 %v3176
        %3199 = vmatprep.subr.bf16.mxu0 0
        %3200 = vmatpush1.bf16.msra.mxu0 %v3177
        %3201 = vmatprep.subr.bf16.mxu0 0
        %3202 = vmatpush1.bf16.msra.mxu0 %v3178
        %3203 = vmatprep.subr.bf16.mxu0 0
        %3204 = vmatpush1.bf16.msra.mxu0 0
        %3205 = vmatprep.subr.bf16.mxu0 0
        %3206 = vmatpush1.bf16.msra.mxu0 0
        %3207 = vmatprep.subr.bf16.mxu0 0
        %3208 = vmatpush1.bf16.msra.mxu0 0
        %3209 = vmatprep.subr.bf16.mxu0 0
        %3210 = vmatpush1.bf16.msra.mxu0 0
        %3211 = vmatprep.subr.bf16.mxu0 0
        %3212 = vmatpush1.bf16.msra.mxu0 0
        %3213 = vmatprep.subr.bf16.mxu0 0
        %3214 = vmatpush1.bf16.msra.mxu0 0
        %3215 = vmatprep.subr.bf16.mxu0 0
        %3216 = vmatpush1.bf16.msra.mxu0 0
        %3217 = vmatprep.subr.bf16.mxu0 0
        %3218 = vmatpush1.bf16.msra.mxu0 0
        %3219 = vmatprep.mubr.bf16.mxu0 0
        %3220 = vmatmul.mubr.bf16.gmra.mrb[0].mxu0 %v3046
        %v3221 = vpop.f32.mrb[0].mxu0
        %v3222 = vadd.f32 %v3134, %v3221
        %v3223 = vpop.f32.mrb[0].mxu0
        %v3224 = vpop.f32.mrb[0].mxu0
        %v3225 = vpop.f32.mrb[0].mxu0
        %3226 = vdwg.mxu0
        %v3243 = vunpack.c.l.b16 %v3020
        %v3244 = vunpack.c.l.b16 %v3021
        %v3245 = vunpack.c.l.b16 %v3022
        %v3246 = vunpack.c.l.b16 %v3023
        %v3247 = vunpack.c.l.b16 %v3024
        %v3248 = vunpack.c.l.b16 %v3025
        %v3249 = vunpack.c.l.b16 %v3026
        %v3250 = vunpack.c.l.b16 %v3027
        %v3251 = vunpack.c.l.b16 %v3028
        %v3252 = vunpack.c.l.b16 %v3029
        %v3253 = vunpack.c.l.b16 %v3030
        %v3254 = vunpack.c.l.b16 %v3031
        %v3255 = vunpack.c.l.b16 %v3032
        %v3256 = vunpack.c.l.b16 %v3033
        %v3257 = vunpack.c.l.b16 %v3034
        %v3258 = vunpack.c.l.b16 %v3035
        %v3259 = vpack.c.b16 %v3244, %v3243
        %v3260 = vpack.c.b16 %v3246, %v3245
        %v3261 = vpack.c.b16 %v3248, %v3247
        %v3262 = vpack.c.b16 %v3250, %v3249
        %v3263 = vpack.c.b16 %v3252, %v3251
        %v3264 = vpack.c.b16 %v3254, %v3253
        %v3265 = vpack.c.b16 %v3256, %v3255
        %v3266 = vpack.c.b16 %v3258, %v3257
        %3275 = vmatprep.subr.bf16.mxu0 0
        %3276 = vmatpush1.bf16.msra.mxu0 %v3259
        %3277 = vmatprep.subr.bf16.mxu0 0
        %3278 = vmatpush1.bf16.msra.mxu0 %v3260
        %3279 = vmatprep.subr.bf16.mxu0 0
        %3280 = vmatpush1.bf16.msra.mxu0 %v3261
        %3281 = vmatprep.subr.bf16.mxu0 0
        %3282 = vmatpush1.bf16.msra.mxu0 %v3262
        %3283 = vmatprep.subr.bf16.mxu0 0
        %3284 = vmatpush1.bf16.msra.mxu0 %v3263
        %3285 = vmatprep.subr.bf16.mxu0 0
        %3286 = vmatpush1.bf16.msra.mxu0 %v3264
        %3287 = vmatprep.subr.bf16.mxu0 0
        %3288 = vmatpush1.bf16.msra.mxu0 %v3265
        %3289 = vmatprep.subr.bf16.mxu0 0
        %3290 = vmatpush1.bf16.msra.mxu0 %v3266
        %3291 = vmatprep.subr.bf16.mxu0 0
        %3292 = vmatpush1.bf16.msra.mxu0 0
        %3293 = vmatprep.subr.bf16.mxu0 0
        %3294 = vmatpush1.bf16.msra.mxu0 0
        %3295 = vmatprep.subr.bf16.mxu0 0
        %3296 = vmatpush1.bf16.msra.mxu0 0
        %3297 = vmatprep.subr.bf16.mxu0 0
        %3298 = vmatpush1.bf16.msra.mxu0 0
        %3299 = vmatprep.subr.bf16.mxu0 0
        %3300 = vmatpush1.bf16.msra.mxu0 0
        %3301 = vmatprep.subr.bf16.mxu0 0
        %3302 = vmatpush1.bf16.msra.mxu0 0
        %3303 = vmatprep.subr.bf16.mxu0 0
        %3304 = vmatpush1.bf16.msra.mxu0 0
        %3305 = vmatprep.subr.bf16.mxu0 0
        %3306 = vmatpush1.bf16.msra.mxu0 0
        %3307 = vmatprep.mubr.bf16.mxu0 0
        %3308 = vmatmul.mubr.bf16.gmra.mrb[0].mxu0 %v3050
        %v3309 = vpop.f32.mrb[0].mxu0
        %v3310 = vadd.f32 0.0, %v3309
        %v3311 = vpop.f32.mrb[0].mxu0
        %v3312 = vpop.f32.mrb[0].mxu0
        %v3313 = vpop.f32.mrb[0].mxu0
        %3314 = vdwg.mxu0
        %v3315 = vadd.f32 %v3222, %v3310
        %v3317 = vlaneseq
        %v3318 = vshrl.u32 %v3317, 7
        %v3319 = vsub.s32 0, %v3318
        %v3320 = vrot.slane %v3036, %v3319
        %v3322 = vmul.f32 %v3315, %v3320
        %v3324 = vlaneseq
        %v3325 = vshrl.u32 %v3324, 7
        %v3326 = vsub.s32 0, %v3325
        %v3327 = vrot.slane %v3037, %v3326
        %v3329 = vadd.f32 %v3322, %v3327
        %v3330 = vmax.f32 %v3329, 0.0
        %3331 = vst [vmem:[%s1372] sm:$0xf] %v3330
        %s3332 = sand.u32 %s764, 1
        %s3333 = scalar_lea.sflag [#allocation6], %s3332
        %s3334 = sand.u32 %s764, 1
        %s3335 = smul.addr %s3334, 16
        %s3336 = scalar_lea.vmem [#allocation42], %s3335
        %s3337 = sand.u32 %s100, 1
        %s3338 = scalar_lea.sflag [#allocation44], %s3337
        %s3339 = sand.u32 %s790, 1
        %s3340 = smul.addr %s3339, 8
        %s3341 = scalar_lea.vmem [#allocation43], %s3340
        %s3342 = sand.u32 %s100, 1
        %s3343 = scalar_lea.sflag [#allocation44], %s3342
        %s3344 = sand.u32 %s816, 1
        %s3345 = smul.addr %s3344, 4
        %s3346 = scalar_lea.vmem [#allocation45], %s3345
        // Predicated region
        $region241: #{tpu_custom_call.1} parent=143 // pred_check
          %p3347 = pneg %p774
        $region242: #{tpu_custom_call.1} parent=143 // pred_check_branch
          %3349 = sbr.rel (%p3347) target = $region244
        $region243: #{tpu_custom_call.1} parent=143 // pred_region
          %s3351 = ssub.s32 256, 256
          %3352 = vsyncadd %s3333, %s3351
          %s3353 = smul.addr %s100, 2
          %s3354 = smul.addr %s3353, 128
          %s3355 = scalar_lea.hbm %s63, %s3354
          %s3356 = sshll.u32 %s3336, 4
          %s3357 = int_to_ptr.vmem [resolvable:$true] %s3356
          %3362 = dma.vmem_to_hbm [thread:$0]  %s3357, 256, %s3355, %s3333, 128, 128, 8
        $region244: #{tpu_custom_call.1} parent=143 // pred_fallthru
          _
        // Predicated region
        $region245: #{tpu_custom_call.1} parent=143 // pred_check
          %p3363 = pneg %p800
        $region246: #{tpu_custom_call.1} parent=143 // pred_check_branch
          %3365 = sbr.rel (%p3363) target = $region248
        $region247: #{tpu_custom_call.1} parent=143 // pred_region
          %s3367 = ssub.s32 128, 128
          %3368 = vsyncadd %s3338, %s3367
          %s3369 = smul.addr %s100, 128
          %s3370 = scalar_lea.hbm %s65, %s3369
          %s3372 = sshll.u32 %s3341, 4
          %s3373 = int_to_ptr.vmem [resolvable:$true] %s3372
          %3375 = dma.vmem_to_hbm [thread:$0]  %s3373, 128, %s3370, %s3338
        $region248: #{tpu_custom_call.1} parent=143 // pred_fallthru
          _
        // Predicated region
        $region249: #{tpu_custom_call.1} parent=143 // pred_check
          %p3376 = pneg %p826
        $region250: #{tpu_custom_call.1} parent=143 // pred_check_branch
          %3378 = sbr.rel (%p3376) target = $region252
        $region251: #{tpu_custom_call.1} parent=143 // pred_region
          %s3380 = ssub.s32 64, 64
          %3381 = vsyncadd %s3343, %s3380
          %s3382 = smul.addr %s100, 64
          %s3383 = scalar_lea.hbm %s67, %s3382
          %s3385 = sshll.u32 %s3346, 4
          %s3386 = int_to_ptr.vmem [resolvable:$true] %s3385
          %3388 = dma.vmem_to_hbm [thread:$0]  %s3386, 64, %s3383, %s3343
        $region252: #{tpu_custom_call.1} parent=143 // pred_fallthru
          _
      $region144: #{tpu_custom_call.1} parent=5 // pred_fallthru
        _
      %p3389 = scmp.le.s32.totalorder 2, %s95
      // Predicated region
      $region253: #{tpu_custom_call.1} parent=5 // pred_check
        %p3390 = pneg %p3389
      $region254: #{tpu_custom_call.1} parent=5 // pred_check_branch
        %3392 = sbr.rel (%p3390) target = $region256
      $region255: #{tpu_custom_call.1} parent=5 // pred_region
        %s3393 = ssub.s32 %s95, 2
        // Predicated region
        $region257: #{tpu_custom_call.1} parent=255 // pred_check
          %p3394 = pneg %p780
        $region258: #{tpu_custom_call.1} parent=255 // pred_check_branch
          %3396 = sbr.rel (%p3394) target = $region260
        $region259: #{tpu_custom_call.1} parent=255 // pred_region
          %s3397 = sand.u32 %s765, 1
          %s3398 = scalar_lea.sflag [#allocation6], %s3397
          %s3399 = sand.u32 %s765, 1
          %s3400 = smul.addr %s3399, 16
          %s3401 = scalar_lea.vmem [#allocation42], %s3400
          %3402 = dma.done %s3398, 256
        $region260: #{tpu_custom_call.1} parent=255 // pred_fallthru
          _
        // Predicated region
        $region261: #{tpu_custom_call.1} parent=255 // pred_check
          %p3403 = pneg %p806
        $region262: #{tpu_custom_call.1} parent=255 // pred_check_branch
          %3405 = sbr.rel (%p3403) target = $region264
        $region263: #{tpu_custom_call.1} parent=255 // pred_region
          %s3406 = sand.u32 %s101, 1
          %s3407 = scalar_lea.sflag [#allocation44], %s3406
          %s3408 = sand.u32 %s791, 1
          %s3409 = smul.addr %s3408, 8
          %s3410 = scalar_lea.vmem [#allocation43], %s3409
          %3411 = dma.done %s3407, 128
        $region264: #{tpu_custom_call.1} parent=255 // pred_fallthru
          _
        // Predicated region
        $region265: #{tpu_custom_call.1} parent=255 // pred_check
          %p3412 = pneg %p832
        $region266: #{tpu_custom_call.1} parent=255 // pred_check_branch
          %3414 = sbr.rel (%p3412) target = $region268
        $region267: #{tpu_custom_call.1} parent=255 // pred_region
          %s3415 = sand.u32 %s101, 1
          %s3416 = scalar_lea.sflag [#allocation44], %s3415
          %s3417 = sand.u32 %s817, 1
          %s3418 = smul.addr %s3417, 4
          %s3419 = scalar_lea.vmem [#allocation45], %s3418
          %3420 = dma.done %s3416, 64
        $region268: #{tpu_custom_call.1} parent=255 // pred_fallthru
          _
      $region256: #{tpu_custom_call.1} parent=5 // pred_fallthru
        _
    $region6: #{tpu_custom_call.1} parent=1 // loop_footer
      %s99 = sadd.s32 1, %s95
    $region7: #{tpu_custom_call.1} parent=1 // loop_footer_branch
      %94 = sbr.rel target = $region3
    $region8: #{tpu_custom_call.1} parent=1 // loop_exit
      _
    %3421 = vsyncpa [#allocation5], 1
    %s3422 = scalar_lea.sflag [#allocation5], 1
    %3423 = vsyncpa %s3422, 1
    %3424 = vsyncpa [#allocation8], 1
    %3425 = vsyncpa [#allocation11], 1
    %3426 = vsyncpa [#allocation14], 1
    %3427 = vsyncpa [#allocation17], 1
    %3428 = vsyncpa [#allocation20], 1
    %3429 = vsyncpa [#allocation23], 1
    %3430 = vsyncpa [#allocation26], 1
    %3431 = vsyncpa [#allocation29], 1
    %3432 = vsyncpa [#allocation32], 1
    %3433 = vsyncpa [#allocation35], 1
    %3434 = vsyncpa [#allocation38], 1
    %3435 = vsyncpa [#allocation41], 1
    %3436 = vsyncpa [#allocation6], 1
    %s3437 = scalar_lea.sflag [#allocation6], 1
    %3438 = vsyncpa %s3437, 1
    %3439 = vsyncpa [#allocation44], 1
    %s3440 = scalar_lea.sflag [#allocation44], 1
    %3441 = vsyncpa %s3440, 1

</llo_original>
